<compile_context>
chip_gen: v7x
topology: tpu7x:2x2x1
jax: 0.10.0
libtpu: 0.0.40
codegen_flags: <defaults>
</compile_context>

<pallas_src>
import numpy as np
from types import SimpleNamespace

import jax
import jax.numpy as jnp
from jax.experimental import pallas as pl
from jax.experimental.pallas import tpu as pltpu

# ---------------------------------------------------------------------------
# Config mirroring the PyTorch module's __init__
# ---------------------------------------------------------------------------
CONFIG = SimpleNamespace(depth=4, kernel_size=5, stride=2, activation="ReLU")
INPUT_SIZE = 32
OBS_SHAPE = (3, 64, 64)          # (C, H, W): 1 -> 5 -> 13 -> 30 -> 64
BATCH = 2

# Batch elements packed into the sublane (M) dimension per grid step.  2 keeps
# the toy batch in a single grid step (v5e-optimal); raise it (e.g. 8) for
# realistic DreamerV2 batch sizes to amortize RHS weight pushes further.
BATCH_TILE = 2


def _layer_defs():
    depth, k = CONFIG.depth, CONFIG.kernel_size
    c_obs = OBS_SHAPE[0]
    # (name, Cin, Cout, kernel)
    return [("1", depth * 32, depth * 4, k),
            ("2", depth * 4, depth * 2, k),
            ("3", depth * 2, depth * 1, k + 1),
            ("4", depth * 1, c_obs, k + 1)]


def _const_index_map(ndim):
    zeros = (0,) * ndim
    return lambda t: zeros


# ---------------------------------------------------------------------------
# One-time parameter preparation (pure numpy; kept OUT of the hot path).
#
# Activation layout inside the kernel: a[row(b, iy), ic*W_in + ix]  (C-major
# lanes).  Each ConvTranspose2d becomes:
#   t_ky   = A @ G[ky]                      (all kx taps + width scatter fused)
#   stack  = [t_0; t_1; ...; t_{k-1}]       (sublane stacking)
#   Y      = SY_all @ stack + bias_row      (ONE merged height-scatter matmul)
# where SY_all[(b, oy), (ky, row(b, iy))] = 1  iff  oy == s*iy + ky.
# ---------------------------------------------------------------------------
def prepare_params(params, batch_tile=None):
    bt = BATCH_TILE if batch_tile is None else batch_tile
    s = CONFIG.stride
    layers = _layer_defs()

    def fold_conv(W, b, h_in):
        # W: (Cin, Cout, k, k) PyTorch ConvTranspose2d layout.
        cin, cout, k, _ = W.shape
        w_in = h_in
        h_out = (h_in - 1) * s + k
        w_out = h_out
        G = np.zeros((k, w_in * cin, w_out * cout), np.float32)
        for ky in range(k):
            for ic in range(cin):
                for ix in range(w_in):
                    for kx in range(k):
                        ox = s * ix + kx
                        # output lane = oc*w_out + ox  (channel-major lanes)
                        G[ky, ic * w_in + ix, ox::w_out] = W[ic, :, ky, kx]
        brow = np.repeat(b.astype(np.float32), w_out)[None, :]   # (1, cout*w_out)
        return G, brow, h_out

    def make_sy(k, h_out, in_rows):
        n_in = len(in_rows)
        SY = np.zeros((bt * h_out, k * n_in), np.float32)
        for ky in range(k):
            for r, (b_, iy) in enumerate(in_rows):
                SY[b_ * h_out + s * iy + ky, ky * n_in + r] = 1.0
        return SY

    p = {}

    # ---- Layer 1: fold Linear(32->128) straight into the first ConvT ------
    Wl = np.asarray(params["Wl"], np.float32)              # (128, 32)
    bl = np.asarray(params["bl"], np.float32)              # (128,)
    W1 = np.asarray(params["W1"], np.float32)
    b1 = np.asarray(params["b1"], np.float32)
    G1, brow1, h1 = fold_conv(W1, b1, 1)                   # G1: (5, 128, 80)
    # y1[b, oy=ky, lane] = x[b] @ (Wl^T @ G1[ky]) + (bl @ G1[ky] + brow1)
    p["WG1"] = jnp.asarray(np.einsum("oi,kon->kin", Wl, G1))            # (5, 32, 80)
    p["B1"] = jnp.asarray((np.einsum("o,kon->kn", bl, G1) + brow1)[:, None, :])  # (5,1,80)

    # ---- Layers 2..4 -------------------------------------------------------
    h_in = h1                                               # 5
    # Layer-1 output rows come out ky-major: row = iy*bt + b.
    in_rows = [(r % bt, r // bt) for r in range(bt * h_in)]
    for name, _, _, k in layers[1:]:
        W = np.asarray(params["W" + name], np.float32)
        b = np.asarray(params["b" + name], np.float32)
        G, brow, h_out = fold_conv(W, b, h_in)
        p["G" + name] = jnp.asarray(G)
        p["SY" + name] = jnp.asarray(make_sy(k, h_out, in_rows))
        p["BR" + name] = jnp.asarray(brow)
        h_in = h_out
        # Layers 2..4 emit batch-major rows: row = b*h_out + oy.
        in_rows = [(r // h_in, r % h_in) for r in range(bt * h_in)]
    return p


# ---------------------------------------------------------------------------
# The fused Pallas kernel: (folded Linear + ConvT1) + 3 transposed convs,
# BATCH_TILE batch elements per grid step, everything resident in VMEM/vregs.
# ---------------------------------------------------------------------------
def decoder_kernel(x_ref, wg1_ref, b1_ref,
                   g2_ref, sy2_ref, br2_ref,
                   g3_ref, sy3_ref, br3_ref,
                   g4_ref, sy4_ref, br4_ref,
                   out_ref):
    f32 = jnp.float32
    bt, c_obs, h_img, w_img = out_ref.shape

    x = x_ref[0]                                            # (bt, 32)

    # Layer 1 (Linear folded in).  Output rows ordered (ky, b); oy == ky.
    k1 = wg1_ref.shape[0]
    parts = [jnp.dot(x, wg1_ref[ky], preferred_element_type=f32) + b1_ref[ky]
             for ky in range(k1)]
    a = jnp.maximum(jnp.concatenate(parts, axis=0), 0.0)    # (5*bt, 80)

    def conv_t(a, g_ref, sy_ref, br_ref, relu):
        k = g_ref.shape[0]
        # All kx taps + width scatter fused into one MXU matmul per ky
        # (same RHS for every packed batch element).
        taps = [jnp.dot(a, g_ref[ky], preferred_element_type=f32)
                for ky in range(k)]
        stacked = jnp.concatenate(taps, axis=0)             # (k*rows_in, n_out)
        # ONE merged height-scatter matmul per layer (constant 0/1 matrix).
        y = jnp.dot(sy_ref[...], stacked, preferred_element_type=f32) + br_ref[...]
        return jnp.maximum(y, 0.0) if relu else y

    a = conv_t(a, g2_ref, sy2_ref, br2_ref, True)           # (bt*13, 104)
    a = conv_t(a, g3_ref, sy3_ref, br3_ref, True)           # (bt*30, 120)
    y = conv_t(a, g4_ref, sy4_ref, br4_ref, False)          # (bt*64, 3*64)

    # Rows are (b, oy), lanes are (c, ox): write NCHW directly — no wrapper
    # transpose kernel needed.
    for b in range(bt):
        for c in range(c_obs):
            out_ref[b, c, :, :] = y[b * h_img:(b + 1) * h_img,
                                    c * w_img:(c + 1) * w_img].astype(out_ref.dtype)


# ---------------------------------------------------------------------------
# Decoder forward (horizontal_forward semantics)
# ---------------------------------------------------------------------------
def decoder_forward(x, prepped):
    batch_dims = x.shape[:-1]
    xf = x.reshape(-1, INPUT_SIZE)
    B = xf.shape[0]
    bt = BATCH_TILE
    pad = (-B) % bt
    if pad:
        xf = jnp.concatenate([xf, jnp.zeros((pad, INPUT_SIZE), xf.dtype)], axis=0)
    n_tiles = (B + pad) // bt
    x3 = xf.reshape(n_tiles, bt, INPUT_SIZE)
    c_obs, h_img, w_img = OBS_SHAPE

    weight_names = ["WG1", "B1",
                    "G2", "SY2", "BR2",
                    "G3", "SY3", "BR3",
                    "G4", "SY4", "BR4"]
    weight_args = [prepped[n] for n in weight_names]
    weight_specs = [pl.BlockSpec(a.shape, _const_index_map(a.ndim))
                    for a in weight_args]

    out = pl.pallas_call(
        decoder_kernel,
        out_shape=jax.ShapeDtypeStruct((n_tiles * bt, c_obs, h_img, w_img),
                                       jnp.float32),
        grid=(n_tiles,),
        in_specs=[pl.BlockSpec((1, bt, INPUT_SIZE), lambda t: (t, 0, 0))]
                 + weight_specs,
        out_specs=pl.BlockSpec((bt, c_obs, h_img, w_img),
                               lambda t: (t, 0, 0, 0)),
        compiler_params=pltpu.CompilerParams(
            dimension_semantics=("parallel",)),
    )(x3, *weight_args)

    mean = out[:B] if pad else out
    # TODO(synk): torch's Independent(Normal(mean, std=1), 3) has no Pallas
    # equivalent; the distribution is fully determined by `mean` (std == 1).
    return mean.reshape(*batch_dims, *OBS_SHAPE)


# ---------------------------------------------------------------------------
# Deterministic parameter init (PyTorch-like uniform(+-1/sqrt(fan_in)))
# ---------------------------------------------------------------------------
def init_params(key):
    depth = CONFIG.depth
    ks = jax.random.split(key, 10)

    def uniform(kk, shape, fan_in):
        lim = 1.0 / float(fan_in) ** 0.5
        return jax.random.uniform(kk, shape, jnp.float32, -lim, lim)

    p = {
        "Wl": uniform(ks[0], (depth * 32, INPUT_SIZE), INPUT_SIZE),
        "bl": uniform(ks[1], (depth * 32,), INPUT_SIZE),
    }
    i = 2
    for name, cin, cout, kk_ in _layer_defs():
        fan_in = cin * kk_ * kk_
        p["W" + name] = uniform(ks[i], (cin, cout, kk_, kk_), fan_in); i += 1
        p["b" + name] = uniform(ks[i], (cout,), fan_in); i += 1
    return p


# ---------------------------------------------------------------------------
# Plain-JAX reference (NCHW, direct scatter definition of ConvTranspose2d)
# ---------------------------------------------------------------------------
def _relu(x):
    return jnp.maximum(x, 0.0)


def _ref_conv_transpose_nchw(x, w, b, s):
    B, Cin, H, Wd = x.shape
    _, Cout, k, _ = w.shape
    Ho, Wo = (H - 1) * s + k, (Wd - 1) * s + k
    out = jnp.zeros((B, Cout, Ho, Wo), jnp.float32)
    for ky in range(k):
        for kx in range(k):
            contrib = jnp.einsum("bihw,io->bohw", x, w[:, :, ky, kx],
                                 precision=jax.lax.Precision.HIGHEST)
            out = out.at[:, :, ky:ky + (H - 1) * s + 1:s,
                         kx:kx + (Wd - 1) * s + 1:s].add(contrib)
    return out + b[None, :, None, None]


def ref_forward(x, params):
    depth, s = CONFIG.depth, CONFIG.stride
    batch_dims = x.shape[:-1]
    xf = x.reshape(-1, INPUT_SIZE)
    h = xf @ params["Wl"].T + params["bl"]
    t = h.reshape(-1, depth * 32, 1, 1)
    t = _relu(_ref_conv_transpose_nchw(t, params["W1"], params["b1"], s))
    t = _relu(_ref_conv_transpose_nchw(t, params["W2"], params["b2"], s))
    t = _relu(_ref_conv_transpose_nchw(t, params["W3"], params["b3"], s))
    t = _ref_conv_transpose_nchw(t, params["W4"], params["b4"], s)
    return t.reshape(*batch_dims, *OBS_SHAPE)


if __name__ == "__main__":
    key = jax.random.PRNGKey(0)
    pkey, xkey = jax.random.split(key)
    params = init_params(pkey)
    prepped = prepare_params(params)          # one-time weight folding
    x = jax.random.normal(xkey, (BATCH, INPUT_SIZE), jnp.float32)

    fwd = jax.jit(decoder_forward)
    mean = jax.block_until_ready(fwd(x, prepped))
    assert mean.shape == (BATCH,) + OBS_SHAPE, mean.shape

    ref = jax.block_until_ready(ref_forward(x, params))
    max_err = float(jnp.max(jnp.abs(mean - ref)))
    if not bool(jnp.allclose(mean, ref, rtol=2e-2, atol=2e-3)):
        raise AssertionError(f"Pallas decoder mismatch, max abs err = {max_err}")

    print("KERNEL_OK")
</pallas_src>

<mosaic_0001>
module attributes {stable_mosaic.version = 11 : i64} {
  func.func @decoder_kernel(%arg0: i32, %arg1: memref<1x2x32xf32, #tpu.memory_space<vmem>>, %arg2: memref<5x32x80xf32, #tpu.memory_space<vmem>>, %arg3: memref<5x1x80xf32, #tpu.memory_space<vmem>>, %arg4: memref<5x80x104xf32, #tpu.memory_space<vmem>>, %arg5: memref<26x50xf32, #tpu.memory_space<vmem>>, %arg6: memref<1x104xf32, #tpu.memory_space<vmem>>, %arg7: memref<6x104x120xf32, #tpu.memory_space<vmem>>, %arg8: memref<60x156xf32, #tpu.memory_space<vmem>>, %arg9: memref<1x120xf32, #tpu.memory_space<vmem>>, %arg10: memref<6x120x192xf32, #tpu.memory_space<vmem>>, %arg11: memref<128x360xf32, #tpu.memory_space<vmem>>, %arg12: memref<1x192xf32, #tpu.memory_space<vmem>>, %arg13: memref<2x3x64x64xf32, #tpu.memory_space<vmem>>) attributes {dimension_semantics = [#tpu.dimension_semantics<parallel>], iteration_bounds = array<i64: 1>, scalar_prefetch = 0 : i64, scratch_operands = 0 : i64, tpu.core_type = #tpu.core_type<tc>, window_params = [{transform_indices = @transform_0, window_bounds = array<i64: 1, 2, 32>}, {pipeline_mode = #tpu.pipeline_mode<synchronous>, transform_indices = @transform_1, window_bounds = array<i64: 5, 32, 80>}, {pipeline_mode = #tpu.pipeline_mode<synchronous>, transform_indices = @transform_2, window_bounds = array<i64: 5, 1, 80>}, {pipeline_mode = #tpu.pipeline_mode<synchronous>, transform_indices = @transform_3, window_bounds = array<i64: 5, 80, 104>}, {pipeline_mode = #tpu.pipeline_mode<synchronous>, transform_indices = @transform_4, window_bounds = array<i64: 26, 50>}, {pipeline_mode = #tpu.pipeline_mode<synchronous>, transform_indices = @transform_5, window_bounds = array<i64: 1, 104>}, {pipeline_mode = #tpu.pipeline_mode<synchronous>, transform_indices = @transform_6, window_bounds = array<i64: 6, 104, 120>}, {pipeline_mode = #tpu.pipeline_mode<synchronous>, transform_indices = @transform_7, window_bounds = array<i64: 60, 156>}, {pipeline_mode = #tpu.pipeline_mode<synchronous>, transform_indices = @transform_8, window_bounds = array<i64: 1, 120>}, {pipeline_mode = #tpu.pipeline_mode<synchronous>, transform_indices = @transform_9, window_bounds = array<i64: 6, 120, 192>}, {pipeline_mode = #tpu.pipeline_mode<synchronous>, transform_indices = @transform_10, window_bounds = array<i64: 128, 360>}, {pipeline_mode = #tpu.pipeline_mode<synchronous>, transform_indices = @transform_11, window_bounds = array<i64: 1, 192>}, {transform_indices = @transform_12, window_bounds = array<i64: 2, 3, 64, 64>}]} {
    %c0 = arith.constant 0 : index
    %c0_0 = arith.constant 0 : index
    %c0_1 = arith.constant 0 : index
    %0 = vector.load %arg1[%c0, %c0_0, %c0_1] : memref<1x2x32xf32, #tpu.memory_space<vmem>>, vector<1x2x32xf32>
    %1 = vector.shape_cast %0 : vector<1x2x32xf32> to vector<2x32xf32>
    %c0_2 = arith.constant 0 : index
    %c0_3 = arith.constant 0 : index
    %c0_4 = arith.constant 0 : index
    %2 = vector.load %arg2[%c0_2, %c0_3, %c0_4] : memref<5x32x80xf32, #tpu.memory_space<vmem>>, vector<1x32x80xf32>
    %3 = vector.shape_cast %2 : vector<1x32x80xf32> to vector<32x80xf32>
    %cst = arith.constant dense<0.000000e+00> : vector<2x80xf32>
    %4 = tpu.matmul %1, %3, %cst {dimension_numbers = #tpu.dot_dimension_numbers<[1], [0], [0], [1], [0, 0, 1, 1], [], []>} : vector<2x32xf32>, vector<32x80xf32>, vector<2x80xf32> -> vector<2x80xf32>
    %c0_5 = arith.constant 0 : index
    %c0_6 = arith.constant 0 : index
    %c0_7 = arith.constant 0 : index
    %5 = vector.load %arg3[%c0_5, %c0_6, %c0_7] : memref<5x1x80xf32, #tpu.memory_space<vmem>>, vector<1x1x80xf32>
    %6 = vector.shape_cast %5 : vector<1x1x80xf32> to vector<1x80xf32>
    %7 = vector.broadcast %6 : vector<1x80xf32> to vector<2x80xf32>
    %8 = arith.addf %4, %7 : vector<2x80xf32>
    %c1 = arith.constant 1 : index
    %c0_8 = arith.constant 0 : index
    %c0_9 = arith.constant 0 : index
    %9 = vector.load %arg2[%c1, %c0_8, %c0_9] : memref<5x32x80xf32, #tpu.memory_space<vmem>>, vector<1x32x80xf32>
    %10 = vector.shape_cast %9 : vector<1x32x80xf32> to vector<32x80xf32>
    %cst_10 = arith.constant dense<0.000000e+00> : vector<2x80xf32>
    %11 = tpu.matmul %1, %10, %cst_10 {dimension_numbers = #tpu.dot_dimension_numbers<[1], [0], [0], [1], [0, 0, 1, 1], [], []>} : vector<2x32xf32>, vector<32x80xf32>, vector<2x80xf32> -> vector<2x80xf32>
    %c1_11 = arith.constant 1 : index
    %c0_12 = arith.constant 0 : index
    %c0_13 = arith.constant 0 : index
    %12 = vector.load %arg3[%c1_11, %c0_12, %c0_13] : memref<5x1x80xf32, #tpu.memory_space<vmem>>, vector<1x1x80xf32>
    %13 = vector.shape_cast %12 : vector<1x1x80xf32> to vector<1x80xf32>
    %14 = vector.broadcast %13 : vector<1x80xf32> to vector<2x80xf32>
    %15 = arith.addf %11, %14 : vector<2x80xf32>
    %c2 = arith.constant 2 : index
    %c0_14 = arith.constant 0 : index
    %c0_15 = arith.constant 0 : index
    %16 = vector.load %arg2[%c2, %c0_14, %c0_15] : memref<5x32x80xf32, #tpu.memory_space<vmem>>, vector<1x32x80xf32>
    %17 = vector.shape_cast %16 : vector<1x32x80xf32> to vector<32x80xf32>
    %cst_16 = arith.constant dense<0.000000e+00> : vector<2x80xf32>
    %18 = tpu.matmul %1, %17, %cst_16 {dimension_numbers = #tpu.dot_dimension_numbers<[1], [0], [0], [1], [0, 0, 1, 1], [], []>} : vector<2x32xf32>, vector<32x80xf32>, vector<2x80xf32> -> vector<2x80xf32>
    %c2_17 = arith.constant 2 : index
    %c0_18 = arith.constant 0 : index
    %c0_19 = arith.constant 0 : index
    %19 = vector.load %arg3[%c2_17, %c0_18, %c0_19] : memref<5x1x80xf32, #tpu.memory_space<vmem>>, vector<1x1x80xf32>
    %20 = vector.shape_cast %19 : vector<1x1x80xf32> to vector<1x80xf32>
    %21 = vector.broadcast %20 : vector<1x80xf32> to vector<2x80xf32>
    %22 = arith.addf %18, %21 : vector<2x80xf32>
    %c3 = arith.constant 3 : index
    %c0_20 = arith.constant 0 : index
    %c0_21 = arith.constant 0 : index
    %23 = vector.load %arg2[%c3, %c0_20, %c0_21] : memref<5x32x80xf32, #tpu.memory_space<vmem>>, vector<1x32x80xf32>
    %24 = vector.shape_cast %23 : vector<1x32x80xf32> to vector<32x80xf32>
    %cst_22 = arith.constant dense<0.000000e+00> : vector<2x80xf32>
    %25 = tpu.matmul %1, %24, %cst_22 {dimension_numbers = #tpu.dot_dimension_numbers<[1], [0], [0], [1], [0, 0, 1, 1], [], []>} : vector<2x32xf32>, vector<32x80xf32>, vector<2x80xf32> -> vector<2x80xf32>
    %c3_23 = arith.constant 3 : index
    %c0_24 = arith.constant 0 : index
    %c0_25 = arith.constant 0 : index
    %26 = vector.load %arg3[%c3_23, %c0_24, %c0_25] : memref<5x1x80xf32, #tpu.memory_space<vmem>>, vector<1x1x80xf32>
    %27 = vector.shape_cast %26 : vector<1x1x80xf32> to vector<1x80xf32>
    %28 = vector.broadcast %27 : vector<1x80xf32> to vector<2x80xf32>
    %29 = arith.addf %25, %28 : vector<2x80xf32>
    %c4 = arith.constant 4 : index
    %c0_26 = arith.constant 0 : index
    %c0_27 = arith.constant 0 : index
    %30 = vector.load %arg2[%c4, %c0_26, %c0_27] : memref<5x32x80xf32, #tpu.memory_space<vmem>>, vector<1x32x80xf32>
    %31 = vector.shape_cast %30 : vector<1x32x80xf32> to vector<32x80xf32>
    %cst_28 = arith.constant dense<0.000000e+00> : vector<2x80xf32>
    %32 = tpu.matmul %1, %31, %cst_28 {dimension_numbers = #tpu.dot_dimension_numbers<[1], [0], [0], [1], [0, 0, 1, 1], [], []>} : vector<2x32xf32>, vector<32x80xf32>, vector<2x80xf32> -> vector<2x80xf32>
    %c4_29 = arith.constant 4 : index
    %c0_30 = arith.constant 0 : index
    %c0_31 = arith.constant 0 : index
    %33 = vector.load %arg3[%c4_29, %c0_30, %c0_31] : memref<5x1x80xf32, #tpu.memory_space<vmem>>, vector<1x1x80xf32>
    %34 = vector.shape_cast %33 : vector<1x1x80xf32> to vector<1x80xf32>
    %35 = vector.broadcast %34 : vector<1x80xf32> to vector<2x80xf32>
    %36 = arith.addf %32, %35 : vector<2x80xf32>
    %37 = tpu.concatenate %8, %15, %22, %29, %36 in 0 : vector<2x80xf32>, vector<2x80xf32>, vector<2x80xf32>, vector<2x80xf32>, vector<2x80xf32> -> vector<10x80xf32>
    %cst_32 = arith.constant 0.000000e+00 : f32
    %38 = vector.broadcast %cst_32 : f32 to vector<10x80xf32>
    %39 = arith.maximumf %37, %38 : vector<10x80xf32>
    %c0_33 = arith.constant 0 : index
    %c0_34 = arith.constant 0 : index
    %c0_35 = arith.constant 0 : index
    %40 = vector.load %arg4[%c0_33, %c0_34, %c0_35] : memref<5x80x104xf32, #tpu.memory_space<vmem>>, vector<1x80x104xf32>
    %41 = vector.shape_cast %40 : vector<1x80x104xf32> to vector<80x104xf32>
    %cst_36 = arith.constant dense<0.000000e+00> : vector<10x104xf32>
    %42 = tpu.matmul %39, %41, %cst_36 {dimension_numbers = #tpu.dot_dimension_numbers<[1], [0], [0], [1], [0, 0, 1, 1], [], []>} : vector<10x80xf32>, vector<80x104xf32>, vector<10x104xf32> -> vector<10x104xf32>
    %c1_37 = arith.constant 1 : index
    %c0_38 = arith.constant 0 : index
    %c0_39 = arith.constant 0 : index
    %43 = vector.load %arg4[%c1_37, %c0_38, %c0_39] : memref<5x80x104xf32, #tpu.memory_space<vmem>>, vector<1x80x104xf32>
    %44 = vector.shape_cast %43 : vector<1x80x104xf32> to vector<80x104xf32>
    %cst_40 = arith.constant dense<0.000000e+00> : vector<10x104xf32>
    %45 = tpu.matmul %39, %44, %cst_40 {dimension_numbers = #tpu.dot_dimension_numbers<[1], [0], [0], [1], [0, 0, 1, 1], [], []>} : vector<10x80xf32>, vector<80x104xf32>, vector<10x104xf32> -> vector<10x104xf32>
    %c2_41 = arith.constant 2 : index
    %c0_42 = arith.constant 0 : index
    %c0_43 = arith.constant 0 : index
    %46 = vector.load %arg4[%c2_41, %c0_42, %c0_43] : memref<5x80x104xf32, #tpu.memory_space<vmem>>, vector<1x80x104xf32>
    %47 = vector.shape_cast %46 : vector<1x80x104xf32> to vector<80x104xf32>
    %cst_44 = arith.constant dense<0.000000e+00> : vector<10x104xf32>
    %48 = tpu.matmul %39, %47, %cst_44 {dimension_numbers = #tpu.dot_dimension_numbers<[1], [0], [0], [1], [0, 0, 1, 1], [], []>} : vector<10x80xf32>, vector<80x104xf32>, vector<10x104xf32> -> vector<10x104xf32>
    %c3_45 = arith.constant 3 : index
    %c0_46 = arith.constant 0 : index
    %c0_47 = arith.constant 0 : index
    %49 = vector.load %arg4[%c3_45, %c0_46, %c0_47] : memref<5x80x104xf32, #tpu.memory_space<vmem>>, vector<1x80x104xf32>
    %50 = vector.shape_cast %49 : vector<1x80x104xf32> to vector<80x104xf32>
    %cst_48 = arith.constant dense<0.000000e+00> : vector<10x104xf32>
    %51 = tpu.matmul %39, %50, %cst_48 {dimension_numbers = #tpu.dot_dimension_numbers<[1], [0], [0], [1], [0, 0, 1, 1], [], []>} : vector<10x80xf32>, vector<80x104xf32>, vector<10x104xf32> -> vector<10x104xf32>
    %c4_49 = arith.constant 4 : index
    %c0_50 = arith.constant 0 : index
    %c0_51 = arith.constant 0 : index
    %52 = vector.load %arg4[%c4_49, %c0_50, %c0_51] : memref<5x80x104xf32, #tpu.memory_space<vmem>>, vector<1x80x104xf32>
    %53 = vector.shape_cast %52 : vector<1x80x104xf32> to vector<80x104xf32>
    %cst_52 = arith.constant dense<0.000000e+00> : vector<10x104xf32>
    %54 = tpu.matmul %39, %53, %cst_52 {dimension_numbers = #tpu.dot_dimension_numbers<[1], [0], [0], [1], [0, 0, 1, 1], [], []>} : vector<10x80xf32>, vector<80x104xf32>, vector<10x104xf32> -> vector<10x104xf32>
    %55 = tpu.concatenate %42, %45, %48, %51, %54 in 0 : vector<10x104xf32>, vector<10x104xf32>, vector<10x104xf32>, vector<10x104xf32>, vector<10x104xf32> -> vector<50x104xf32>
    %c0_53 = arith.constant 0 : index
    %c0_54 = arith.constant 0 : index
    %56 = vector.load %arg5[%c0_53, %c0_54] : memref<26x50xf32, #tpu.memory_space<vmem>>, vector<26x50xf32>
    %cst_55 = arith.constant dense<0.000000e+00> : vector<26x104xf32>
    %57 = tpu.matmul %56, %55, %cst_55 {dimension_numbers = #tpu.dot_dimension_numbers<[1], [0], [0], [1], [0, 0, 1, 1], [], []>} : vector<26x50xf32>, vector<50x104xf32>, vector<26x104xf32> -> vector<26x104xf32>
    %c0_56 = arith.constant 0 : index
    %c0_57 = arith.constant 0 : index
    %58 = vector.load %arg6[%c0_56, %c0_57] : memref<1x104xf32, #tpu.memory_space<vmem>>, vector<1x104xf32>
    %59 = vector.broadcast %58 : vector<1x104xf32> to vector<26x104xf32>
    %60 = arith.addf %57, %59 : vector<26x104xf32>
    %cst_58 = arith.constant 0.000000e+00 : f32
    %61 = vector.broadcast %cst_58 : f32 to vector<26x104xf32>
    %62 = arith.maximumf %60, %61 : vector<26x104xf32>
    %c0_59 = arith.constant 0 : index
    %c0_60 = arith.constant 0 : index
    %c0_61 = arith.constant 0 : index
    %63 = vector.load %arg7[%c0_59, %c0_60, %c0_61] : memref<6x104x120xf32, #tpu.memory_space<vmem>>, vector<1x104x120xf32>
    %64 = vector.shape_cast %63 : vector<1x104x120xf32> to vector<104x120xf32>
    %cst_62 = arith.constant dense<0.000000e+00> : vector<26x120xf32>
    %65 = tpu.matmul %62, %64, %cst_62 {dimension_numbers = #tpu.dot_dimension_numbers<[1], [0], [0], [1], [0, 0, 1, 1], [], []>} : vector<26x104xf32>, vector<104x120xf32>, vector<26x120xf32> -> vector<26x120xf32>
    %c1_63 = arith.constant 1 : index
    %c0_64 = arith.constant 0 : index
    %c0_65 = arith.constant 0 : index
    %66 = vector.load %arg7[%c1_63, %c0_64, %c0_65] : memref<6x104x120xf32, #tpu.memory_space<vmem>>, vector<1x104x120xf32>
    %67 = vector.shape_cast %66 : vector<1x104x120xf32> to vector<104x120xf32>
    %cst_66 = arith.constant dense<0.000000e+00> : vector<26x120xf32>
    %68 = tpu.matmul %62, %67, %cst_66 {dimension_numbers = #tpu.dot_dimension_numbers<[1], [0], [0], [1], [0, 0, 1, 1], [], []>} : vector<26x104xf32>, vector<104x120xf32>, vector<26x120xf32> -> vector<26x120xf32>
    %c2_67 = arith.constant 2 : index
    %c0_68 = arith.constant 0 : index
    %c0_69 = arith.constant 0 : index
    %69 = vector.load %arg7[%c2_67, %c0_68, %c0_69] : memref<6x104x120xf32, #tpu.memory_space<vmem>>, vector<1x104x120xf32>
    %70 = vector.shape_cast %69 : vector<1x104x120xf32> to vector<104x120xf32>
    %cst_70 = arith.constant dense<0.000000e+00> : vector<26x120xf32>
    %71 = tpu.matmul %62, %70, %cst_70 {dimension_numbers = #tpu.dot_dimension_numbers<[1], [0], [0], [1], [0, 0, 1, 1], [], []>} : vector<26x104xf32>, vector<104x120xf32>, vector<26x120xf32> -> vector<26x120xf32>
    %c3_71 = arith.constant 3 : index
    %c0_72 = arith.constant 0 : index
    %c0_73 = arith.constant 0 : index
    %72 = vector.load %arg7[%c3_71, %c0_72, %c0_73] : memref<6x104x120xf32, #tpu.memory_space<vmem>>, vector<1x104x120xf32>
    %73 = vector.shape_cast %72 : vector<1x104x120xf32> to vector<104x120xf32>
    %cst_74 = arith.constant dense<0.000000e+00> : vector<26x120xf32>
    %74 = tpu.matmul %62, %73, %cst_74 {dimension_numbers = #tpu.dot_dimension_numbers<[1], [0], [0], [1], [0, 0, 1, 1], [], []>} : vector<26x104xf32>, vector<104x120xf32>, vector<26x120xf32> -> vector<26x120xf32>
    %c4_75 = arith.constant 4 : index
    %c0_76 = arith.constant 0 : index
    %c0_77 = arith.constant 0 : index
    %75 = vector.load %arg7[%c4_75, %c0_76, %c0_77] : memref<6x104x120xf32, #tpu.memory_space<vmem>>, vector<1x104x120xf32>
    %76 = vector.shape_cast %75 : vector<1x104x120xf32> to vector<104x120xf32>
    %cst_78 = arith.constant dense<0.000000e+00> : vector<26x120xf32>
    %77 = tpu.matmul %62, %76, %cst_78 {dimension_numbers = #tpu.dot_dimension_numbers<[1], [0], [0], [1], [0, 0, 1, 1], [], []>} : vector<26x104xf32>, vector<104x120xf32>, vector<26x120xf32> -> vector<26x120xf32>
    %c5 = arith.constant 5 : index
    %c0_79 = arith.constant 0 : index
    %c0_80 = arith.constant 0 : index
    %78 = vector.load %arg7[%c5, %c0_79, %c0_80] : memref<6x104x120xf32, #tpu.memory_space<vmem>>, vector<1x104x120xf32>
    %79 = vector.shape_cast %78 : vector<1x104x120xf32> to vector<104x120xf32>
    %cst_81 = arith.constant dense<0.000000e+00> : vector<26x120xf32>
    %80 = tpu.matmul %62, %79, %cst_81 {dimension_numbers = #tpu.dot_dimension_numbers<[1], [0], [0], [1], [0, 0, 1, 1], [], []>} : vector<26x104xf32>, vector<104x120xf32>, vector<26x120xf32> -> vector<26x120xf32>
    %81 = tpu.concatenate %65, %68, %71, %74, %77, %80 in 0 : vector<26x120xf32>, vector<26x120xf32>, vector<26x120xf32>, vector<26x120xf32>, vector<26x120xf32>, vector<26x120xf32> -> vector<156x120xf32>
    %c0_82 = arith.constant 0 : index
    %c0_83 = arith.constant 0 : index
    %82 = vector.load %arg8[%c0_82, %c0_83] : memref<60x156xf32, #tpu.memory_space<vmem>>, vector<60x156xf32>
    %cst_84 = arith.constant dense<0.000000e+00> : vector<60x120xf32>
    %83 = tpu.matmul %82, %81, %cst_84 {dimension_numbers = #tpu.dot_dimension_numbers<[1], [0], [0], [1], [0, 0, 1, 1], [], []>} : vector<60x156xf32>, vector<156x120xf32>, vector<60x120xf32> -> vector<60x120xf32>
    %c0_85 = arith.constant 0 : index
    %c0_86 = arith.constant 0 : index
    %84 = vector.load %arg9[%c0_85, %c0_86] : memref<1x120xf32, #tpu.memory_space<vmem>>, vector<1x120xf32>
    %85 = vector.broadcast %84 : vector<1x120xf32> to vector<60x120xf32>
    %86 = arith.addf %83, %85 : vector<60x120xf32>
    %cst_87 = arith.constant 0.000000e+00 : f32
    %87 = vector.broadcast %cst_87 : f32 to vector<60x120xf32>
    %88 = arith.maximumf %86, %87 : vector<60x120xf32>
    %c0_88 = arith.constant 0 : index
    %c0_89 = arith.constant 0 : index
    %c0_90 = arith.constant 0 : index
    %89 = vector.load %arg10[%c0_88, %c0_89, %c0_90] : memref<6x120x192xf32, #tpu.memory_space<vmem>>, vector<1x120x192xf32>
    %90 = vector.shape_cast %89 : vector<1x120x192xf32> to vector<120x192xf32>
    %cst_91 = arith.constant dense<0.000000e+00> : vector<60x192xf32>
    %91 = tpu.matmul %88, %90, %cst_91 {dimension_numbers = #tpu.dot_dimension_numbers<[1], [0], [0], [1], [0, 0, 1, 1], [], []>} : vector<60x120xf32>, vector<120x192xf32>, vector<60x192xf32> -> vector<60x192xf32>
    %c1_92 = arith.constant 1 : index
    %c0_93 = arith.constant 0 : index
    %c0_94 = arith.constant 0 : index
    %92 = vector.load %arg10[%c1_92, %c0_93, %c0_94] : memref<6x120x192xf32, #tpu.memory_space<vmem>>, vector<1x120x192xf32>
    %93 = vector.shape_cast %92 : vector<1x120x192xf32> to vector<120x192xf32>
    %cst_95 = arith.constant dense<0.000000e+00> : vector<60x192xf32>
    %94 = tpu.matmul %88, %93, %cst_95 {dimension_numbers = #tpu.dot_dimension_numbers<[1], [0], [0], [1], [0, 0, 1, 1], [], []>} : vector<60x120xf32>, vector<120x192xf32>, vector<60x192xf32> -> vector<60x192xf32>
    %c2_96 = arith.constant 2 : index
    %c0_97 = arith.constant 0 : index
    %c0_98 = arith.constant 0 : index
    %95 = vector.load %arg10[%c2_96, %c0_97, %c0_98] : memref<6x120x192xf32, #tpu.memory_space<vmem>>, vector<1x120x192xf32>
    %96 = vector.shape_cast %95 : vector<1x120x192xf32> to vector<120x192xf32>
    %cst_99 = arith.constant dense<0.000000e+00> : vector<60x192xf32>
    %97 = tpu.matmul %88, %96, %cst_99 {dimension_numbers = #tpu.dot_dimension_numbers<[1], [0], [0], [1], [0, 0, 1, 1], [], []>} : vector<60x120xf32>, vector<120x192xf32>, vector<60x192xf32> -> vector<60x192xf32>
    %c3_100 = arith.constant 3 : index
    %c0_101 = arith.constant 0 : index
    %c0_102 = arith.constant 0 : index
    %98 = vector.load %arg10[%c3_100, %c0_101, %c0_102] : memref<6x120x192xf32, #tpu.memory_space<vmem>>, vector<1x120x192xf32>
    %99 = vector.shape_cast %98 : vector<1x120x192xf32> to vector<120x192xf32>
    %cst_103 = arith.constant dense<0.000000e+00> : vector<60x192xf32>
    %100 = tpu.matmul %88, %99, %cst_103 {dimension_numbers = #tpu.dot_dimension_numbers<[1], [0], [0], [1], [0, 0, 1, 1], [], []>} : vector<60x120xf32>, vector<120x192xf32>, vector<60x192xf32> -> vector<60x192xf32>
    %c4_104 = arith.constant 4 : index
    %c0_105 = arith.constant 0 : index
    %c0_106 = arith.constant 0 : index
    %101 = vector.load %arg10[%c4_104, %c0_105, %c0_106] : memref<6x120x192xf32, #tpu.memory_space<vmem>>, vector<1x120x192xf32>
    %102 = vector.shape_cast %101 : vector<1x120x192xf32> to vector<120x192xf32>
    %cst_107 = arith.constant dense<0.000000e+00> : vector<60x192xf32>
    %103 = tpu.matmul %88, %102, %cst_107 {dimension_numbers = #tpu.dot_dimension_numbers<[1], [0], [0], [1], [0, 0, 1, 1], [], []>} : vector<60x120xf32>, vector<120x192xf32>, vector<60x192xf32> -> vector<60x192xf32>
    %c5_108 = arith.constant 5 : index
    %c0_109 = arith.constant 0 : index
    %c0_110 = arith.constant 0 : index
    %104 = vector.load %arg10[%c5_108, %c0_109, %c0_110] : memref<6x120x192xf32, #tpu.memory_space<vmem>>, vector<1x120x192xf32>
    %105 = vector.shape_cast %104 : vector<1x120x192xf32> to vector<120x192xf32>
    %cst_111 = arith.constant dense<0.000000e+00> : vector<60x192xf32>
    %106 = tpu.matmul %88, %105, %cst_111 {dimension_numbers = #tpu.dot_dimension_numbers<[1], [0], [0], [1], [0, 0, 1, 1], [], []>} : vector<60x120xf32>, vector<120x192xf32>, vector<60x192xf32> -> vector<60x192xf32>
    %107 = tpu.concatenate %91, %94, %97, %100, %103, %106 in 0 : vector<60x192xf32>, vector<60x192xf32>, vector<60x192xf32>, vector<60x192xf32>, vector<60x192xf32>, vector<60x192xf32> -> vector<360x192xf32>
    %c0_112 = arith.constant 0 : index
    %c0_113 = arith.constant 0 : index
    %108 = vector.load %arg11[%c0_112, %c0_113] : memref<128x360xf32, #tpu.memory_space<vmem>>, vector<128x360xf32>
    %cst_114 = arith.constant dense<0.000000e+00> : vector<128x192xf32>
    %109 = tpu.matmul %108, %107, %cst_114 {dimension_numbers = #tpu.dot_dimension_numbers<[1], [0], [0], [1], [0, 0, 1, 1], [], []>} : vector<128x360xf32>, vector<360x192xf32>, vector<128x192xf32> -> vector<128x192xf32>
    %c0_115 = arith.constant 0 : index
    %c0_116 = arith.constant 0 : index
    %110 = vector.load %arg12[%c0_115, %c0_116] : memref<1x192xf32, #tpu.memory_space<vmem>>, vector<1x192xf32>
    %111 = vector.broadcast %110 : vector<1x192xf32> to vector<128x192xf32>
    %112 = arith.addf %109, %111 : vector<128x192xf32>
    %113 = vector.extract_strided_slice %112 {offsets = [0, 0], sizes = [64, 64], strides = [1, 1]} : vector<128x192xf32> to vector<64x64xf32>
    %c0_117 = arith.constant 0 : index
    %c0_118 = arith.constant 0 : index
    %c0_119 = arith.constant 0 : index
    %c0_120 = arith.constant 0 : index
    %114 = vector.load %arg13[%c0_117, %c0_118, %c0_119, %c0_120] : memref<2x3x64x64xf32, #tpu.memory_space<vmem>>, vector<1x1x64x64xf32>
    %115 = vector.shape_cast %114 : vector<1x1x64x64xf32> to vector<64x64xf32>
    %116 = vector.shape_cast %113 : vector<64x64xf32> to vector<1x1x64x64xf32>
    tpu.vector_store %arg13[%c0_117, %c0_118, %c0_119, %c0_120], %116 {strides = array<i32>} : memref<2x3x64x64xf32, #tpu.memory_space<vmem>>, vector<1x1x64x64xf32>,
    %117 = vector.extract_strided_slice %112 {offsets = [0, 64], sizes = [64, 64], strides = [1, 1]} : vector<128x192xf32> to vector<64x64xf32>
    %c0_121 = arith.constant 0 : index
    %c1_122 = arith.constant 1 : index
    %c0_123 = arith.constant 0 : index
    %c0_124 = arith.constant 0 : index
    %118 = vector.load %arg13[%c0_121, %c1_122, %c0_123, %c0_124] : memref<2x3x64x64xf32, #tpu.memory_space<vmem>>, vector<1x1x64x64xf32>
    %119 = vector.shape_cast %118 : vector<1x1x64x64xf32> to vector<64x64xf32>
    %120 = vector.shape_cast %117 : vector<64x64xf32> to vector<1x1x64x64xf32>
    tpu.vector_store %arg13[%c0_121, %c1_122, %c0_123, %c0_124], %120 {strides = array<i32>} : memref<2x3x64x64xf32, #tpu.memory_space<vmem>>, vector<1x1x64x64xf32>,
    %121 = vector.extract_strided_slice %112 {offsets = [0, 128], sizes = [64, 64], strides = [1, 1]} : vector<128x192xf32> to vector<64x64xf32>
    %c0_125 = arith.constant 0 : index
    %c2_126 = arith.constant 2 : index
    %c0_127 = arith.constant 0 : index
    %c0_128 = arith.constant 0 : index
    %122 = vector.load %arg13[%c0_125, %c2_126, %c0_127, %c0_128] : memref<2x3x64x64xf32, #tpu.memory_space<vmem>>, vector<1x1x64x64xf32>
    %123 = vector.shape_cast %122 : vector<1x1x64x64xf32> to vector<64x64xf32>
    %124 = vector.shape_cast %121 : vector<64x64xf32> to vector<1x1x64x64xf32>
    tpu.vector_store %arg13[%c0_125, %c2_126, %c0_127, %c0_128], %124 {strides = array<i32>} : memref<2x3x64x64xf32, #tpu.memory_space<vmem>>, vector<1x1x64x64xf32>,
    %125 = vector.extract_strided_slice %112 {offsets = [64, 0], sizes = [64, 64], strides = [1, 1]} : vector<128x192xf32> to vector<64x64xf32>
    %c1_129 = arith.constant 1 : index
    %c0_130 = arith.constant 0 : index
    %c0_131 = arith.constant 0 : index
    %c0_132 = arith.constant 0 : index
    %126 = vector.load %arg13[%c1_129, %c0_130, %c0_131, %c0_132] : memref<2x3x64x64xf32, #tpu.memory_space<vmem>>, vector<1x1x64x64xf32>
    %127 = vector.shape_cast %126 : vector<1x1x64x64xf32> to vector<64x64xf32>
    %128 = vector.shape_cast %125 : vector<64x64xf32> to vector<1x1x64x64xf32>
    tpu.vector_store %arg13[%c1_129, %c0_130, %c0_131, %c0_132], %128 {strides = array<i32>} : memref<2x3x64x64xf32, #tpu.memory_space<vmem>>, vector<1x1x64x64xf32>,
    %129 = vector.extract_strided_slice %112 {offsets = [64, 64], sizes = [64, 64], strides = [1, 1]} : vector<128x192xf32> to vector<64x64xf32>
    %c1_133 = arith.constant 1 : index
    %c1_134 = arith.constant 1 : index
    %c0_135 = arith.constant 0 : index
    %c0_136 = arith.constant 0 : index
    %130 = vector.load %arg13[%c1_133, %c1_134, %c0_135, %c0_136] : memref<2x3x64x64xf32, #tpu.memory_space<vmem>>, vector<1x1x64x64xf32>
    %131 = vector.shape_cast %130 : vector<1x1x64x64xf32> to vector<64x64xf32>
    %132 = vector.shape_cast %129 : vector<64x64xf32> to vector<1x1x64x64xf32>
    tpu.vector_store %arg13[%c1_133, %c1_134, %c0_135, %c0_136], %132 {strides = array<i32>} : memref<2x3x64x64xf32, #tpu.memory_space<vmem>>, vector<1x1x64x64xf32>,
    %133 = vector.extract_strided_slice %112 {offsets = [64, 128], sizes = [64, 64], strides = [1, 1]} : vector<128x192xf32> to vector<64x64xf32>
    %c1_137 = arith.constant 1 : index
    %c2_138 = arith.constant 2 : index
    %c0_139 = arith.constant 0 : index
    %c0_140 = arith.constant 0 : index
    %134 = vector.load %arg13[%c1_137, %c2_138, %c0_139, %c0_140] : memref<2x3x64x64xf32, #tpu.memory_space<vmem>>, vector<1x1x64x64xf32>
    %135 = vector.shape_cast %134 : vector<1x1x64x64xf32> to vector<64x64xf32>
    %136 = vector.shape_cast %133 : vector<64x64xf32> to vector<1x1x64x64xf32>
    tpu.vector_store %arg13[%c1_137, %c2_138, %c0_139, %c0_140], %136 {strides = array<i32>} : memref<2x3x64x64xf32, #tpu.memory_space<vmem>>, vector<1x1x64x64xf32>,
    return
  }
  func.func @transform_0(%arg0: i32) -> (i32, i32, i32) {
    %c0_i32 = arith.constant 0 : i32
    %c0_i32_0 = arith.constant 0 : i32
    %c0_i32_1 = arith.constant 0 : i32
    return %arg0, %c0_i32, %c0_i32_0 : i32, i32, i32
  }
  func.func @transform_1(%arg0: i32) -> (i32, i32, i32) {
    %c0_i32 = arith.constant 0 : i32
    %c0_i32_0 = arith.constant 0 : i32
    %c0_i32_1 = arith.constant 0 : i32
    %c0_i32_2 = arith.constant 0 : i32
    return %c0_i32, %c0_i32_0, %c0_i32_1 : i32, i32, i32
  }
  func.func @transform_2(%arg0: i32) -> (i32, i32, i32) {
    %c0_i32 = arith.constant 0 : i32
    %c0_i32_0 = arith.constant 0 : i32
    %c0_i32_1 = arith.constant 0 : i32
    %c0_i32_2 = arith.constant 0 : i32
    return %c0_i32, %c0_i32_0, %c0_i32_1 : i32, i32, i32
  }
  func.func @transform_3(%arg0: i32) -> (i32, i32, i32) {
    %c0_i32 = arith.constant 0 : i32
    %c0_i32_0 = arith.constant 0 : i32
    %c0_i32_1 = arith.constant 0 : i32
    %c0_i32_2 = arith.constant 0 : i32
    return %c0_i32, %c0_i32_0, %c0_i32_1 : i32, i32, i32
  }
  func.func @transform_4(%arg0: i32) -> (i32, i32) {
    %c0_i32 = arith.constant 0 : i32
    %c0_i32_0 = arith.constant 0 : i32
    %c0_i32_1 = arith.constant 0 : i32
    return %c0_i32, %c0_i32_0 : i32, i32
  }
  func.func @transform_5(%arg0: i32) -> (i32, i32) {
    %c0_i32 = arith.constant 0 : i32
    %c0_i32_0 = arith.constant 0 : i32
    %c0_i32_1 = arith.constant 0 : i32
    return %c0_i32, %c0_i32_0 : i32, i32
  }
  func.func @transform_6(%arg0: i32) -> (i32, i32, i32) {
    %c0_i32 = arith.constant 0 : i32
    %c0_i32_0 = arith.constant 0 : i32
    %c0_i32_1 = arith.constant 0 : i32
    %c0_i32_2 = arith.constant 0 : i32
    return %c0_i32, %c0_i32_0, %c0_i32_1 : i32, i32, i32
  }
  func.func @transform_7(%arg0: i32) -> (i32, i32) {
    %c0_i32 = arith.constant 0 : i32
    %c0_i32_0 = arith.constant 0 : i32
    %c0_i32_1 = arith.constant 0 : i32
    return %c0_i32, %c0_i32_0 : i32, i32
  }
  func.func @transform_8(%arg0: i32) -> (i32, i32) {
    %c0_i32 = arith.constant 0 : i32
    %c0_i32_0 = arith.constant 0 : i32
    %c0_i32_1 = arith.constant 0 : i32
    return %c0_i32, %c0_i32_0 : i32, i32
  }
  func.func @transform_9(%arg0: i32) -> (i32, i32, i32) {
    %c0_i32 = arith.constant 0 : i32
    %c0_i32_0 = arith.constant 0 : i32
    %c0_i32_1 = arith.constant 0 : i32
    %c0_i32_2 = arith.constant 0 : i32
    return %c0_i32, %c0_i32_0, %c0_i32_1 : i32, i32, i32
  }
  func.func @transform_10(%arg0: i32) -> (i32, i32) {
    %c0_i32 = arith.constant 0 : i32
    %c0_i32_0 = arith.constant 0 : i32
    %c0_i32_1 = arith.constant 0 : i32
    return %c0_i32, %c0_i32_0 : i32, i32
  }
  func.func @transform_11(%arg0: i32) -> (i32, i32) {
    %c0_i32 = arith.constant 0 : i32
    %c0_i32_0 = arith.constant 0 : i32
    %c0_i32_1 = arith.constant 0 : i32
    return %c0_i32, %c0_i32_0 : i32, i32
  }
  func.func @transform_12(%arg0: i32) -> (i32, i32, i32, i32) {
    %c0_i32 = arith.constant 0 : i32
    %c0_i32_0 = arith.constant 0 : i32
    %c0_i32_1 = arith.constant 0 : i32
    %c0_i32_2 = arith.constant 0 : i32
    return %arg0, %c0_i32, %c0_i32_0, %c0_i32_1 : i32, i32, i32, i32
  }
}

</mosaic_0001>

<llo_original>
// kernel: decoder_forward.1
$region0: #{decoder_forward.1}
  #allocation0 [shape = 'u32[]', space=smem, size = 0x4, offset = 0x4, fixed_abs, tag = 'smem constant byte address 0x4 - core index']
  #allocation1 [shape = 'u32[144,128]{1,0:T(1,128)}', space=vmem, size = 0x12000, scoped, tag = 'internal scratch']
  %s0 = inlined_call_operand.vmem [shape: f32[1,2,32], index: 0, kind: input, shape index: {}]
  %s1 = inlined_call_operand.vmem [shape: f32[5,32,80], index: 1, kind: input, shape index: {}]
  %s2 = inlined_call_operand.vmem [shape: f32[5,1,80], index: 2, kind: input, shape index: {}]
  %s3 = inlined_call_operand.vmem [shape: f32[5,80,104], index: 3, kind: input, shape index: {}]
  %s4 = inlined_call_operand.vmem [shape: f32[26,50], index: 4, kind: input, shape index: {}]
  %s5 = inlined_call_operand.vmem [shape: f32[1,104], index: 5, kind: input, shape index: {}]
  %s6 = inlined_call_operand.vmem [shape: f32[6,104,120], index: 6, kind: input, shape index: {}]
  %s7 = inlined_call_operand.vmem [shape: f32[60,156], index: 7, kind: input, shape index: {}]
  %s8 = inlined_call_operand.vmem [shape: f32[1,120], index: 8, kind: input, shape index: {}]
  %s9 = inlined_call_operand.vmem [shape: f32[6,120,192], index: 9, kind: input, shape index: {}]
  %s10 = inlined_call_operand.vmem [shape: f32[128,360], index: 10, kind: input, shape index: {}]
  %s11 = inlined_call_operand.vmem [shape: f32[1,192], index: 11, kind: input, shape index: {}]
  %s12 = inlined_call_operand.hbm [shape: f32[2,3,64,64], index: 12, kind: output, shape index: {}]
  %s13 = sld [smem:[#allocation0]]
  $region58: #{decoder_forward.1} parent=0
    _
  %s15 = ssub.s32 1, %s13
  %s16 = scalar_select 0, %s15, %s13
  $region1: #{decoder_forward.1} parent=0
    #allocation2 [shape = 'u8[196608]{0}', space=vmem, size = 0x30000, scoped, tag = 'output window, operand 0, single buffered']
    #allocation3 [shape = 's32[1]{0}', space=sflag, size = 0x4, scoped, tag = 'scoped memory for decoder_forward.1']
    %17 = vsyncpa [#allocation3], 0
    // Predicated region
    $region2: #{decoder_forward.1} parent=1 // pred_check
      _
    $region3: #{decoder_forward.1} parent=1 // pred_check_branch
      %19 = sbr.rel (0) target = $region5
    $region4: #{decoder_forward.1} parent=1 // pred_region
      _
    $region5: #{decoder_forward.1} parent=1 // pred_fallthru
      _
    // Predicated region
    $region6: #{decoder_forward.1} parent=1 // pred_check
      _
    $region7: #{decoder_forward.1} parent=1 // pred_check_branch
      %21 = sbr.rel (0) target = $region9
    $region8: #{decoder_forward.1} parent=1 // pred_region
      _
    $region9: #{decoder_forward.1} parent=1 // pred_fallthru
      _
    // Predicated region
    $region10: #{decoder_forward.1} parent=1 // pred_check
      _
    $region11: #{decoder_forward.1} parent=1 // pred_check_branch
      %23 = sbr.rel (0) target = $region13
    $region12: #{decoder_forward.1} parent=1 // pred_region
      _
    $region13: #{decoder_forward.1} parent=1 // pred_fallthru
      _
    // Predicated region
    $region14: #{decoder_forward.1} parent=1 // pred_check
      _
    $region15: #{decoder_forward.1} parent=1 // pred_check_branch
      %25 = sbr.rel (0) target = $region17
    $region16: #{decoder_forward.1} parent=1 // pred_region
      _
    $region17: #{decoder_forward.1} parent=1 // pred_fallthru
      _
    // Predicated region
    $region18: #{decoder_forward.1} parent=1 // pred_check
      _
    $region19: #{decoder_forward.1} parent=1 // pred_check_branch
      %27 = sbr.rel (0) target = $region21
    $region20: #{decoder_forward.1} parent=1 // pred_region
      _
    $region21: #{decoder_forward.1} parent=1 // pred_fallthru
      _
    // Predicated region
    $region22: #{decoder_forward.1} parent=1 // pred_check
      _
    $region23: #{decoder_forward.1} parent=1 // pred_check_branch
      %29 = sbr.rel (0) target = $region25
    $region24: #{decoder_forward.1} parent=1 // pred_region
      _
    $region25: #{decoder_forward.1} parent=1 // pred_fallthru
      _
    // Predicated region
    $region26: #{decoder_forward.1} parent=1 // pred_check
      _
    $region27: #{decoder_forward.1} parent=1 // pred_check_branch
      %31 = sbr.rel (0) target = $region29
    $region28: #{decoder_forward.1} parent=1 // pred_region
      _
    $region29: #{decoder_forward.1} parent=1 // pred_fallthru
      _
    // Predicated region
    $region30: #{decoder_forward.1} parent=1 // pred_check
      _
    $region31: #{decoder_forward.1} parent=1 // pred_check_branch
      %33 = sbr.rel (0) target = $region33
    $region32: #{decoder_forward.1} parent=1 // pred_region
      _
    $region33: #{decoder_forward.1} parent=1 // pred_fallthru
      _
    // Predicated region
    $region34: #{decoder_forward.1} parent=1 // pred_check
      _
    $region35: #{decoder_forward.1} parent=1 // pred_check_branch
      %35 = sbr.rel (0) target = $region37
    $region36: #{decoder_forward.1} parent=1 // pred_region
      _
    $region37: #{decoder_forward.1} parent=1 // pred_fallthru
      _
    // Predicated region
    $region38: #{decoder_forward.1} parent=1 // pred_check
      _
    $region39: #{decoder_forward.1} parent=1 // pred_check_branch
      %37 = sbr.rel (0) target = $region41
    $region40: #{decoder_forward.1} parent=1 // pred_region
      _
    $region41: #{decoder_forward.1} parent=1 // pred_fallthru
      _
    // Predicated region
    $region42: #{decoder_forward.1} parent=1 // pred_check
      _
    $region43: #{decoder_forward.1} parent=1 // pred_check_branch
      %39 = sbr.rel (0) target = $region45
    $region44: #{decoder_forward.1} parent=1 // pred_region
      _
    $region45: #{decoder_forward.1} parent=1 // pred_fallthru
      _
    // Predicated region
    $region46: #{decoder_forward.1} parent=1 // pred_check
      _
    $region47: #{decoder_forward.1} parent=1 // pred_check_branch
      %41 = sbr.rel (0) target = $region49
    $region48: #{decoder_forward.1} parent=1 // pred_region
      _
    $region49: #{decoder_forward.1} parent=1 // pred_fallthru
      _
    %v42 = vld [vmem:[%s0] sm:$0x3]
    %v43 = vld [vmem:[%s1] sm:$0xff]
    %v44 = vld [vmem:[%s1 + $0x8] sm:$0xff]
    %v45 = vld [vmem:[%s1 + $0x10] sm:$0xff]
    %v46 = vld [vmem:[%s1 + $0x18] sm:$0xff]
    %v47 = vld [vmem:[%s2] sm:$0x1]
    %v49 = vlaneseq
    %v50 = vshrl.u32 %v49, 7
    %v51 = vsub.s32 0, %v50
    %v52 = vrot.slane %v47, %v51
    %vm54 = vcmask 261120
    %v56 = vsel %vm54, %v42, 0
    %58 = vmatprep.subr.mxu0 0.0
    %59 = vmatpush1.msra.mxu0 %v43
    %60 = vmatprep.subr.mxu0 0.0
    %61 = vmatpush1.msra.mxu0 %v44
    %62 = vmatprep.subr.mxu0 0.0
    %63 = vmatpush1.msra.mxu0 %v45
    %64 = vmatprep.subr.mxu0 0.0
    %65 = vmatpush1.msra.mxu0 %v46
    %66 = vmatprep.subr.mxu0 0.0
    %67 = vmatpush1.msra.mxu0 0.0
    %68 = vmatprep.subr.mxu0 0.0
    %69 = vmatpush1.msra.mxu0 0.0
    %70 = vmatprep.subr.mxu0 0.0
    %71 = vmatpush1.msra.mxu0 0.0
    %72 = vmatprep.subr.mxu0 0.0
    %73 = vmatpush1.msra.mxu0 0.0
    %74 = vmatprep.subr.mxu0 0.0
    %75 = vmatpush1.msra.mxu0 0.0
    %76 = vmatprep.subr.mxu0 0.0
    %77 = vmatpush1.msra.mxu0 0.0
    %78 = vmatprep.subr.mxu0 0.0
    %79 = vmatpush1.msra.mxu0 0.0
    %80 = vmatprep.subr.mxu0 0.0
    %81 = vmatpush1.msra.mxu0 0.0
    %82 = vmatprep.subr.mxu0 0.0
    %83 = vmatpush1.msra.mxu0 0.0
    %84 = vmatprep.subr.mxu0 0.0
    %85 = vmatpush1.msra.mxu0 0.0
    %86 = vmatprep.subr.mxu0 0.0
    %87 = vmatpush1.msra.mxu0 0.0
    %88 = vmatprep.subr.mxu0 0.0
    %89 = vmatpush1.msra.mxu0 0.0
    %90 = vmatprep.subr.mxu0 0.0
    %91 = vmatpush1.msra.mxu0 0.0
    %92 = vmatprep.subr.mxu0 0.0
    %93 = vmatpush1.msra.mxu0 0.0
    %94 = vmatprep.subr.mxu0 0.0
    %95 = vmatpush1.msra.mxu0 0.0
    %96 = vmatprep.subr.mxu0 0.0
    %97 = vmatpush1.msra.mxu0 0.0
    %98 = vmatprep.subr.mxu0 0.0
    %99 = vmatpush1.msra.mxu0 0.0
    %100 = vmatprep.subr.mxu0 0.0
    %101 = vmatpush1.msra.mxu0 0.0
    %102 = vmatprep.subr.mxu0 0.0
    %103 = vmatpush1.msra.mxu0 0.0
    %104 = vmatprep.subr.mxu0 0.0
    %105 = vmatpush1.msra.mxu0 0.0
    %106 = vmatprep.subr.mxu0 0.0
    %107 = vmatpush1.msra.mxu0 0.0
    %108 = vmatprep.subr.mxu0 0.0
    %109 = vmatpush1.msra.mxu0 0.0
    %110 = vmatprep.subr.mxu0 0.0
    %111 = vmatpush1.msra.mxu0 0.0
    %112 = vmatprep.subr.mxu0 0.0
    %113 = vmatpush1.msra.mxu0 0.0
    %114 = vmatprep.subr.mxu0 0.0
    %115 = vmatpush1.msra.mxu0 0.0
    %116 = vmatprep.subr.mxu0 0.0
    %117 = vmatpush1.msra.mxu0 0.0
    %118 = vmatprep.subr.mxu0 0.0
    %119 = vmatpush1.msra.mxu0 0.0
    %120 = vmatprep.subr.mxu0 0.0
    %121 = vmatpush1.msra.mxu0 0.0
    %122 = vmatprep.mubr.f32.mxu0 0.0
    %123 = vmatmul.mubr.f32.gmra.mrb[0].mxu0 %v56
    %v124 = vpop.f32.mrb[0].mxu0
    %v125 = vadd.f32 %v52, %v124
    %v126 = vpop.f32.mrb[0].mxu0
    %127 = vdwg.mxu0
    %s128 = scalar_lea.vmem %s1, 32
    %v129 = vld [vmem:[%s128] sm:$0xff]
    %v130 = vld [vmem:[%s128 + $0x8] sm:$0xff]
    %v131 = vld [vmem:[%s128 + $0x10] sm:$0xff]
    %v132 = vld [vmem:[%s128 + $0x18] sm:$0xff]
    %s133 = scalar_lea.vmem %s2, 1
    %v134 = vld [vmem:[%s133] sm:$0x1]
    %v136 = vlaneseq
    %v137 = vshrl.u32 %v136, 7
    %v138 = vsub.s32 0, %v137
    %v139 = vrot.slane %v134, %v138
    %141 = vmatprep.subr.mxu0 0.0
    %142 = vmatpush1.msra.mxu0 %v129
    %143 = vmatprep.subr.mxu0 0.0
    %144 = vmatpush1.msra.mxu0 %v130
    %145 = vmatprep.subr.mxu0 0.0
    %146 = vmatpush1.msra.mxu0 %v131
    %147 = vmatprep.subr.mxu0 0.0
    %148 = vmatpush1.msra.mxu0 %v132
    %149 = vmatprep.subr.mxu0 0.0
    %150 = vmatpush1.msra.mxu0 0.0
    %151 = vmatprep.subr.mxu0 0.0
    %152 = vmatpush1.msra.mxu0 0.0
    %153 = vmatprep.subr.mxu0 0.0
    %154 = vmatpush1.msra.mxu0 0.0
    %155 = vmatprep.subr.mxu0 0.0
    %156 = vmatpush1.msra.mxu0 0.0
    %157 = vmatprep.subr.mxu0 0.0
    %158 = vmatpush1.msra.mxu0 0.0
    %159 = vmatprep.subr.mxu0 0.0
    %160 = vmatpush1.msra.mxu0 0.0
    %161 = vmatprep.subr.mxu0 0.0
    %162 = vmatpush1.msra.mxu0 0.0
    %163 = vmatprep.subr.mxu0 0.0
    %164 = vmatpush1.msra.mxu0 0.0
    %165 = vmatprep.subr.mxu0 0.0
    %166 = vmatpush1.msra.mxu0 0.0
    %167 = vmatprep.subr.mxu0 0.0
    %168 = vmatpush1.msra.mxu0 0.0
    %169 = vmatprep.subr.mxu0 0.0
    %170 = vmatpush1.msra.mxu0 0.0
    %171 = vmatprep.subr.mxu0 0.0
    %172 = vmatpush1.msra.mxu0 0.0
    %173 = vmatprep.subr.mxu0 0.0
    %174 = vmatpush1.msra.mxu0 0.0
    %175 = vmatprep.subr.mxu0 0.0
    %176 = vmatpush1.msra.mxu0 0.0
    %177 = vmatprep.subr.mxu0 0.0
    %178 = vmatpush1.msra.mxu0 0.0
    %179 = vmatprep.subr.mxu0 0.0
    %180 = vmatpush1.msra.mxu0 0.0
    %181 = vmatprep.subr.mxu0 0.0
    %182 = vmatpush1.msra.mxu0 0.0
    %183 = vmatprep.subr.mxu0 0.0
    %184 = vmatpush1.msra.mxu0 0.0
    %185 = vmatprep.subr.mxu0 0.0
    %186 = vmatpush1.msra.mxu0 0.0
    %187 = vmatprep.subr.mxu0 0.0
    %188 = vmatpush1.msra.mxu0 0.0
    %189 = vmatprep.subr.mxu0 0.0
    %190 = vmatpush1.msra.mxu0 0.0
    %191 = vmatprep.subr.mxu0 0.0
    %192 = vmatpush1.msra.mxu0 0.0
    %193 = vmatprep.subr.mxu0 0.0
    %194 = vmatpush1.msra.mxu0 0.0
    %195 = vmatprep.subr.mxu0 0.0
    %196 = vmatpush1.msra.mxu0 0.0
    %197 = vmatprep.subr.mxu0 0.0
    %198 = vmatpush1.msra.mxu0 0.0
    %199 = vmatprep.subr.mxu0 0.0
    %200 = vmatpush1.msra.mxu0 0.0
    %201 = vmatprep.subr.mxu0 0.0
    %202 = vmatpush1.msra.mxu0 0.0
    %203 = vmatprep.subr.mxu0 0.0
    %204 = vmatpush1.msra.mxu0 0.0
    %205 = vmatprep.mubr.f32.mxu0 0.0
    %206 = vmatmul.mubr.f32.gmra.mrb[0].mxu0 %v56
    %v207 = vpop.f32.mrb[0].mxu0
    %v208 = vadd.f32 %v139, %v207
    %v209 = vpop.f32.mrb[0].mxu0
    %210 = vdwg.mxu0
    %s211 = scalar_lea.vmem %s1, 64
    %v212 = vld [vmem:[%s211] sm:$0xff]
    %v213 = vld [vmem:[%s211 + $0x8] sm:$0xff]
    %v214 = vld [vmem:[%s211 + $0x10] sm:$0xff]
    %v215 = vld [vmem:[%s211 + $0x18] sm:$0xff]
    %s216 = scalar_lea.vmem %s2, 2
    %v217 = vld [vmem:[%s216] sm:$0x1]
    %v219 = vlaneseq
    %v220 = vshrl.u32 %v219, 7
    %v221 = vsub.s32 0, %v220
    %v222 = vrot.slane %v217, %v221
    %224 = vmatprep.subr.mxu0 0.0
    %225 = vmatpush1.msra.mxu0 %v212
    %226 = vmatprep.subr.mxu0 0.0
    %227 = vmatpush1.msra.mxu0 %v213
    %228 = vmatprep.subr.mxu0 0.0
    %229 = vmatpush1.msra.mxu0 %v214
    %230 = vmatprep.subr.mxu0 0.0
    %231 = vmatpush1.msra.mxu0 %v215
    %232 = vmatprep.subr.mxu0 0.0
    %233 = vmatpush1.msra.mxu0 0.0
    %234 = vmatprep.subr.mxu0 0.0
    %235 = vmatpush1.msra.mxu0 0.0
    %236 = vmatprep.subr.mxu0 0.0
    %237 = vmatpush1.msra.mxu0 0.0
    %238 = vmatprep.subr.mxu0 0.0
    %239 = vmatpush1.msra.mxu0 0.0
    %240 = vmatprep.subr.mxu0 0.0
    %241 = vmatpush1.msra.mxu0 0.0
    %242 = vmatprep.subr.mxu0 0.0
    %243 = vmatpush1.msra.mxu0 0.0
    %244 = vmatprep.subr.mxu0 0.0
    %245 = vmatpush1.msra.mxu0 0.0
    %246 = vmatprep.subr.mxu0 0.0
    %247 = vmatpush1.msra.mxu0 0.0
    %248 = vmatprep.subr.mxu0 0.0
    %249 = vmatpush1.msra.mxu0 0.0
    %250 = vmatprep.subr.mxu0 0.0
    %251 = vmatpush1.msra.mxu0 0.0
    %252 = vmatprep.subr.mxu0 0.0
    %253 = vmatpush1.msra.mxu0 0.0
    %254 = vmatprep.subr.mxu0 0.0
    %255 = vmatpush1.msra.mxu0 0.0
    %256 = vmatprep.subr.mxu0 0.0
    %257 = vmatpush1.msra.mxu0 0.0
    %258 = vmatprep.subr.mxu0 0.0
    %259 = vmatpush1.msra.mxu0 0.0
    %260 = vmatprep.subr.mxu0 0.0
    %261 = vmatpush1.msra.mxu0 0.0
    %262 = vmatprep.subr.mxu0 0.0
    %263 = vmatpush1.msra.mxu0 0.0
    %264 = vmatprep.subr.mxu0 0.0
    %265 = vmatpush1.msra.mxu0 0.0
    %266 = vmatprep.subr.mxu0 0.0
    %267 = vmatpush1.msra.mxu0 0.0
    %268 = vmatprep.subr.mxu0 0.0
    %269 = vmatpush1.msra.mxu0 0.0
    %270 = vmatprep.subr.mxu0 0.0
    %271 = vmatpush1.msra.mxu0 0.0
    %272 = vmatprep.subr.mxu0 0.0
    %273 = vmatpush1.msra.mxu0 0.0
    %274 = vmatprep.subr.mxu0 0.0
    %275 = vmatpush1.msra.mxu0 0.0
    %276 = vmatprep.subr.mxu0 0.0
    %277 = vmatpush1.msra.mxu0 0.0
    %278 = vmatprep.subr.mxu0 0.0
    %279 = vmatpush1.msra.mxu0 0.0
    %280 = vmatprep.subr.mxu0 0.0
    %281 = vmatpush1.msra.mxu0 0.0
    %282 = vmatprep.subr.mxu0 0.0
    %283 = vmatpush1.msra.mxu0 0.0
    %284 = vmatprep.subr.mxu0 0.0
    %285 = vmatpush1.msra.mxu0 0.0
    %286 = vmatprep.subr.mxu0 0.0
    %287 = vmatpush1.msra.mxu0 0.0
    %288 = vmatprep.mubr.f32.mxu0 0.0
    %289 = vmatmul.mubr.f32.gmra.mrb[0].mxu0 %v56
    %v290 = vpop.f32.mrb[0].mxu0
    %v291 = vadd.f32 %v222, %v290
    %v292 = vpop.f32.mrb[0].mxu0
    %293 = vdwg.mxu0
    %s294 = scalar_lea.vmem %s1, 96
    %v295 = vld [vmem:[%s294] sm:$0xff]
    %v296 = vld [vmem:[%s294 + $0x8] sm:$0xff]
    %v297 = vld [vmem:[%s294 + $0x10] sm:$0xff]
    %v298 = vld [vmem:[%s294 + $0x18] sm:$0xff]
    %s299 = scalar_lea.vmem %s2, 3
    %v300 = vld [vmem:[%s299] sm:$0x1]
    %v302 = vlaneseq
    %v303 = vshrl.u32 %v302, 7
    %v304 = vsub.s32 0, %v303
    %v305 = vrot.slane %v300, %v304
    %307 = vmatprep.subr.mxu0 0.0
    %308 = vmatpush1.msra.mxu0 %v295
    %309 = vmatprep.subr.mxu0 0.0
    %310 = vmatpush1.msra.mxu0 %v296
    %311 = vmatprep.subr.mxu0 0.0
    %312 = vmatpush1.msra.mxu0 %v297
    %313 = vmatprep.subr.mxu0 0.0
    %314 = vmatpush1.msra.mxu0 %v298
    %315 = vmatprep.subr.mxu0 0.0
    %316 = vmatpush1.msra.mxu0 0.0
    %317 = vmatprep.subr.mxu0 0.0
    %318 = vmatpush1.msra.mxu0 0.0
    %319 = vmatprep.subr.mxu0 0.0
    %320 = vmatpush1.msra.mxu0 0.0
    %321 = vmatprep.subr.mxu0 0.0
    %322 = vmatpush1.msra.mxu0 0.0
    %323 = vmatprep.subr.mxu0 0.0
    %324 = vmatpush1.msra.mxu0 0.0
    %325 = vmatprep.subr.mxu0 0.0
    %326 = vmatpush1.msra.mxu0 0.0
    %327 = vmatprep.subr.mxu0 0.0
    %328 = vmatpush1.msra.mxu0 0.0
    %329 = vmatprep.subr.mxu0 0.0
    %330 = vmatpush1.msra.mxu0 0.0
    %331 = vmatprep.subr.mxu0 0.0
    %332 = vmatpush1.msra.mxu0 0.0
    %333 = vmatprep.subr.mxu0 0.0
    %334 = vmatpush1.msra.mxu0 0.0
    %335 = vmatprep.subr.mxu0 0.0
    %336 = vmatpush1.msra.mxu0 0.0
    %337 = vmatprep.subr.mxu0 0.0
    %338 = vmatpush1.msra.mxu0 0.0
    %339 = vmatprep.subr.mxu0 0.0
    %340 = vmatpush1.msra.mxu0 0.0
    %341 = vmatprep.subr.mxu0 0.0
    %342 = vmatpush1.msra.mxu0 0.0
    %343 = vmatprep.subr.mxu0 0.0
    %344 = vmatpush1.msra.mxu0 0.0
    %345 = vmatprep.subr.mxu0 0.0
    %346 = vmatpush1.msra.mxu0 0.0
    %347 = vmatprep.subr.mxu0 0.0
    %348 = vmatpush1.msra.mxu0 0.0
    %349 = vmatprep.subr.mxu0 0.0
    %350 = vmatpush1.msra.mxu0 0.0
    %351 = vmatprep.subr.mxu0 0.0
    %352 = vmatpush1.msra.mxu0 0.0
    %353 = vmatprep.subr.mxu0 0.0
    %354 = vmatpush1.msra.mxu0 0.0
    %355 = vmatprep.subr.mxu0 0.0
    %356 = vmatpush1.msra.mxu0 0.0
    %357 = vmatprep.subr.mxu0 0.0
    %358 = vmatpush1.msra.mxu0 0.0
    %359 = vmatprep.subr.mxu0 0.0
    %360 = vmatpush1.msra.mxu0 0.0
    %361 = vmatprep.subr.mxu0 0.0
    %362 = vmatpush1.msra.mxu0 0.0
    %363 = vmatprep.subr.mxu0 0.0
    %364 = vmatpush1.msra.mxu0 0.0
    %365 = vmatprep.subr.mxu0 0.0
    %366 = vmatpush1.msra.mxu0 0.0
    %367 = vmatprep.subr.mxu0 0.0
    %368 = vmatpush1.msra.mxu0 0.0
    %369 = vmatprep.subr.mxu0 0.0
    %370 = vmatpush1.msra.mxu0 0.0
    %371 = vmatprep.mubr.f32.mxu0 0.0
    %372 = vmatmul.mubr.f32.gmra.mrb[0].mxu0 %v56
    %v373 = vpop.f32.mrb[0].mxu0
    %v374 = vadd.f32 %v305, %v373
    %v375 = vpop.f32.mrb[0].mxu0
    %376 = vdwg.mxu0
    %s377 = scalar_lea.vmem %s1, 128
    %v378 = vld [vmem:[%s377] sm:$0xff]
    %v379 = vld [vmem:[%s377 + $0x8] sm:$0xff]
    %v380 = vld [vmem:[%s377 + $0x10] sm:$0xff]
    %v381 = vld [vmem:[%s377 + $0x18] sm:$0xff]
    %s382 = scalar_lea.vmem %s2, 4
    %v383 = vld [vmem:[%s382] sm:$0x1]
    %v385 = vlaneseq
    %v386 = vshrl.u32 %v385, 7
    %v387 = vsub.s32 0, %v386
    %v388 = vrot.slane %v383, %v387
    %390 = vmatprep.subr.mxu0 0.0
    %391 = vmatpush1.msra.mxu0 %v378
    %392 = vmatprep.subr.mxu0 0.0
    %393 = vmatpush1.msra.mxu0 %v379
    %394 = vmatprep.subr.mxu0 0.0
    %395 = vmatpush1.msra.mxu0 %v380
    %396 = vmatprep.subr.mxu0 0.0
    %397 = vmatpush1.msra.mxu0 %v381
    %398 = vmatprep.subr.mxu0 0.0
    %399 = vmatpush1.msra.mxu0 0.0
    %400 = vmatprep.subr.mxu0 0.0
    %401 = vmatpush1.msra.mxu0 0.0
    %402 = vmatprep.subr.mxu0 0.0
    %403 = vmatpush1.msra.mxu0 0.0
    %404 = vmatprep.subr.mxu0 0.0
    %405 = vmatpush1.msra.mxu0 0.0
    %406 = vmatprep.subr.mxu0 0.0
    %407 = vmatpush1.msra.mxu0 0.0
    %408 = vmatprep.subr.mxu0 0.0
    %409 = vmatpush1.msra.mxu0 0.0
    %410 = vmatprep.subr.mxu0 0.0
    %411 = vmatpush1.msra.mxu0 0.0
    %412 = vmatprep.subr.mxu0 0.0
    %413 = vmatpush1.msra.mxu0 0.0
    %414 = vmatprep.subr.mxu0 0.0
    %415 = vmatpush1.msra.mxu0 0.0
    %416 = vmatprep.subr.mxu0 0.0
    %417 = vmatpush1.msra.mxu0 0.0
    %418 = vmatprep.subr.mxu0 0.0
    %419 = vmatpush1.msra.mxu0 0.0
    %420 = vmatprep.subr.mxu0 0.0
    %421 = vmatpush1.msra.mxu0 0.0
    %422 = vmatprep.subr.mxu0 0.0
    %423 = vmatpush1.msra.mxu0 0.0
    %424 = vmatprep.subr.mxu0 0.0
    %425 = vmatpush1.msra.mxu0 0.0
    %426 = vmatprep.subr.mxu0 0.0
    %427 = vmatpush1.msra.mxu0 0.0
    %428 = vmatprep.subr.mxu0 0.0
    %429 = vmatpush1.msra.mxu0 0.0
    %430 = vmatprep.subr.mxu0 0.0
    %431 = vmatpush1.msra.mxu0 0.0
    %432 = vmatprep.subr.mxu0 0.0
    %433 = vmatpush1.msra.mxu0 0.0
    %434 = vmatprep.subr.mxu0 0.0
    %435 = vmatpush1.msra.mxu0 0.0
    %436 = vmatprep.subr.mxu0 0.0
    %437 = vmatpush1.msra.mxu0 0.0
    %438 = vmatprep.subr.mxu0 0.0
    %439 = vmatpush1.msra.mxu0 0.0
    %440 = vmatprep.subr.mxu0 0.0
    %441 = vmatpush1.msra.mxu0 0.0
    %442 = vmatprep.subr.mxu0 0.0
    %443 = vmatpush1.msra.mxu0 0.0
    %444 = vmatprep.subr.mxu0 0.0
    %445 = vmatpush1.msra.mxu0 0.0
    %446 = vmatprep.subr.mxu0 0.0
    %447 = vmatpush1.msra.mxu0 0.0
    %448 = vmatprep.subr.mxu0 0.0
    %449 = vmatpush1.msra.mxu0 0.0
    %450 = vmatprep.subr.mxu0 0.0
    %451 = vmatpush1.msra.mxu0 0.0
    %452 = vmatprep.subr.mxu0 0.0
    %453 = vmatpush1.msra.mxu0 0.0
    %454 = vmatprep.mubr.f32.mxu0 0.0
    %455 = vmatmul.mubr.f32.gmra.mrb[0].mxu0 %v56
    %v456 = vpop.f32.mrb[0].mxu0
    %v457 = vadd.f32 %v388, %v456
    %v458 = vpop.f32.mrb[0].mxu0
    %459 = vdwg.mxu0
    %v461 = vrot.slane %v208, 6
    %v464 = vrot.slane %v291, 4
    %v467 = vrot.slane %v374, 2
    %vm469 = vcmask 1041408
    %v470 = vsel %vm469, %v125, %v461
    %vm471 = vcmask 1043456
    %v472 = vsel %vm471, %v470, %v464
    %vm473 = vcmask 1045504
    %v474 = vsel %vm473, %v472, %v467
    %v475 = vmax.f32 %v474, 0.0
    %v476 = vmax.f32 %v457, 0.0
    %v477 = vld [vmem:[%s3] sm:$0xff]
    %v478 = vld [vmem:[%s3 + $0x8] sm:$0xff]
    %v479 = vld [vmem:[%s3 + $0x10] sm:$0xff]
    %v480 = vld [vmem:[%s3 + $0x18] sm:$0xff]
    %v481 = vld [vmem:[%s3 + $0x20] sm:$0xff]
    %v482 = vld [vmem:[%s3 + $0x28] sm:$0xff]
    %v483 = vld [vmem:[%s3 + $0x30] sm:$0xff]
    %v484 = vld [vmem:[%s3 + $0x38] sm:$0xff]
    %v485 = vld [vmem:[%s3 + $0x40] sm:$0xff]
    %v486 = vld [vmem:[%s3 + $0x48] sm:$0xff]
    %vm487 = vcmask 654336
    %v489 = vsel %vm487, %v475, 0
    %v492 = vsel %vm487, %v476, 0
    %494 = vmatprep.subr.mxu0 0.0
    %495 = vmatpush1.msra.mxu0 %v477
    %496 = vmatprep.subr.mxu0 0.0
    %497 = vmatpush1.msra.mxu0 %v478
    %498 = vmatprep.subr.mxu0 0.0
    %499 = vmatpush1.msra.mxu0 %v479
    %500 = vmatprep.subr.mxu0 0.0
    %501 = vmatpush1.msra.mxu0 %v480
    %502 = vmatprep.subr.mxu0 0.0
    %503 = vmatpush1.msra.mxu0 %v481
    %504 = vmatprep.subr.mxu0 0.0
    %505 = vmatpush1.msra.mxu0 %v482
    %506 = vmatprep.subr.mxu0 0.0
    %507 = vmatpush1.msra.mxu0 %v483
    %508 = vmatprep.subr.mxu0 0.0
    %509 = vmatpush1.msra.mxu0 %v484
    %510 = vmatprep.subr.mxu0 0.0
    %511 = vmatpush1.msra.mxu0 %v485
    %512 = vmatprep.subr.mxu0 0.0
    %513 = vmatpush1.msra.mxu0 %v486
    %514 = vmatprep.subr.mxu0 0.0
    %515 = vmatpush1.msra.mxu0 0.0
    %516 = vmatprep.subr.mxu0 0.0
    %517 = vmatpush1.msra.mxu0 0.0
    %518 = vmatprep.subr.mxu0 0.0
    %519 = vmatpush1.msra.mxu0 0.0
    %520 = vmatprep.subr.mxu0 0.0
    %521 = vmatpush1.msra.mxu0 0.0
    %522 = vmatprep.subr.mxu0 0.0
    %523 = vmatpush1.msra.mxu0 0.0
    %524 = vmatprep.subr.mxu0 0.0
    %525 = vmatpush1.msra.mxu0 0.0
    %526 = vmatprep.subr.mxu0 0.0
    %527 = vmatpush1.msra.mxu0 0.0
    %528 = vmatprep.subr.mxu0 0.0
    %529 = vmatpush1.msra.mxu0 0.0
    %530 = vmatprep.subr.mxu0 0.0
    %531 = vmatpush1.msra.mxu0 0.0
    %532 = vmatprep.subr.mxu0 0.0
    %533 = vmatpush1.msra.mxu0 0.0
    %534 = vmatprep.subr.mxu0 0.0
    %535 = vmatpush1.msra.mxu0 0.0
    %536 = vmatprep.subr.mxu0 0.0
    %537 = vmatpush1.msra.mxu0 0.0
    %538 = vmatprep.subr.mxu0 0.0
    %539 = vmatpush1.msra.mxu0 0.0
    %540 = vmatprep.subr.mxu0 0.0
    %541 = vmatpush1.msra.mxu0 0.0
    %542 = vmatprep.subr.mxu0 0.0
    %543 = vmatpush1.msra.mxu0 0.0
    %544 = vmatprep.subr.mxu0 0.0
    %545 = vmatpush1.msra.mxu0 0.0
    %546 = vmatprep.subr.mxu0 0.0
    %547 = vmatpush1.msra.mxu0 0.0
    %548 = vmatprep.subr.mxu0 0.0
    %549 = vmatpush1.msra.mxu0 0.0
    %550 = vmatprep.subr.mxu0 0.0
    %551 = vmatpush1.msra.mxu0 0.0
    %552 = vmatprep.subr.mxu0 0.0
    %553 = vmatpush1.msra.mxu0 0.0
    %554 = vmatprep.subr.mxu0 0.0
    %555 = vmatpush1.msra.mxu0 0.0
    %556 = vmatprep.subr.mxu0 0.0
    %557 = vmatpush1.msra.mxu0 0.0
    %558 = vmatprep.mubr.f32.mxu0 0.0
    %559 = vmatmul.mubr.f32.gmra.mrb[0].mxu0 %v489
    %v560 = vpop.f32.mrb[0].mxu0
    %v561 = vadd.f32 0.0, %v560
    %v562 = vpop.f32.mrb[0].mxu0
    %563 = vmatprep.mubr.f32.mxu0 0.0
    %564 = vmatmul.mubr.f32.gmra.mrb[0].mxu0 %v492
    %v565 = vpop.f32.mrb[0].mxu0
    %v566 = vadd.f32 0.0, %v565
    %v567 = vpop.f32.mrb[0].mxu0
    %568 = vdwg.mxu0
    %s569 = scalar_lea.vmem %s3, 80
    %v570 = vld [vmem:[%s569] sm:$0xff]
    %v571 = vld [vmem:[%s569 + $0x8] sm:$0xff]
    %v572 = vld [vmem:[%s569 + $0x10] sm:$0xff]
    %v573 = vld [vmem:[%s569 + $0x18] sm:$0xff]
    %v574 = vld [vmem:[%s569 + $0x20] sm:$0xff]
    %v575 = vld [vmem:[%s569 + $0x28] sm:$0xff]
    %v576 = vld [vmem:[%s569 + $0x30] sm:$0xff]
    %v577 = vld [vmem:[%s569 + $0x38] sm:$0xff]
    %v578 = vld [vmem:[%s569 + $0x40] sm:$0xff]
    %v579 = vld [vmem:[%s569 + $0x48] sm:$0xff]
    %580 = vmatprep.subr.mxu0 0.0
    %581 = vmatpush1.msra.mxu0 %v570
    %582 = vmatprep.subr.mxu0 0.0
    %583 = vmatpush1.msra.mxu0 %v571
    %584 = vmatprep.subr.mxu0 0.0
    %585 = vmatpush1.msra.mxu0 %v572
    %586 = vmatprep.subr.mxu0 0.0
    %587 = vmatpush1.msra.mxu0 %v573
    %588 = vmatprep.subr.mxu0 0.0
    %589 = vmatpush1.msra.mxu0 %v574
    %590 = vmatprep.subr.mxu0 0.0
    %591 = vmatpush1.msra.mxu0 %v575
    %592 = vmatprep.subr.mxu0 0.0
    %593 = vmatpush1.msra.mxu0 %v576
    %594 = vmatprep.subr.mxu0 0.0
    %595 = vmatpush1.msra.mxu0 %v577
    %596 = vmatprep.subr.mxu0 0.0
    %597 = vmatpush1.msra.mxu0 %v578
    %598 = vmatprep.subr.mxu0 0.0
    %599 = vmatpush1.msra.mxu0 %v579
    %600 = vmatprep.subr.mxu0 0.0
    %601 = vmatpush1.msra.mxu0 0.0
    %602 = vmatprep.subr.mxu0 0.0
    %603 = vmatpush1.msra.mxu0 0.0
    %604 = vmatprep.subr.mxu0 0.0
    %605 = vmatpush1.msra.mxu0 0.0
    %606 = vmatprep.subr.mxu0 0.0
    %607 = vmatpush1.msra.mxu0 0.0
    %608 = vmatprep.subr.mxu0 0.0
    %609 = vmatpush1.msra.mxu0 0.0
    %610 = vmatprep.subr.mxu0 0.0
    %611 = vmatpush1.msra.mxu0 0.0
    %612 = vmatprep.subr.mxu0 0.0
    %613 = vmatpush1.msra.mxu0 0.0
    %614 = vmatprep.subr.mxu0 0.0
    %615 = vmatpush1.msra.mxu0 0.0
    %616 = vmatprep.subr.mxu0 0.0
    %617 = vmatpush1.msra.mxu0 0.0
    %618 = vmatprep.subr.mxu0 0.0
    %619 = vmatpush1.msra.mxu0 0.0
    %620 = vmatprep.subr.mxu0 0.0
    %621 = vmatpush1.msra.mxu0 0.0
    %622 = vmatprep.subr.mxu0 0.0
    %623 = vmatpush1.msra.mxu0 0.0
    %624 = vmatprep.subr.mxu0 0.0
    %625 = vmatpush1.msra.mxu0 0.0
    %626 = vmatprep.subr.mxu0 0.0
    %627 = vmatpush1.msra.mxu0 0.0
    %628 = vmatprep.subr.mxu0 0.0
    %629 = vmatpush1.msra.mxu0 0.0
    %630 = vmatprep.subr.mxu0 0.0
    %631 = vmatpush1.msra.mxu0 0.0
    %632 = vmatprep.subr.mxu0 0.0
    %633 = vmatpush1.msra.mxu0 0.0
    %634 = vmatprep.subr.mxu0 0.0
    %635 = vmatpush1.msra.mxu0 0.0
    %636 = vmatprep.subr.mxu0 0.0
    %637 = vmatpush1.msra.mxu0 0.0
    %638 = vmatprep.subr.mxu0 0.0
    %639 = vmatpush1.msra.mxu0 0.0
    %640 = vmatprep.subr.mxu0 0.0
    %641 = vmatpush1.msra.mxu0 0.0
    %642 = vmatprep.subr.mxu0 0.0
    %643 = vmatpush1.msra.mxu0 0.0
    %644 = vmatprep.mubr.f32.mxu0 0.0
    %645 = vmatmul.mubr.f32.gmra.mrb[0].mxu0 %v489
    %v646 = vpop.f32.mrb[0].mxu0
    %v647 = vadd.f32 0.0, %v646
    %v648 = vpop.f32.mrb[0].mxu0
    %649 = vmatprep.mubr.f32.mxu0 0.0
    %650 = vmatmul.mubr.f32.gmra.mrb[0].mxu0 %v492
    %v651 = vpop.f32.mrb[0].mxu0
    %v652 = vadd.f32 0.0, %v651
    %v653 = vpop.f32.mrb[0].mxu0
    %654 = vdwg.mxu0
    %s655 = scalar_lea.vmem %s3, 160
    %v656 = vld [vmem:[%s655] sm:$0xff]
    %v657 = vld [vmem:[%s655 + $0x8] sm:$0xff]
    %v658 = vld [vmem:[%s655 + $0x10] sm:$0xff]
    %v659 = vld [vmem:[%s655 + $0x18] sm:$0xff]
    %v660 = vld [vmem:[%s655 + $0x20] sm:$0xff]
    %v661 = vld [vmem:[%s655 + $0x28] sm:$0xff]
    %v662 = vld [vmem:[%s655 + $0x30] sm:$0xff]
    %v663 = vld [vmem:[%s655 + $0x38] sm:$0xff]
    %v664 = vld [vmem:[%s655 + $0x40] sm:$0xff]
    %v665 = vld [vmem:[%s655 + $0x48] sm:$0xff]
    %666 = vmatprep.subr.mxu0 0.0
    %667 = vmatpush1.msra.mxu0 %v656
    %668 = vmatprep.subr.mxu0 0.0
    %669 = vmatpush1.msra.mxu0 %v657
    %670 = vmatprep.subr.mxu0 0.0
    %671 = vmatpush1.msra.mxu0 %v658
    %672 = vmatprep.subr.mxu0 0.0
    %673 = vmatpush1.msra.mxu0 %v659
    %674 = vmatprep.subr.mxu0 0.0
    %675 = vmatpush1.msra.mxu0 %v660
    %676 = vmatprep.subr.mxu0 0.0
    %677 = vmatpush1.msra.mxu0 %v661
    %678 = vmatprep.subr.mxu0 0.0
    %679 = vmatpush1.msra.mxu0 %v662
    %680 = vmatprep.subr.mxu0 0.0
    %681 = vmatpush1.msra.mxu0 %v663
    %682 = vmatprep.subr.mxu0 0.0
    %683 = vmatpush1.msra.mxu0 %v664
    %684 = vmatprep.subr.mxu0 0.0
    %685 = vmatpush1.msra.mxu0 %v665
    %686 = vmatprep.subr.mxu0 0.0
    %687 = vmatpush1.msra.mxu0 0.0
    %688 = vmatprep.subr.mxu0 0.0
    %689 = vmatpush1.msra.mxu0 0.0
    %690 = vmatprep.subr.mxu0 0.0
    %691 = vmatpush1.msra.mxu0 0.0
    %692 = vmatprep.subr.mxu0 0.0
    %693 = vmatpush1.msra.mxu0 0.0
    %694 = vmatprep.subr.mxu0 0.0
    %695 = vmatpush1.msra.mxu0 0.0
    %696 = vmatprep.subr.mxu0 0.0
    %697 = vmatpush1.msra.mxu0 0.0
    %698 = vmatprep.subr.mxu0 0.0
    %699 = vmatpush1.msra.mxu0 0.0
    %700 = vmatprep.subr.mxu0 0.0
    %701 = vmatpush1.msra.mxu0 0.0
    %702 = vmatprep.subr.mxu0 0.0
    %703 = vmatpush1.msra.mxu0 0.0
    %704 = vmatprep.subr.mxu0 0.0
    %705 = vmatpush1.msra.mxu0 0.0
    %706 = vmatprep.subr.mxu0 0.0
    %707 = vmatpush1.msra.mxu0 0.0
    %708 = vmatprep.subr.mxu0 0.0
    %709 = vmatpush1.msra.mxu0 0.0
    %710 = vmatprep.subr.mxu0 0.0
    %711 = vmatpush1.msra.mxu0 0.0
    %712 = vmatprep.subr.mxu0 0.0
    %713 = vmatpush1.msra.mxu0 0.0
    %714 = vmatprep.subr.mxu0 0.0
    %715 = vmatpush1.msra.mxu0 0.0
    %716 = vmatprep.subr.mxu0 0.0
    %717 = vmatpush1.msra.mxu0 0.0
    %718 = vmatprep.subr.mxu0 0.0
    %719 = vmatpush1.msra.mxu0 0.0
    %720 = vmatprep.subr.mxu0 0.0
    %721 = vmatpush1.msra.mxu0 0.0
    %722 = vmatprep.subr.mxu0 0.0
    %723 = vmatpush1.msra.mxu0 0.0
    %724 = vmatprep.subr.mxu0 0.0
    %725 = vmatpush1.msra.mxu0 0.0
    %726 = vmatprep.subr.mxu0 0.0
    %727 = vmatpush1.msra.mxu0 0.0
    %728 = vmatprep.subr.mxu0 0.0
    %729 = vmatpush1.msra.mxu0 0.0
    %730 = vmatprep.mubr.f32.mxu0 0.0
    %731 = vmatmul.mubr.f32.gmra.mrb[0].mxu0 %v489
    %v732 = vpop.f32.mrb[0].mxu0
    %v733 = vadd.f32 0.0, %v732
    %v734 = vpop.f32.mrb[0].mxu0
    %735 = vmatprep.mubr.f32.mxu0 0.0
    %736 = vmatmul.mubr.f32.gmra.mrb[0].mxu0 %v492
    %v737 = vpop.f32.mrb[0].mxu0
    %v738 = vadd.f32 0.0, %v737
    %v739 = vpop.f32.mrb[0].mxu0
    %740 = vdwg.mxu0
    %s741 = scalar_lea.vmem %s3, 240
    %v742 = vld [vmem:[%s741] sm:$0xff]
    %v743 = vld [vmem:[%s741 + $0x8] sm:$0xff]
    %v744 = vld [vmem:[%s741 + $0x10] sm:$0xff]
    %v745 = vld [vmem:[%s741 + $0x18] sm:$0xff]
    %v746 = vld [vmem:[%s741 + $0x20] sm:$0xff]
    %v747 = vld [vmem:[%s741 + $0x28] sm:$0xff]
    %v748 = vld [vmem:[%s741 + $0x30] sm:$0xff]
    %v749 = vld [vmem:[%s741 + $0x38] sm:$0xff]
    %v750 = vld [vmem:[%s741 + $0x40] sm:$0xff]
    %v751 = vld [vmem:[%s741 + $0x48] sm:$0xff]
    %752 = vmatprep.subr.mxu0 0.0
    %753 = vmatpush1.msra.mxu0 %v742
    %754 = vmatprep.subr.mxu0 0.0
    %755 = vmatpush1.msra.mxu0 %v743
    %756 = vmatprep.subr.mxu0 0.0
    %757 = vmatpush1.msra.mxu0 %v744
    %758 = vmatprep.subr.mxu0 0.0
    %759 = vmatpush1.msra.mxu0 %v745
    %760 = vmatprep.subr.mxu0 0.0
    %761 = vmatpush1.msra.mxu0 %v746
    %762 = vmatprep.subr.mxu0 0.0
    %763 = vmatpush1.msra.mxu0 %v747
    %764 = vmatprep.subr.mxu0 0.0
    %765 = vmatpush1.msra.mxu0 %v748
    %766 = vmatprep.subr.mxu0 0.0
    %767 = vmatpush1.msra.mxu0 %v749
    %768 = vmatprep.subr.mxu0 0.0
    %769 = vmatpush1.msra.mxu0 %v750
    %770 = vmatprep.subr.mxu0 0.0
    %771 = vmatpush1.msra.mxu0 %v751
    %772 = vmatprep.subr.mxu0 0.0
    %773 = vmatpush1.msra.mxu0 0.0
    %774 = vmatprep.subr.mxu0 0.0
    %775 = vmatpush1.msra.mxu0 0.0
    %776 = vmatprep.subr.mxu0 0.0
    %777 = vmatpush1.msra.mxu0 0.0
    %778 = vmatprep.subr.mxu0 0.0
    %779 = vmatpush1.msra.mxu0 0.0
    %780 = vmatprep.subr.mxu0 0.0
    %781 = vmatpush1.msra.mxu0 0.0
    %782 = vmatprep.subr.mxu0 0.0
    %783 = vmatpush1.msra.mxu0 0.0
    %784 = vmatprep.subr.mxu0 0.0
    %785 = vmatpush1.msra.mxu0 0.0
    %786 = vmatprep.subr.mxu0 0.0
    %787 = vmatpush1.msra.mxu0 0.0
    %788 = vmatprep.subr.mxu0 0.0
    %789 = vmatpush1.msra.mxu0 0.0
    %790 = vmatprep.subr.mxu0 0.0
    %791 = vmatpush1.msra.mxu0 0.0
    %792 = vmatprep.subr.mxu0 0.0
    %793 = vmatpush1.msra.mxu0 0.0
    %794 = vmatprep.subr.mxu0 0.0
    %795 = vmatpush1.msra.mxu0 0.0
    %796 = vmatprep.subr.mxu0 0.0
    %797 = vmatpush1.msra.mxu0 0.0
    %798 = vmatprep.subr.mxu0 0.0
    %799 = vmatpush1.msra.mxu0 0.0
    %800 = vmatprep.subr.mxu0 0.0
    %801 = vmatpush1.msra.mxu0 0.0
    %802 = vmatprep.subr.mxu0 0.0
    %803 = vmatpush1.msra.mxu0 0.0
    %804 = vmatprep.subr.mxu0 0.0
    %805 = vmatpush1.msra.mxu0 0.0
    %806 = vmatprep.subr.mxu0 0.0
    %807 = vmatpush1.msra.mxu0 0.0
    %808 = vmatprep.subr.mxu0 0.0
    %809 = vmatpush1.msra.mxu0 0.0
    %810 = vmatprep.subr.mxu0 0.0
    %811 = vmatpush1.msra.mxu0 0.0
    %812 = vmatprep.subr.mxu0 0.0
    %813 = vmatpush1.msra.mxu0 0.0
    %814 = vmatprep.subr.mxu0 0.0
    %815 = vmatpush1.msra.mxu0 0.0
    %816 = vmatprep.mubr.f32.mxu0 0.0
    %817 = vmatmul.mubr.f32.gmra.mrb[0].mxu0 %v489
    %v818 = vpop.f32.mrb[0].mxu0
    %v819 = vadd.f32 0.0, %v818
    %v820 = vpop.f32.mrb[0].mxu0
    %821 = vmatprep.mubr.f32.mxu0 0.0
    %822 = vmatmul.mubr.f32.gmra.mrb[0].mxu0 %v492
    %v823 = vpop.f32.mrb[0].mxu0
    %v824 = vadd.f32 0.0, %v823
    %v825 = vpop.f32.mrb[0].mxu0
    %826 = vdwg.mxu0
    %s827 = scalar_lea.vmem %s3, 320
    %v828 = vld [vmem:[%s827] sm:$0xff]
    %v829 = vld [vmem:[%s827 + $0x8] sm:$0xff]
    %v830 = vld [vmem:[%s827 + $0x10] sm:$0xff]
    %v831 = vld [vmem:[%s827 + $0x18] sm:$0xff]
    %v832 = vld [vmem:[%s827 + $0x20] sm:$0xff]
    %v833 = vld [vmem:[%s827 + $0x28] sm:$0xff]
    %v834 = vld [vmem:[%s827 + $0x30] sm:$0xff]
    %v835 = vld [vmem:[%s827 + $0x38] sm:$0xff]
    %v836 = vld [vmem:[%s827 + $0x40] sm:$0xff]
    %v837 = vld [vmem:[%s827 + $0x48] sm:$0xff]
    %838 = vmatprep.subr.mxu0 0.0
    %839 = vmatpush1.msra.mxu0 %v828
    %840 = vmatprep.subr.mxu0 0.0
    %841 = vmatpush1.msra.mxu0 %v829
    %842 = vmatprep.subr.mxu0 0.0
    %843 = vmatpush1.msra.mxu0 %v830
    %844 = vmatprep.subr.mxu0 0.0
    %845 = vmatpush1.msra.mxu0 %v831
    %846 = vmatprep.subr.mxu0 0.0
    %847 = vmatpush1.msra.mxu0 %v832
    %848 = vmatprep.subr.mxu0 0.0
    %849 = vmatpush1.msra.mxu0 %v833
    %850 = vmatprep.subr.mxu0 0.0
    %851 = vmatpush1.msra.mxu0 %v834
    %852 = vmatprep.subr.mxu0 0.0
    %853 = vmatpush1.msra.mxu0 %v835
    %854 = vmatprep.subr.mxu0 0.0
    %855 = vmatpush1.msra.mxu0 %v836
    %856 = vmatprep.subr.mxu0 0.0
    %857 = vmatpush1.msra.mxu0 %v837
    %858 = vmatprep.subr.mxu0 0.0
    %859 = vmatpush1.msra.mxu0 0.0
    %860 = vmatprep.subr.mxu0 0.0
    %861 = vmatpush1.msra.mxu0 0.0
    %862 = vmatprep.subr.mxu0 0.0
    %863 = vmatpush1.msra.mxu0 0.0
    %864 = vmatprep.subr.mxu0 0.0
    %865 = vmatpush1.msra.mxu0 0.0
    %866 = vmatprep.subr.mxu0 0.0
    %867 = vmatpush1.msra.mxu0 0.0
    %868 = vmatprep.subr.mxu0 0.0
    %869 = vmatpush1.msra.mxu0 0.0
    %870 = vmatprep.subr.mxu0 0.0
    %871 = vmatpush1.msra.mxu0 0.0
    %872 = vmatprep.subr.mxu0 0.0
    %873 = vmatpush1.msra.mxu0 0.0
    %874 = vmatprep.subr.mxu0 0.0
    %875 = vmatpush1.msra.mxu0 0.0
    %876 = vmatprep.subr.mxu0 0.0
    %877 = vmatpush1.msra.mxu0 0.0
    %878 = vmatprep.subr.mxu0 0.0
    %879 = vmatpush1.msra.mxu0 0.0
    %880 = vmatprep.subr.mxu0 0.0
    %881 = vmatpush1.msra.mxu0 0.0
    %882 = vmatprep.subr.mxu0 0.0
    %883 = vmatpush1.msra.mxu0 0.0
    %884 = vmatprep.subr.mxu0 0.0
    %885 = vmatpush1.msra.mxu0 0.0
    %886 = vmatprep.subr.mxu0 0.0
    %887 = vmatpush1.msra.mxu0 0.0
    %888 = vmatprep.subr.mxu0 0.0
    %889 = vmatpush1.msra.mxu0 0.0
    %890 = vmatprep.subr.mxu0 0.0
    %891 = vmatpush1.msra.mxu0 0.0
    %892 = vmatprep.subr.mxu0 0.0
    %893 = vmatpush1.msra.mxu0 0.0
    %894 = vmatprep.subr.mxu0 0.0
    %895 = vmatpush1.msra.mxu0 0.0
    %896 = vmatprep.subr.mxu0 0.0
    %897 = vmatpush1.msra.mxu0 0.0
    %898 = vmatprep.subr.mxu0 0.0
    %899 = vmatpush1.msra.mxu0 0.0
    %900 = vmatprep.subr.mxu0 0.0
    %901 = vmatpush1.msra.mxu0 0.0
    %902 = vmatprep.mubr.f32.mxu0 0.0
    %903 = vmatmul.mubr.f32.gmra.mrb[0].mxu0 %v489
    %v904 = vpop.f32.mrb[0].mxu0
    %v905 = vadd.f32 0.0, %v904
    %v906 = vpop.f32.mrb[0].mxu0
    %907 = vmatprep.mubr.f32.mxu0 0.0
    %908 = vmatmul.mubr.f32.gmra.mrb[0].mxu0 %v492
    %v909 = vpop.f32.mrb[0].mxu0
    %v910 = vadd.f32 0.0, %v909
    %v911 = vpop.f32.mrb[0].mxu0
    %912 = vdwg.mxu0
    %v915 = vrot.slane %v647, 6
    %v916 = vrot.slane %v652, 6
    %v917 = vsel %vm469, %v915, %v916
    %v922 = vrot.slane %v733, 4
    %v923 = vrot.slane %v738, 4
    %v924 = vsel %vm471, %v922, %v923
    %v929 = vrot.slane %v819, 2
    %v930 = vrot.slane %v824, 2
    %v931 = vsel %vm473, %v929, %v930
    %v934 = vsel %vm469, %v566, %v915
    %v935 = vsel %vm471, %v917, %v922
    %v936 = vsel %vm473, %v924, %v929
    %v937 = vld [vmem:[%s4] sm:$0xff]
    %v938 = vld [vmem:[%s4 + $0x8] sm:$0xff]
    %v939 = vld [vmem:[%s4 + $0x10] sm:$0xff]
    %v940 = vld [vmem:[%s4 + $0x18] sm:$0x3]
    %v941 = vld [vmem:[%s5] sm:$0x1]
    %v943 = vlaneseq
    %v944 = vshrl.u32 %v943, 7
    %v945 = vsub.s32 0, %v944
    %v946 = vrot.slane %v941, %v945
    %vm948 = vcmask 408576
    %v950 = vsel %vm948, %v937, 0
    %v953 = vsel %vm948, %v938, 0
    %v956 = vsel %vm948, %v939, 0
    %v959 = vsel %vm948, %v940, 0
    %v962 = vsel %vm469, %v910, 0
    %964 = vmatprep.subr.mxu0 0.0
    %965 = vmatpush1.msra.mxu0 %v561
    %966 = vmatprep.subr.mxu0 0.0
    %967 = vmatpush1.msra.mxu0 %v934
    %968 = vmatprep.subr.mxu0 0.0
    %969 = vmatpush1.msra.mxu0 %v935
    %970 = vmatprep.subr.mxu0 0.0
    %971 = vmatpush1.msra.mxu0 %v936
    %972 = vmatprep.subr.mxu0 0.0
    %973 = vmatpush1.msra.mxu0 %v931
    %974 = vmatprep.subr.mxu0 0.0
    %975 = vmatpush1.msra.mxu0 %v905
    %976 = vmatprep.subr.mxu0 0.0
    %977 = vmatpush1.msra.mxu0 %v962
    %978 = vmatprep.subr.mxu0 0.0
    %979 = vmatpush1.msra.mxu0 0.0
    %980 = vmatprep.subr.mxu0 0.0
    %981 = vmatpush1.msra.mxu0 0.0
    %982 = vmatprep.subr.mxu0 0.0
    %983 = vmatpush1.msra.mxu0 0.0
    %984 = vmatprep.subr.mxu0 0.0
    %985 = vmatpush1.msra.mxu0 0.0
    %986 = vmatprep.subr.mxu0 0.0
    %987 = vmatpush1.msra.mxu0 0.0
    %988 = vmatprep.subr.mxu0 0.0
    %989 = vmatpush1.msra.mxu0 0.0
    %990 = vmatprep.subr.mxu0 0.0
    %991 = vmatpush1.msra.mxu0 0.0
    %992 = vmatprep.subr.mxu0 0.0
    %993 = vmatpush1.msra.mxu0 0.0
    %994 = vmatprep.subr.mxu0 0.0
    %995 = vmatpush1.msra.mxu0 0.0
    %996 = vmatprep.subr.mxu0 0.0
    %997 = vmatpush1.msra.mxu0 0.0
    %998 = vmatprep.subr.mxu0 0.0
    %999 = vmatpush1.msra.mxu0 0.0
    %1000 = vmatprep.subr.mxu0 0.0
    %1001 = vmatpush1.msra.mxu0 0.0
    %1002 = vmatprep.subr.mxu0 0.0
    %1003 = vmatpush1.msra.mxu0 0.0
    %1004 = vmatprep.subr.mxu0 0.0
    %1005 = vmatpush1.msra.mxu0 0.0
    %1006 = vmatprep.subr.mxu0 0.0
    %1007 = vmatpush1.msra.mxu0 0.0
    %1008 = vmatprep.subr.mxu0 0.0
    %1009 = vmatpush1.msra.mxu0 0.0
    %1010 = vmatprep.subr.mxu0 0.0
    %1011 = vmatpush1.msra.mxu0 0.0
    %1012 = vmatprep.subr.mxu0 0.0
    %1013 = vmatpush1.msra.mxu0 0.0
    %1014 = vmatprep.subr.mxu0 0.0
    %1015 = vmatpush1.msra.mxu0 0.0
    %1016 = vmatprep.subr.mxu0 0.0
    %1017 = vmatpush1.msra.mxu0 0.0
    %1018 = vmatprep.subr.mxu0 0.0
    %1019 = vmatpush1.msra.mxu0 0.0
    %1020 = vmatprep.subr.mxu0 0.0
    %1021 = vmatpush1.msra.mxu0 0.0
    %1022 = vmatprep.subr.mxu0 0.0
    %1023 = vmatpush1.msra.mxu0 0.0
    %1024 = vmatprep.subr.mxu0 0.0
    %1025 = vmatpush1.msra.mxu0 0.0
    %1026 = vmatprep.subr.mxu0 0.0
    %1027 = vmatpush1.msra.mxu0 0.0
    %1028 = vmatprep.mubr.f32.mxu0 0.0
    %1029 = vmatmul.mubr.f32.gmra.mrb[0].mxu0 %v950
    %v1030 = vpop.f32.mrb[0].mxu0
    %v1031 = vadd.f32 %v946, %v1030
    %v1032 = vpop.f32.mrb[0].mxu0
    %1033 = vmatprep.mubr.f32.mxu0 0.0
    %1034 = vmatmul.mubr.f32.gmra.mrb[0].mxu0 %v953
    %v1035 = vpop.f32.mrb[0].mxu0
    %v1036 = vadd.f32 %v946, %v1035
    %v1037 = vpop.f32.mrb[0].mxu0
    %1038 = vmatprep.mubr.f32.mxu0 0.0
    %1039 = vmatmul.mubr.f32.gmra.mrb[0].mxu0 %v956
    %v1040 = vpop.f32.mrb[0].mxu0
    %v1041 = vadd.f32 %v946, %v1040
    %v1042 = vpop.f32.mrb[0].mxu0
    %1043 = vmatprep.mubr.f32.mxu0 0.0
    %1044 = vmatmul.mubr.f32.gmra.mrb[0].mxu0 %v959
    %v1045 = vpop.f32.mrb[0].mxu0
    %v1046 = vadd.f32 %v946, %v1045
    %v1047 = vpop.f32.mrb[0].mxu0
    %1048 = vdwg.mxu0
    %v1049 = vmax.f32 %v1031, 0.0
    %v1050 = vmax.f32 %v1036, 0.0
    %v1051 = vmax.f32 %v1041, 0.0
    %v1052 = vmax.f32 %v1046, 0.0
    %v1053 = vld [vmem:[%s6] sm:$0xff]
    %v1054 = vld [vmem:[%s6 + $0x8] sm:$0xff]
    %v1055 = vld [vmem:[%s6 + $0x10] sm:$0xff]
    %v1056 = vld [vmem:[%s6 + $0x18] sm:$0xff]
    %v1057 = vld [vmem:[%s6 + $0x20] sm:$0xff]
    %v1058 = vld [vmem:[%s6 + $0x28] sm:$0xff]
    %v1059 = vld [vmem:[%s6 + $0x30] sm:$0xff]
    %v1060 = vld [vmem:[%s6 + $0x38] sm:$0xff]
    %v1061 = vld [vmem:[%s6 + $0x40] sm:$0xff]
    %v1062 = vld [vmem:[%s6 + $0x48] sm:$0xff]
    %v1063 = vld [vmem:[%s6 + $0x50] sm:$0xff]
    %v1064 = vld [vmem:[%s6 + $0x58] sm:$0xff]
    %v1065 = vld [vmem:[%s6 + $0x60] sm:$0xff]
    %vm1066 = vcmask 850944
    %v1068 = vsel %vm1066, %v1049, 0
    %v1071 = vsel %vm1066, %v1050, 0
    %v1074 = vsel %vm1066, %v1051, 0
    %v1077 = vsel %vm1066, %v1052, 0
    %1079 = vmatprep.subr.mxu0 0.0
    %1080 = vmatpush1.msra.mxu0 %v1053
    %1081 = vmatprep.subr.mxu0 0.0
    %1082 = vmatpush1.msra.mxu0 %v1054
    %1083 = vmatprep.subr.mxu0 0.0
    %1084 = vmatpush1.msra.mxu0 %v1055
    %1085 = vmatprep.subr.mxu0 0.0
    %1086 = vmatpush1.msra.mxu0 %v1056
    %1087 = vmatprep.subr.mxu0 0.0
    %1088 = vmatpush1.msra.mxu0 %v1057
    %1089 = vmatprep.subr.mxu0 0.0
    %1090 = vmatpush1.msra.mxu0 %v1058
    %1091 = vmatprep.subr.mxu0 0.0
    %1092 = vmatpush1.msra.mxu0 %v1059
    %1093 = vmatprep.subr.mxu0 0.0
    %1094 = vmatpush1.msra.mxu0 %v1060
    %1095 = vmatprep.subr.mxu0 0.0
    %1096 = vmatpush1.msra.mxu0 %v1061
    %1097 = vmatprep.subr.mxu0 0.0
    %1098 = vmatpush1.msra.mxu0 %v1062
    %1099 = vmatprep.subr.mxu0 0.0
    %1100 = vmatpush1.msra.mxu0 %v1063
    %1101 = vmatprep.subr.mxu0 0.0
    %1102 = vmatpush1.msra.mxu0 %v1064
    %1103 = vmatprep.subr.mxu0 0.0
    %1104 = vmatpush1.msra.mxu0 %v1065
    %1105 = vmatprep.subr.mxu0 0.0
    %1106 = vmatpush1.msra.mxu0 0.0
    %1107 = vmatprep.subr.mxu0 0.0
    %1108 = vmatpush1.msra.mxu0 0.0
    %1109 = vmatprep.subr.mxu0 0.0
    %1110 = vmatpush1.msra.mxu0 0.0
    %1111 = vmatprep.subr.mxu0 0.0
    %1112 = vmatpush1.msra.mxu0 0.0
    %1113 = vmatprep.subr.mxu0 0.0
    %1114 = vmatpush1.msra.mxu0 0.0
    %1115 = vmatprep.subr.mxu0 0.0
    %1116 = vmatpush1.msra.mxu0 0.0
    %1117 = vmatprep.subr.mxu0 0.0
    %1118 = vmatpush1.msra.mxu0 0.0
    %1119 = vmatprep.subr.mxu0 0.0
    %1120 = vmatpush1.msra.mxu0 0.0
    %1121 = vmatprep.subr.mxu0 0.0
    %1122 = vmatpush1.msra.mxu0 0.0
    %1123 = vmatprep.subr.mxu0 0.0
    %1124 = vmatpush1.msra.mxu0 0.0
    %1125 = vmatprep.subr.mxu0 0.0
    %1126 = vmatpush1.msra.mxu0 0.0
    %1127 = vmatprep.subr.mxu0 0.0
    %1128 = vmatpush1.msra.mxu0 0.0
    %1129 = vmatprep.subr.mxu0 0.0
    %1130 = vmatpush1.msra.mxu0 0.0
    %1131 = vmatprep.subr.mxu0 0.0
    %1132 = vmatpush1.msra.mxu0 0.0
    %1133 = vmatprep.subr.mxu0 0.0
    %1134 = vmatpush1.msra.mxu0 0.0
    %1135 = vmatprep.subr.mxu0 0.0
    %1136 = vmatpush1.msra.mxu0 0.0
    %1137 = vmatprep.subr.mxu0 0.0
    %1138 = vmatpush1.msra.mxu0 0.0
    %1139 = vmatprep.subr.mxu0 0.0
    %1140 = vmatpush1.msra.mxu0 0.0
    %1141 = vmatprep.subr.mxu0 0.0
    %1142 = vmatpush1.msra.mxu0 0.0
    %1143 = vmatprep.mubr.f32.mxu0 0.0
    %1144 = vmatmul.mubr.f32.gmra.mrb[0].mxu0 %v1068
    %v1145 = vpop.f32.mrb[0].mxu0
    %v1146 = vadd.f32 0.0, %v1145
    %v1147 = vpop.f32.mrb[0].mxu0
    %1148 = vmatprep.mubr.f32.mxu0 0.0
    %1149 = vmatmul.mubr.f32.gmra.mrb[0].mxu0 %v1071
    %v1150 = vpop.f32.mrb[0].mxu0
    %v1151 = vadd.f32 0.0, %v1150
    %v1152 = vpop.f32.mrb[0].mxu0
    %1153 = vmatprep.mubr.f32.mxu0 0.0
    %1154 = vmatmul.mubr.f32.gmra.mrb[0].mxu0 %v1074
    %v1155 = vpop.f32.mrb[0].mxu0
    %v1156 = vadd.f32 0.0, %v1155
    %v1157 = vpop.f32.mrb[0].mxu0
    %1158 = vmatprep.mubr.f32.mxu0 0.0
    %1159 = vmatmul.mubr.f32.gmra.mrb[0].mxu0 %v1077
    %v1160 = vpop.f32.mrb[0].mxu0
    %v1161 = vadd.f32 0.0, %v1160
    %v1162 = vpop.f32.mrb[0].mxu0
    %1163 = vdwg.mxu0
    %s1164 = scalar_lea.vmem %s6, 104
    %v1165 = vld [vmem:[%s1164] sm:$0xff]
    %v1166 = vld [vmem:[%s1164 + $0x8] sm:$0xff]
    %v1167 = vld [vmem:[%s1164 + $0x10] sm:$0xff]
    %v1168 = vld [vmem:[%s1164 + $0x18] sm:$0xff]
    %v1169 = vld [vmem:[%s1164 + $0x20] sm:$0xff]
    %v1170 = vld [vmem:[%s1164 + $0x28] sm:$0xff]
    %v1171 = vld [vmem:[%s1164 + $0x30] sm:$0xff]
    %v1172 = vld [vmem:[%s1164 + $0x38] sm:$0xff]
    %v1173 = vld [vmem:[%s1164 + $0x40] sm:$0xff]
    %v1174 = vld [vmem:[%s1164 + $0x48] sm:$0xff]
    %v1175 = vld [vmem:[%s1164 + $0x50] sm:$0xff]
    %v1176 = vld [vmem:[%s1164 + $0x58] sm:$0xff]
    %v1177 = vld [vmem:[%s1164 + $0x60] sm:$0xff]
    %1178 = vmatprep.subr.mxu0 0.0
    %1179 = vmatpush1.msra.mxu0 %v1165
    %1180 = vmatprep.subr.mxu0 0.0
    %1181 = vmatpush1.msra.mxu0 %v1166
    %1182 = vmatprep.subr.mxu0 0.0
    %1183 = vmatpush1.msra.mxu0 %v1167
    %1184 = vmatprep.subr.mxu0 0.0
    %1185 = vmatpush1.msra.mxu0 %v1168
    %1186 = vmatprep.subr.mxu0 0.0
    %1187 = vmatpush1.msra.mxu0 %v1169
    %1188 = vmatprep.subr.mxu0 0.0
    %1189 = vmatpush1.msra.mxu0 %v1170
    %1190 = vmatprep.subr.mxu0 0.0
    %1191 = vmatpush1.msra.mxu0 %v1171
    %1192 = vmatprep.subr.mxu0 0.0
    %1193 = vmatpush1.msra.mxu0 %v1172
    %1194 = vmatprep.subr.mxu0 0.0
    %1195 = vmatpush1.msra.mxu0 %v1173
    %1196 = vmatprep.subr.mxu0 0.0
    %1197 = vmatpush1.msra.mxu0 %v1174
    %1198 = vmatprep.subr.mxu0 0.0
    %1199 = vmatpush1.msra.mxu0 %v1175
    %1200 = vmatprep.subr.mxu0 0.0
    %1201 = vmatpush1.msra.mxu0 %v1176
    %1202 = vmatprep.subr.mxu0 0.0
    %1203 = vmatpush1.msra.mxu0 %v1177
    %1204 = vmatprep.subr.mxu0 0.0
    %1205 = vmatpush1.msra.mxu0 0.0
    %1206 = vmatprep.subr.mxu0 0.0
    %1207 = vmatpush1.msra.mxu0 0.0
    %1208 = vmatprep.subr.mxu0 0.0
    %1209 = vmatpush1.msra.mxu0 0.0
    %1210 = vmatprep.subr.mxu0 0.0
    %1211 = vmatpush1.msra.mxu0 0.0
    %1212 = vmatprep.subr.mxu0 0.0
    %1213 = vmatpush1.msra.mxu0 0.0
    %1214 = vmatprep.subr.mxu0 0.0
    %1215 = vmatpush1.msra.mxu0 0.0
    %1216 = vmatprep.subr.mxu0 0.0
    %1217 = vmatpush1.msra.mxu0 0.0
    %1218 = vmatprep.subr.mxu0 0.0
    %1219 = vmatpush1.msra.mxu0 0.0
    %1220 = vmatprep.subr.mxu0 0.0
    %1221 = vmatpush1.msra.mxu0 0.0
    %1222 = vmatprep.subr.mxu0 0.0
    %1223 = vmatpush1.msra.mxu0 0.0
    %1224 = vmatprep.subr.mxu0 0.0
    %1225 = vmatpush1.msra.mxu0 0.0
    %1226 = vmatprep.subr.mxu0 0.0
    %1227 = vmatpush1.msra.mxu0 0.0
    %1228 = vmatprep.subr.mxu0 0.0
    %1229 = vmatpush1.msra.mxu0 0.0
    %1230 = vmatprep.subr.mxu0 0.0
    %1231 = vmatpush1.msra.mxu0 0.0
    %1232 = vmatprep.subr.mxu0 0.0
    %1233 = vmatpush1.msra.mxu0 0.0
    %1234 = vmatprep.subr.mxu0 0.0
    %1235 = vmatpush1.msra.mxu0 0.0
    %1236 = vmatprep.subr.mxu0 0.0
    %1237 = vmatpush1.msra.mxu0 0.0
    %1238 = vmatprep.subr.mxu0 0.0
    %1239 = vmatpush1.msra.mxu0 0.0
    %1240 = vmatprep.subr.mxu0 0.0
    %1241 = vmatpush1.msra.mxu0 0.0
    %1242 = vmatprep.mubr.f32.mxu0 0.0
    %1243 = vmatmul.mubr.f32.gmra.mrb[0].mxu0 %v1068
    %v1244 = vpop.f32.mrb[0].mxu0
    %v1245 = vadd.f32 0.0, %v1244
    %v1246 = vpop.f32.mrb[0].mxu0
    %1247 = vmatprep.mubr.f32.mxu0 0.0
    %1248 = vmatmul.mubr.f32.gmra.mrb[0].mxu0 %v1071
    %v1249 = vpop.f32.mrb[0].mxu0
    %v1250 = vadd.f32 0.0, %v1249
    %v1251 = vpop.f32.mrb[0].mxu0
    %1252 = vmatprep.mubr.f32.mxu0 0.0
    %1253 = vmatmul.mubr.f32.gmra.mrb[0].mxu0 %v1074
    %v1254 = vpop.f32.mrb[0].mxu0
    %v1255 = vadd.f32 0.0, %v1254
    %v1256 = vpop.f32.mrb[0].mxu0
    %1257 = vmatprep.mubr.f32.mxu0 0.0
    %1258 = vmatmul.mubr.f32.gmra.mrb[0].mxu0 %v1077
    %v1259 = vpop.f32.mrb[0].mxu0
    %v1260 = vadd.f32 0.0, %v1259
    %v1261 = vpop.f32.mrb[0].mxu0
    %1262 = vdwg.mxu0
    %s1263 = scalar_lea.vmem %s6, 208
    %v1264 = vld [vmem:[%s1263] sm:$0xff]
    %v1265 = vld [vmem:[%s1263 + $0x8] sm:$0xff]
    %v1266 = vld [vmem:[%s1263 + $0x10] sm:$0xff]
    %v1267 = vld [vmem:[%s1263 + $0x18] sm:$0xff]
    %v1268 = vld [vmem:[%s1263 + $0x20] sm:$0xff]
    %v1269 = vld [vmem:[%s1263 + $0x28] sm:$0xff]
    %v1270 = vld [vmem:[%s1263 + $0x30] sm:$0xff]
    %v1271 = vld [vmem:[%s1263 + $0x38] sm:$0xff]
    %v1272 = vld [vmem:[%s1263 + $0x40] sm:$0xff]
    %v1273 = vld [vmem:[%s1263 + $0x48] sm:$0xff]
    %v1274 = vld [vmem:[%s1263 + $0x50] sm:$0xff]
    %v1275 = vld [vmem:[%s1263 + $0x58] sm:$0xff]
    %v1276 = vld [vmem:[%s1263 + $0x60] sm:$0xff]
    %1277 = vmatprep.subr.mxu0 0.0
    %1278 = vmatpush1.msra.mxu0 %v1264
    %1279 = vmatprep.subr.mxu0 0.0
    %1280 = vmatpush1.msra.mxu0 %v1265
    %1281 = vmatprep.subr.mxu0 0.0
    %1282 = vmatpush1.msra.mxu0 %v1266
    %1283 = vmatprep.subr.mxu0 0.0
    %1284 = vmatpush1.msra.mxu0 %v1267
    %1285 = vmatprep.subr.mxu0 0.0
    %1286 = vmatpush1.msra.mxu0 %v1268
    %1287 = vmatprep.subr.mxu0 0.0
    %1288 = vmatpush1.msra.mxu0 %v1269
    %1289 = vmatprep.subr.mxu0 0.0
    %1290 = vmatpush1.msra.mxu0 %v1270
    %1291 = vmatprep.subr.mxu0 0.0
    %1292 = vmatpush1.msra.mxu0 %v1271
    %1293 = vmatprep.subr.mxu0 0.0
    %1294 = vmatpush1.msra.mxu0 %v1272
    %1295 = vmatprep.subr.mxu0 0.0
    %1296 = vmatpush1.msra.mxu0 %v1273
    %1297 = vmatprep.subr.mxu0 0.0
    %1298 = vmatpush1.msra.mxu0 %v1274
    %1299 = vmatprep.subr.mxu0 0.0
    %1300 = vmatpush1.msra.mxu0 %v1275
    %1301 = vmatprep.subr.mxu0 0.0
    %1302 = vmatpush1.msra.mxu0 %v1276
    %1303 = vmatprep.subr.mxu0 0.0
    %1304 = vmatpush1.msra.mxu0 0.0
    %1305 = vmatprep.subr.mxu0 0.0
    %1306 = vmatpush1.msra.mxu0 0.0
    %1307 = vmatprep.subr.mxu0 0.0
    %1308 = vmatpush1.msra.mxu0 0.0
    %1309 = vmatprep.subr.mxu0 0.0
    %1310 = vmatpush1.msra.mxu0 0.0
    %1311 = vmatprep.subr.mxu0 0.0
    %1312 = vmatpush1.msra.mxu0 0.0
    %1313 = vmatprep.subr.mxu0 0.0
    %1314 = vmatpush1.msra.mxu0 0.0
    %1315 = vmatprep.subr.mxu0 0.0
    %1316 = vmatpush1.msra.mxu0 0.0
    %1317 = vmatprep.subr.mxu0 0.0
    %1318 = vmatpush1.msra.mxu0 0.0
    %1319 = vmatprep.subr.mxu0 0.0
    %1320 = vmatpush1.msra.mxu0 0.0
    %1321 = vmatprep.subr.mxu0 0.0
    %1322 = vmatpush1.msra.mxu0 0.0
    %1323 = vmatprep.subr.mxu0 0.0
    %1324 = vmatpush1.msra.mxu0 0.0
    %1325 = vmatprep.subr.mxu0 0.0
    %1326 = vmatpush1.msra.mxu0 0.0
    %1327 = vmatprep.subr.mxu0 0.0
    %1328 = vmatpush1.msra.mxu0 0.0
    %1329 = vmatprep.subr.mxu0 0.0
    %1330 = vmatpush1.msra.mxu0 0.0
    %1331 = vmatprep.subr.mxu0 0.0
    %1332 = vmatpush1.msra.mxu0 0.0
    %1333 = vmatprep.subr.mxu0 0.0
    %1334 = vmatpush1.msra.mxu0 0.0
    %1335 = vmatprep.subr.mxu0 0.0
    %1336 = vmatpush1.msra.mxu0 0.0
    %1337 = vmatprep.subr.mxu0 0.0
    %1338 = vmatpush1.msra.mxu0 0.0
    %1339 = vmatprep.subr.mxu0 0.0
    %1340 = vmatpush1.msra.mxu0 0.0
    %1341 = vmatprep.mubr.f32.mxu0 0.0
    %1342 = vmatmul.mubr.f32.gmra.mrb[0].mxu0 %v1068
    %v1343 = vpop.f32.mrb[0].mxu0
    %v1344 = vadd.f32 0.0, %v1343
    %v1345 = vpop.f32.mrb[0].mxu0
    %1346 = vmatprep.mubr.f32.mxu0 0.0
    %1347 = vmatmul.mubr.f32.gmra.mrb[0].mxu0 %v1071
    %v1348 = vpop.f32.mrb[0].mxu0
    %v1349 = vadd.f32 0.0, %v1348
    %v1350 = vpop.f32.mrb[0].mxu0
    %1351 = vmatprep.mubr.f32.mxu0 0.0
    %1352 = vmatmul.mubr.f32.gmra.mrb[0].mxu0 %v1074
    %v1353 = vpop.f32.mrb[0].mxu0
    %v1354 = vadd.f32 0.0, %v1353
    %v1355 = vpop.f32.mrb[0].mxu0
    %1356 = vmatprep.mubr.f32.mxu0 0.0
    %1357 = vmatmul.mubr.f32.gmra.mrb[0].mxu0 %v1077
    %v1358 = vpop.f32.mrb[0].mxu0
    %v1359 = vadd.f32 0.0, %v1358
    %v1360 = vpop.f32.mrb[0].mxu0
    %1361 = vdwg.mxu0
    %s1362 = scalar_lea.vmem %s6, 312
    %v1363 = vld [vmem:[%s1362] sm:$0xff]
    %v1364 = vld [vmem:[%s1362 + $0x8] sm:$0xff]
    %v1365 = vld [vmem:[%s1362 + $0x10] sm:$0xff]
    %v1366 = vld [vmem:[%s1362 + $0x18] sm:$0xff]
    %v1367 = vld [vmem:[%s1362 + $0x20] sm:$0xff]
    %v1368 = vld [vmem:[%s1362 + $0x28] sm:$0xff]
    %v1369 = vld [vmem:[%s1362 + $0x30] sm:$0xff]
    %v1370 = vld [vmem:[%s1362 + $0x38] sm:$0xff]
    %v1371 = vld [vmem:[%s1362 + $0x40] sm:$0xff]
    %v1372 = vld [vmem:[%s1362 + $0x48] sm:$0xff]
    %v1373 = vld [vmem:[%s1362 + $0x50] sm:$0xff]
    %v1374 = vld [vmem:[%s1362 + $0x58] sm:$0xff]
    %v1375 = vld [vmem:[%s1362 + $0x60] sm:$0xff]
    %1376 = vmatprep.subr.mxu0 0.0
    %1377 = vmatpush1.msra.mxu0 %v1363
    %1378 = vmatprep.subr.mxu0 0.0
    %1379 = vmatpush1.msra.mxu0 %v1364
    %1380 = vmatprep.subr.mxu0 0.0
    %1381 = vmatpush1.msra.mxu0 %v1365
    %1382 = vmatprep.subr.mxu0 0.0
    %1383 = vmatpush1.msra.mxu0 %v1366
    %1384 = vmatprep.subr.mxu0 0.0
    %1385 = vmatpush1.msra.mxu0 %v1367
    %1386 = vmatprep.subr.mxu0 0.0
    %1387 = vmatpush1.msra.mxu0 %v1368
    %1388 = vmatprep.subr.mxu0 0.0
    %1389 = vmatpush1.msra.mxu0 %v1369
    %1390 = vmatprep.subr.mxu0 0.0
    %1391 = vmatpush1.msra.mxu0 %v1370
    %1392 = vmatprep.subr.mxu0 0.0
    %1393 = vmatpush1.msra.mxu0 %v1371
    %1394 = vmatprep.subr.mxu0 0.0
    %1395 = vmatpush1.msra.mxu0 %v1372
    %1396 = vmatprep.subr.mxu0 0.0
    %1397 = vmatpush1.msra.mxu0 %v1373
    %1398 = vmatprep.subr.mxu0 0.0
    %1399 = vmatpush1.msra.mxu0 %v1374
    %1400 = vmatprep.subr.mxu0 0.0
    %1401 = vmatpush1.msra.mxu0 %v1375
    %1402 = vmatprep.subr.mxu0 0.0
    %1403 = vmatpush1.msra.mxu0 0.0
    %1404 = vmatprep.subr.mxu0 0.0
    %1405 = vmatpush1.msra.mxu0 0.0
    %1406 = vmatprep.subr.mxu0 0.0
    %1407 = vmatpush1.msra.mxu0 0.0
    %1408 = vmatprep.subr.mxu0 0.0
    %1409 = vmatpush1.msra.mxu0 0.0
    %1410 = vmatprep.subr.mxu0 0.0
    %1411 = vmatpush1.msra.mxu0 0.0
    %1412 = vmatprep.subr.mxu0 0.0
    %1413 = vmatpush1.msra.mxu0 0.0
    %1414 = vmatprep.subr.mxu0 0.0
    %1415 = vmatpush1.msra.mxu0 0.0
    %1416 = vmatprep.subr.mxu0 0.0
    %1417 = vmatpush1.msra.mxu0 0.0
    %1418 = vmatprep.subr.mxu0 0.0
    %1419 = vmatpush1.msra.mxu0 0.0
    %1420 = vmatprep.subr.mxu0 0.0
    %1421 = vmatpush1.msra.mxu0 0.0
    %1422 = vmatprep.subr.mxu0 0.0
    %1423 = vmatpush1.msra.mxu0 0.0
    %1424 = vmatprep.subr.mxu0 0.0
    %1425 = vmatpush1.msra.mxu0 0.0
    %1426 = vmatprep.subr.mxu0 0.0
    %1427 = vmatpush1.msra.mxu0 0.0
    %1428 = vmatprep.subr.mxu0 0.0
    %1429 = vmatpush1.msra.mxu0 0.0
    %1430 = vmatprep.subr.mxu0 0.0
    %1431 = vmatpush1.msra.mxu0 0.0
    %1432 = vmatprep.subr.mxu0 0.0
    %1433 = vmatpush1.msra.mxu0 0.0
    %1434 = vmatprep.subr.mxu0 0.0
    %1435 = vmatpush1.msra.mxu0 0.0
    %1436 = vmatprep.subr.mxu0 0.0
    %1437 = vmatpush1.msra.mxu0 0.0
    %1438 = vmatprep.subr.mxu0 0.0
    %1439 = vmatpush1.msra.mxu0 0.0
    %1440 = vmatprep.mubr.f32.mxu0 0.0
    %1441 = vmatmul.mubr.f32.gmra.mrb[0].mxu0 %v1068
    %v1442 = vpop.f32.mrb[0].mxu0
    %v1443 = vadd.f32 0.0, %v1442
    %v1444 = vpop.f32.mrb[0].mxu0
    %1445 = vmatprep.mubr.f32.mxu0 0.0
    %1446 = vmatmul.mubr.f32.gmra.mrb[0].mxu0 %v1071
    %v1447 = vpop.f32.mrb[0].mxu0
    %v1448 = vadd.f32 0.0, %v1447
    %v1449 = vpop.f32.mrb[0].mxu0
    %1450 = vmatprep.mubr.f32.mxu0 0.0
    %1451 = vmatmul.mubr.f32.gmra.mrb[0].mxu0 %v1074
    %v1452 = vpop.f32.mrb[0].mxu0
    %v1453 = vadd.f32 0.0, %v1452
    %v1454 = vpop.f32.mrb[0].mxu0
    %1455 = vmatprep.mubr.f32.mxu0 0.0
    %1456 = vmatmul.mubr.f32.gmra.mrb[0].mxu0 %v1077
    %v1457 = vpop.f32.mrb[0].mxu0
    %v1458 = vadd.f32 0.0, %v1457
    %v1459 = vpop.f32.mrb[0].mxu0
    %1460 = vdwg.mxu0
    %s1461 = scalar_lea.vmem %s6, 416
    %v1462 = vld [vmem:[%s1461] sm:$0xff]
    %v1463 = vld [vmem:[%s1461 + $0x8] sm:$0xff]
    %v1464 = vld [vmem:[%s1461 + $0x10] sm:$0xff]
    %v1465 = vld [vmem:[%s1461 + $0x18] sm:$0xff]
    %v1466 = vld [vmem:[%s1461 + $0x20] sm:$0xff]
    %v1467 = vld [vmem:[%s1461 + $0x28] sm:$0xff]
    %v1468 = vld [vmem:[%s1461 + $0x30] sm:$0xff]
    %v1469 = vld [vmem:[%s1461 + $0x38] sm:$0xff]
    %v1470 = vld [vmem:[%s1461 + $0x40] sm:$0xff]
    %v1471 = vld [vmem:[%s1461 + $0x48] sm:$0xff]
    %v1472 = vld [vmem:[%s1461 + $0x50] sm:$0xff]
    %v1473 = vld [vmem:[%s1461 + $0x58] sm:$0xff]
    %v1474 = vld [vmem:[%s1461 + $0x60] sm:$0xff]
    %1475 = vmatprep.subr.mxu0 0.0
    %1476 = vmatpush1.msra.mxu0 %v1462
    %1477 = vmatprep.subr.mxu0 0.0
    %1478 = vmatpush1.msra.mxu0 %v1463
    %1479 = vmatprep.subr.mxu0 0.0
    %1480 = vmatpush1.msra.mxu0 %v1464
    %1481 = vmatprep.subr.mxu0 0.0
    %1482 = vmatpush1.msra.mxu0 %v1465
    %1483 = vmatprep.subr.mxu0 0.0
    %1484 = vmatpush1.msra.mxu0 %v1466
    %1485 = vmatprep.subr.mxu0 0.0
    %1486 = vmatpush1.msra.mxu0 %v1467
    %1487 = vmatprep.subr.mxu0 0.0
    %1488 = vmatpush1.msra.mxu0 %v1468
    %1489 = vmatprep.subr.mxu0 0.0
    %1490 = vmatpush1.msra.mxu0 %v1469
    %1491 = vmatprep.subr.mxu0 0.0
    %1492 = vmatpush1.msra.mxu0 %v1470
    %1493 = vmatprep.subr.mxu0 0.0
    %1494 = vmatpush1.msra.mxu0 %v1471
    %1495 = vmatprep.subr.mxu0 0.0
    %1496 = vmatpush1.msra.mxu0 %v1472
    %1497 = vmatprep.subr.mxu0 0.0
    %1498 = vmatpush1.msra.mxu0 %v1473
    %1499 = vmatprep.subr.mxu0 0.0
    %1500 = vmatpush1.msra.mxu0 %v1474
    %1501 = vmatprep.subr.mxu0 0.0
    %1502 = vmatpush1.msra.mxu0 0.0
    %1503 = vmatprep.subr.mxu0 0.0
    %1504 = vmatpush1.msra.mxu0 0.0
    %1505 = vmatprep.subr.mxu0 0.0
    %1506 = vmatpush1.msra.mxu0 0.0
    %1507 = vmatprep.subr.mxu0 0.0
    %1508 = vmatpush1.msra.mxu0 0.0
    %1509 = vmatprep.subr.mxu0 0.0
    %1510 = vmatpush1.msra.mxu0 0.0
    %1511 = vmatprep.subr.mxu0 0.0
    %1512 = vmatpush1.msra.mxu0 0.0
    %1513 = vmatprep.subr.mxu0 0.0
    %1514 = vmatpush1.msra.mxu0 0.0
    %1515 = vmatprep.subr.mxu0 0.0
    %1516 = vmatpush1.msra.mxu0 0.0
    %1517 = vmatprep.subr.mxu0 0.0
    %1518 = vmatpush1.msra.mxu0 0.0
    %1519 = vmatprep.subr.mxu0 0.0
    %1520 = vmatpush1.msra.mxu0 0.0
    %1521 = vmatprep.subr.mxu0 0.0
    %1522 = vmatpush1.msra.mxu0 0.0
    %1523 = vmatprep.subr.mxu0 0.0
    %1524 = vmatpush1.msra.mxu0 0.0
    %1525 = vmatprep.subr.mxu0 0.0
    %1526 = vmatpush1.msra.mxu0 0.0
    %1527 = vmatprep.subr.mxu0 0.0
    %1528 = vmatpush1.msra.mxu0 0.0
    %1529 = vmatprep.subr.mxu0 0.0
    %1530 = vmatpush1.msra.mxu0 0.0
    %1531 = vmatprep.subr.mxu0 0.0
    %1532 = vmatpush1.msra.mxu0 0.0
    %1533 = vmatprep.subr.mxu0 0.0
    %1534 = vmatpush1.msra.mxu0 0.0
    %1535 = vmatprep.subr.mxu0 0.0
    %1536 = vmatpush1.msra.mxu0 0.0
    %1537 = vmatprep.subr.mxu0 0.0
    %1538 = vmatpush1.msra.mxu0 0.0
    %1539 = vmatprep.mubr.f32.mxu0 0.0
    %1540 = vmatmul.mubr.f32.gmra.mrb[0].mxu0 %v1068
    %v1541 = vpop.f32.mrb[0].mxu0
    %v1542 = vadd.f32 0.0, %v1541
    %v1543 = vpop.f32.mrb[0].mxu0
    %1544 = vmatprep.mubr.f32.mxu0 0.0
    %1545 = vmatmul.mubr.f32.gmra.mrb[0].mxu0 %v1071
    %v1546 = vpop.f32.mrb[0].mxu0
    %v1547 = vadd.f32 0.0, %v1546
    %v1548 = vpop.f32.mrb[0].mxu0
    %1549 = vmatprep.mubr.f32.mxu0 0.0
    %1550 = vmatmul.mubr.f32.gmra.mrb[0].mxu0 %v1074
    %v1551 = vpop.f32.mrb[0].mxu0
    %v1552 = vadd.f32 0.0, %v1551
    %v1553 = vpop.f32.mrb[0].mxu0
    %1554 = vmatprep.mubr.f32.mxu0 0.0
    %1555 = vmatmul.mubr.f32.gmra.mrb[0].mxu0 %v1077
    %v1556 = vpop.f32.mrb[0].mxu0
    %v1557 = vadd.f32 0.0, %v1556
    %v1558 = vpop.f32.mrb[0].mxu0
    %1559 = vdwg.mxu0
    %s1560 = scalar_lea.vmem %s6, 520
    %v1561 = vld [vmem:[%s1560] sm:$0xff]
    %v1562 = vld [vmem:[%s1560 + $0x8] sm:$0xff]
    %v1563 = vld [vmem:[%s1560 + $0x10] sm:$0xff]
    %v1564 = vld [vmem:[%s1560 + $0x18] sm:$0xff]
    %v1565 = vld [vmem:[%s1560 + $0x20] sm:$0xff]
    %v1566 = vld [vmem:[%s1560 + $0x28] sm:$0xff]
    %v1567 = vld [vmem:[%s1560 + $0x30] sm:$0xff]
    %v1568 = vld [vmem:[%s1560 + $0x38] sm:$0xff]
    %v1569 = vld [vmem:[%s1560 + $0x40] sm:$0xff]
    %v1570 = vld [vmem:[%s1560 + $0x48] sm:$0xff]
    %v1571 = vld [vmem:[%s1560 + $0x50] sm:$0xff]
    %v1572 = vld [vmem:[%s1560 + $0x58] sm:$0xff]
    %v1573 = vld [vmem:[%s1560 + $0x60] sm:$0xff]
    %1574 = vmatprep.subr.mxu0 0.0
    %1575 = vmatpush1.msra.mxu0 %v1561
    %1576 = vmatprep.subr.mxu0 0.0
    %1577 = vmatpush1.msra.mxu0 %v1562
    %1578 = vmatprep.subr.mxu0 0.0
    %1579 = vmatpush1.msra.mxu0 %v1563
    %1580 = vmatprep.subr.mxu0 0.0
    %1581 = vmatpush1.msra.mxu0 %v1564
    %1582 = vmatprep.subr.mxu0 0.0
    %1583 = vmatpush1.msra.mxu0 %v1565
    %1584 = vmatprep.subr.mxu0 0.0
    %1585 = vmatpush1.msra.mxu0 %v1566
    %1586 = vmatprep.subr.mxu0 0.0
    %1587 = vmatpush1.msra.mxu0 %v1567
    %1588 = vmatprep.subr.mxu0 0.0
    %1589 = vmatpush1.msra.mxu0 %v1568
    %1590 = vmatprep.subr.mxu0 0.0
    %1591 = vmatpush1.msra.mxu0 %v1569
    %1592 = vmatprep.subr.mxu0 0.0
    %1593 = vmatpush1.msra.mxu0 %v1570
    %1594 = vmatprep.subr.mxu0 0.0
    %1595 = vmatpush1.msra.mxu0 %v1571
    %1596 = vmatprep.subr.mxu0 0.0
    %1597 = vmatpush1.msra.mxu0 %v1572
    %1598 = vmatprep.subr.mxu0 0.0
    %1599 = vmatpush1.msra.mxu0 %v1573
    %1600 = vmatprep.subr.mxu0 0.0
    %1601 = vmatpush1.msra.mxu0 0.0
    %1602 = vmatprep.subr.mxu0 0.0
    %1603 = vmatpush1.msra.mxu0 0.0
    %1604 = vmatprep.subr.mxu0 0.0
    %1605 = vmatpush1.msra.mxu0 0.0
    %1606 = vmatprep.subr.mxu0 0.0
    %1607 = vmatpush1.msra.mxu0 0.0
    %1608 = vmatprep.subr.mxu0 0.0
    %1609 = vmatpush1.msra.mxu0 0.0
    %1610 = vmatprep.subr.mxu0 0.0
    %1611 = vmatpush1.msra.mxu0 0.0
    %1612 = vmatprep.subr.mxu0 0.0
    %1613 = vmatpush1.msra.mxu0 0.0
    %1614 = vmatprep.subr.mxu0 0.0
    %1615 = vmatpush1.msra.mxu0 0.0
    %1616 = vmatprep.subr.mxu0 0.0
    %1617 = vmatpush1.msra.mxu0 0.0
    %1618 = vmatprep.subr.mxu0 0.0
    %1619 = vmatpush1.msra.mxu0 0.0
    %1620 = vmatprep.subr.mxu0 0.0
    %1621 = vmatpush1.msra.mxu0 0.0
    %1622 = vmatprep.subr.mxu0 0.0
    %1623 = vmatpush1.msra.mxu0 0.0
    %1624 = vmatprep.subr.mxu0 0.0
    %1625 = vmatpush1.msra.mxu0 0.0
    %1626 = vmatprep.subr.mxu0 0.0
    %1627 = vmatpush1.msra.mxu0 0.0
    %1628 = vmatprep.subr.mxu0 0.0
    %1629 = vmatpush1.msra.mxu0 0.0
    %1630 = vmatprep.subr.mxu0 0.0
    %1631 = vmatpush1.msra.mxu0 0.0
    %1632 = vmatprep.subr.mxu0 0.0
    %1633 = vmatpush1.msra.mxu0 0.0
    %1634 = vmatprep.subr.mxu0 0.0
    %1635 = vmatpush1.msra.mxu0 0.0
    %1636 = vmatprep.subr.mxu0 0.0
    %1637 = vmatpush1.msra.mxu0 0.0
    %1638 = vmatprep.mubr.f32.mxu0 0.0
    %1639 = vmatmul.mubr.f32.gmra.mrb[0].mxu0 %v1068
    %v1640 = vpop.f32.mrb[0].mxu0
    %v1641 = vadd.f32 0.0, %v1640
    %v1642 = vpop.f32.mrb[0].mxu0
    %1643 = vmatprep.mubr.f32.mxu0 0.0
    %1644 = vmatmul.mubr.f32.gmra.mrb[0].mxu0 %v1071
    %v1645 = vpop.f32.mrb[0].mxu0
    %v1646 = vadd.f32 0.0, %v1645
    %v1647 = vpop.f32.mrb[0].mxu0
    %1648 = vmatprep.mubr.f32.mxu0 0.0
    %1649 = vmatmul.mubr.f32.gmra.mrb[0].mxu0 %v1074
    %v1650 = vpop.f32.mrb[0].mxu0
    %v1651 = vadd.f32 0.0, %v1650
    %v1652 = vpop.f32.mrb[0].mxu0
    %1653 = vmatprep.mubr.f32.mxu0 0.0
    %1654 = vmatmul.mubr.f32.gmra.mrb[0].mxu0 %v1077
    %v1655 = vpop.f32.mrb[0].mxu0
    %v1656 = vadd.f32 0.0, %v1655
    %v1657 = vpop.f32.mrb[0].mxu0
    %1658 = vdwg.mxu0
    %v1663 = vrot.slane %v1245, 6
    %v1664 = vrot.slane %v1250, 6
    %v1665 = vsel %vm469, %v1663, %v1664
    %v1666 = vrot.slane %v1255, 6
    %v1667 = vsel %vm469, %v1664, %v1666
    %v1668 = vrot.slane %v1260, 6
    %v1669 = vsel %vm469, %v1666, %v1668
    %v1678 = vrot.slane %v1344, 4
    %v1679 = vrot.slane %v1349, 4
    %v1680 = vsel %vm471, %v1678, %v1679
    %v1681 = vrot.slane %v1354, 4
    %v1682 = vsel %vm471, %v1679, %v1681
    %v1683 = vrot.slane %v1359, 4
    %v1684 = vsel %vm471, %v1681, %v1683
    %v1693 = vrot.slane %v1443, 2
    %v1694 = vrot.slane %v1448, 2
    %v1695 = vsel %vm473, %v1693, %v1694
    %v1696 = vrot.slane %v1453, 2
    %v1697 = vsel %vm473, %v1694, %v1696
    %v1698 = vrot.slane %v1458, 2
    %v1699 = vsel %vm473, %v1696, %v1698
    %v1708 = vrot.slane %v1641, 6
    %v1709 = vrot.slane %v1646, 6
    %v1710 = vsel %vm469, %v1708, %v1709
    %v1711 = vrot.slane %v1651, 6
    %v1712 = vsel %vm469, %v1709, %v1711
    %v1713 = vrot.slane %v1656, 6
    %v1714 = vsel %vm469, %v1711, %v1713
    %v1718 = vsel %vm469, %v1161, %v1663
    %v1719 = vsel %vm471, %v1669, %v1678
    %v1720 = vsel %vm473, %v1684, %v1693
    %v1721 = vsel %vm469, %v1557, %v1708
    %v1722 = vld [vmem:[%s7] sm:$0xff]
    %v1723 = vld [vmem:[%s7 + $0x8] sm:$0xff]
    %v1724 = vld [vmem:[%s7 + $0x10] sm:$0xff]
    %v1725 = vld [vmem:[%s7 + $0x18] sm:$0xff]
    %v1726 = vld [vmem:[%s7 + $0x20] sm:$0xff]
    %v1727 = vld [vmem:[%s7 + $0x28] sm:$0xff]
    %v1728 = vld [vmem:[%s7 + $0x30] sm:$0xff]
    %v1729 = vld [vmem:[%s7 + $0x38] sm:$0xff]
    %v1730 = vld [vmem:[%s7 + $0x40] sm:$0xff]
    %v1731 = vld [vmem:[%s7 + $0x48] sm:$0xff]
    %v1732 = vld [vmem:[%s7 + $0x50] sm:$0xff]
    %v1733 = vld [vmem:[%s7 + $0x58] sm:$0xff]
    %v1734 = vld [vmem:[%s7 + $0x60] sm:$0xff]
    %v1735 = vld [vmem:[%s7 + $0x68] sm:$0xff]
    %v1736 = vld [vmem:[%s7 + $0x70] sm:$0xf]
    %v1737 = vld [vmem:[%s7 + $0x78] sm:$0xf]
    %v1738 = vld [vmem:[%s8] sm:$0x1]
    %v1740 = vlaneseq
    %v1741 = vshrl.u32 %v1740, 7
    %v1742 = vsub.s32 0, %v1741
    %v1743 = vrot.slane %v1738, %v1742
    %vm1745 = vcmask 228352
    %v1747 = vsel %vm1745, %v1723, 0
    %v1750 = vsel %vm1745, %v1725, 0
    %v1753 = vsel %vm1745, %v1727, 0
    %v1756 = vsel %vm1745, %v1729, 0
    %v1759 = vsel %vm1745, %v1731, 0
    %v1762 = vsel %vm1745, %v1733, 0
    %v1765 = vsel %vm1745, %v1735, 0
    %v1768 = vsel %vm1745, %v1737, 0
    %v1770 = vsel %vm471, %v1714, 0
    %1772 = vmatprep.subr.mxu0 0.0
    %1773 = vmatpush1.msra.mxu0 %v1146
    %1774 = vmatprep.subr.mxu0 0.0
    %1775 = vmatpush1.msra.mxu0 %v1151
    %1776 = vmatprep.subr.mxu0 0.0
    %1777 = vmatpush1.msra.mxu0 %v1156
    %1778 = vmatprep.subr.mxu0 0.0
    %1779 = vmatpush1.msra.mxu0 %v1718
    %1780 = vmatprep.subr.mxu0 0.0
    %1781 = vmatpush1.msra.mxu0 %v1665
    %1782 = vmatprep.subr.mxu0 0.0
    %1783 = vmatpush1.msra.mxu0 %v1667
    %1784 = vmatprep.subr.mxu0 0.0
    %1785 = vmatpush1.msra.mxu0 %v1719
    %1786 = vmatprep.subr.mxu0 0.0
    %1787 = vmatpush1.msra.mxu0 %v1680
    %1788 = vmatprep.subr.mxu0 0.0
    %1789 = vmatpush1.msra.mxu0 %v1682
    %1790 = vmatprep.subr.mxu0 0.0
    %1791 = vmatpush1.msra.mxu0 %v1720
    %1792 = vmatprep.subr.mxu0 0.0
    %1793 = vmatpush1.msra.mxu0 %v1695
    %1794 = vmatprep.subr.mxu0 0.0
    %1795 = vmatpush1.msra.mxu0 %v1697
    %1796 = vmatprep.subr.mxu0 0.0
    %1797 = vmatpush1.msra.mxu0 %v1699
    %1798 = vmatprep.subr.mxu0 0.0
    %1799 = vmatpush1.msra.mxu0 %v1542
    %1800 = vmatprep.subr.mxu0 0.0
    %1801 = vmatpush1.msra.mxu0 %v1547
    %1802 = vmatprep.subr.mxu0 0.0
    %1803 = vmatpush1.msra.mxu0 %v1552
    %1804 = vmatprep.subr.mxu0 0.0
    %1805 = vmatpush1.msra.mxu0 %v1721
    %1806 = vmatprep.subr.mxu0 0.0
    %1807 = vmatpush1.msra.mxu0 %v1710
    %1808 = vmatprep.subr.mxu0 0.0
    %1809 = vmatpush1.msra.mxu0 %v1712
    %1810 = vmatprep.subr.mxu0 0.0
    %1811 = vmatpush1.msra.mxu0 %v1770
    %1812 = vmatprep.subr.mxu0 0.0
    %1813 = vmatpush1.msra.mxu0 0.0
    %1814 = vmatprep.subr.mxu0 0.0
    %1815 = vmatpush1.msra.mxu0 0.0
    %1816 = vmatprep.subr.mxu0 0.0
    %1817 = vmatpush1.msra.mxu0 0.0
    %1818 = vmatprep.subr.mxu0 0.0
    %1819 = vmatpush1.msra.mxu0 0.0
    %1820 = vmatprep.subr.mxu0 0.0
    %1821 = vmatpush1.msra.mxu0 0.0
    %1822 = vmatprep.subr.mxu0 0.0
    %1823 = vmatpush1.msra.mxu0 0.0
    %1824 = vmatprep.subr.mxu0 0.0
    %1825 = vmatpush1.msra.mxu0 0.0
    %1826 = vmatprep.subr.mxu0 0.0
    %1827 = vmatpush1.msra.mxu0 0.0
    %1828 = vmatprep.subr.mxu0 0.0
    %1829 = vmatpush1.msra.mxu0 0.0
    %1830 = vmatprep.subr.mxu0 0.0
    %1831 = vmatpush1.msra.mxu0 0.0
    %1832 = vmatprep.subr.mxu0 0.0
    %1833 = vmatpush1.msra.mxu0 0.0
    %1834 = vmatprep.subr.mxu0 0.0
    %1835 = vmatpush1.msra.mxu0 0.0
    %1836 = vmatprep.mubr.f32.mxu0 %v1747
    %1837 = vmatmul.mubr.f32.gmra.mrb[0].mxu0 %v1722
    %v1838 = vpop.f32.mrb[0].mxu0
    %v1839 = vadd.f32 %v1743, %v1838
    %v1840 = vpop.f32.mrb[0].mxu0
    %1841 = vmatprep.mubr.f32.mxu0 %v1750
    %1842 = vmatmul.mubr.f32.gmra.mrb[0].mxu0 %v1724
    %v1843 = vpop.f32.mrb[0].mxu0
    %v1844 = vadd.f32 %v1743, %v1843
    %v1845 = vpop.f32.mrb[0].mxu0
    %1846 = vmatprep.mubr.f32.mxu0 %v1753
    %1847 = vmatmul.mubr.f32.gmra.mrb[0].mxu0 %v1726
    %v1848 = vpop.f32.mrb[0].mxu0
    %v1849 = vadd.f32 %v1743, %v1848
    %v1850 = vpop.f32.mrb[0].mxu0
    %1851 = vmatprep.mubr.f32.mxu0 %v1756
    %1852 = vmatmul.mubr.f32.gmra.mrb[0].mxu0 %v1728
    %v1853 = vpop.f32.mrb[0].mxu0
    %v1854 = vadd.f32 %v1743, %v1853
    %v1855 = vpop.f32.mrb[0].mxu0
    %1856 = vmatprep.mubr.f32.mxu0 %v1759
    %1857 = vmatmul.mubr.f32.gmra.mrb[0].mxu0 %v1730
    %v1858 = vpop.f32.mrb[0].mxu0
    %v1859 = vadd.f32 %v1743, %v1858
    %v1860 = vpop.f32.mrb[0].mxu0
    %1861 = vmatprep.mubr.f32.mxu0 %v1762
    %1862 = vmatmul.mubr.f32.gmra.mrb[0].mxu0 %v1732
    %v1863 = vpop.f32.mrb[0].mxu0
    %v1864 = vadd.f32 %v1743, %v1863
    %v1865 = vpop.f32.mrb[0].mxu0
    %1866 = vmatprep.mubr.f32.mxu0 %v1765
    %1867 = vmatmul.mubr.f32.gmra.mrb[0].mxu0 %v1734
    %v1868 = vpop.f32.mrb[0].mxu0
    %v1869 = vadd.f32 %v1743, %v1868
    %v1870 = vpop.f32.mrb[0].mxu0
    %1871 = vmatprep.mubr.f32.mxu0 %v1768
    %1872 = vmatmul.mubr.f32.gmra.mrb[0].mxu0 %v1736
    %v1873 = vpop.f32.mrb[0].mxu0
    %v1874 = vadd.f32 %v1743, %v1873
    %v1875 = vpop.f32.mrb[0].mxu0
    %1876 = vdwg.mxu0
    %v1877 = vmax.f32 %v1839, 0.0
    %v1878 = vmax.f32 %v1844, 0.0
    %v1879 = vmax.f32 %v1849, 0.0
    %v1880 = vmax.f32 %v1854, 0.0
    %v1881 = vmax.f32 %v1859, 0.0
    %v1882 = vmax.f32 %v1864, 0.0
    %v1883 = vmax.f32 %v1869, 0.0
    %v1884 = vmax.f32 %v1874, 0.0
    %v1885 = vld [vmem:[%s9] sm:$0xff]
    %v1886 = vld [vmem:[%s9 + $0x8] sm:$0xff]
    %v1887 = vld [vmem:[%s9 + $0x10] sm:$0xff]
    %v1888 = vld [vmem:[%s9 + $0x18] sm:$0xff]
    %v1889 = vld [vmem:[%s9 + $0x20] sm:$0xff]
    %v1890 = vld [vmem:[%s9 + $0x28] sm:$0xff]
    %v1891 = vld [vmem:[%s9 + $0x30] sm:$0xff]
    %v1892 = vld [vmem:[%s9 + $0x38] sm:$0xff]
    %v1893 = vld [vmem:[%s9 + $0x40] sm:$0xff]
    %v1894 = vld [vmem:[%s9 + $0x48] sm:$0xff]
    %v1895 = vld [vmem:[%s9 + $0x50] sm:$0xff]
    %v1896 = vld [vmem:[%s9 + $0x58] sm:$0xff]
    %v1897 = vld [vmem:[%s9 + $0x60] sm:$0xff]
    %v1898 = vld [vmem:[%s9 + $0x68] sm:$0xff]
    %v1899 = vld [vmem:[%s9 + $0x70] sm:$0xff]
    %v1900 = vld [vmem:[%s9 + $0x78] sm:$0xff]
    %v1901 = vld [vmem:[%s9 + $0x80] sm:$0xff]
    %v1902 = vld [vmem:[%s9 + $0x88] sm:$0xff]
    %v1903 = vld [vmem:[%s9 + $0x90] sm:$0xff]
    %v1904 = vld [vmem:[%s9 + $0x98] sm:$0xff]
    %v1905 = vld [vmem:[%s9 + $0xa0] sm:$0xff]
    %v1906 = vld [vmem:[%s9 + $0xa8] sm:$0xff]
    %v1907 = vld [vmem:[%s9 + $0xb0] sm:$0xff]
    %v1908 = vld [vmem:[%s9 + $0xb8] sm:$0xff]
    %v1909 = vld [vmem:[%s9 + $0xc0] sm:$0xff]
    %v1910 = vld [vmem:[%s9 + $0xc8] sm:$0xff]
    %v1911 = vld [vmem:[%s9 + $0xd0] sm:$0xff]
    %v1912 = vld [vmem:[%s9 + $0xd8] sm:$0xff]
    %v1913 = vld [vmem:[%s9 + $0xe0] sm:$0xff]
    %v1914 = vld [vmem:[%s9 + $0xe8] sm:$0xff]
    %vm1915 = vcmask 982016
    %v1917 = vsel %vm1915, %v1877, 0
    %v1920 = vsel %vm1915, %v1878, 0
    %v1923 = vsel %vm1915, %v1879, 0
    %v1926 = vsel %vm1915, %v1880, 0
    %v1929 = vsel %vm1915, %v1881, 0
    %v1932 = vsel %vm1915, %v1882, 0
    %v1935 = vsel %vm1915, %v1883, 0
    %v1938 = vsel %vm1915, %v1884, 0
    %1940 = vmatprep.subr.mxu0 %v1886
    %1941 = vmatpush1.msra.mxu0 %v1885
    %1942 = vmatprep.subr.mxu0 %v1888
    %1943 = vmatpush1.msra.mxu0 %v1887
    %1944 = vmatprep.subr.mxu0 %v1890
    %1945 = vmatpush1.msra.mxu0 %v1889
    %1946 = vmatprep.subr.mxu0 %v1892
    %1947 = vmatpush1.msra.mxu0 %v1891
    %1948 = vmatprep.subr.mxu0 %v1894
    %1949 = vmatpush1.msra.mxu0 %v1893
    %1950 = vmatprep.subr.mxu0 %v1896
    %1951 = vmatpush1.msra.mxu0 %v1895
    %1952 = vmatprep.subr.mxu0 %v1898
    %1953 = vmatpush1.msra.mxu0 %v1897
    %1954 = vmatprep.subr.mxu0 %v1900
    %1955 = vmatpush1.msra.mxu0 %v1899
    %1956 = vmatprep.subr.mxu0 %v1902
    %1957 = vmatpush1.msra.mxu0 %v1901
    %1958 = vmatprep.subr.mxu0 %v1904
    %1959 = vmatpush1.msra.mxu0 %v1903
    %1960 = vmatprep.subr.mxu0 %v1906
    %1961 = vmatpush1.msra.mxu0 %v1905
    %1962 = vmatprep.subr.mxu0 %v1908
    %1963 = vmatpush1.msra.mxu0 %v1907
    %1964 = vmatprep.subr.mxu0 %v1910
    %1965 = vmatpush1.msra.mxu0 %v1909
    %1966 = vmatprep.subr.mxu0 %v1912
    %1967 = vmatpush1.msra.mxu0 %v1911
    %1968 = vmatprep.subr.mxu0 %v1914
    %1969 = vmatpush1.msra.mxu0 %v1913
    %1970 = vmatprep.subr.mxu0 0.0
    %1971 = vmatpush1.msra.mxu0 0.0
    %1972 = vmatprep.subr.mxu0 0.0
    %1973 = vmatpush1.msra.mxu0 0.0
    %1974 = vmatprep.subr.mxu0 0.0
    %1975 = vmatpush1.msra.mxu0 0.0
    %1976 = vmatprep.subr.mxu0 0.0
    %1977 = vmatpush1.msra.mxu0 0.0
    %1978 = vmatprep.subr.mxu0 0.0
    %1979 = vmatpush1.msra.mxu0 0.0
    %1980 = vmatprep.subr.mxu0 0.0
    %1981 = vmatpush1.msra.mxu0 0.0
    %1982 = vmatprep.subr.mxu0 0.0
    %1983 = vmatpush1.msra.mxu0 0.0
    %1984 = vmatprep.subr.mxu0 0.0
    %1985 = vmatpush1.msra.mxu0 0.0
    %1986 = vmatprep.subr.mxu0 0.0
    %1987 = vmatpush1.msra.mxu0 0.0
    %1988 = vmatprep.subr.mxu0 0.0
    %1989 = vmatpush1.msra.mxu0 0.0
    %1990 = vmatprep.subr.mxu0 0.0
    %1991 = vmatpush1.msra.mxu0 0.0
    %1992 = vmatprep.subr.mxu0 0.0
    %1993 = vmatpush1.msra.mxu0 0.0
    %1994 = vmatprep.subr.mxu0 0.0
    %1995 = vmatpush1.msra.mxu0 0.0
    %1996 = vmatprep.subr.mxu0 0.0
    %1997 = vmatpush1.msra.mxu0 0.0
    %1998 = vmatprep.subr.mxu0 0.0
    %1999 = vmatpush1.msra.mxu0 0.0
    %2000 = vmatprep.subr.mxu0 0.0
    %2001 = vmatpush1.msra.mxu0 0.0
    %2002 = vmatprep.subr.mxu0 0.0
    %2003 = vmatpush1.msra.mxu0 0.0
    %2004 = vmatprep.mubr.f32.mxu0 0.0
    %2005 = vmatmul.mubr.f32.gmra.mrb[0].mxu0 %v1917
    %v2006 = vpop.f32.mrb[0].mxu0
    %v2007 = vadd.f32 0.0, %v2006
    %v2008 = vpop.f32.mrb[0].mxu0
    %v2009 = vadd.f32 0.0, %v2008
    %2010 = vmatprep.mubr.f32.mxu0 0.0
    %2011 = vmatmul.mubr.f32.gmra.mrb[0].mxu0 %v1920
    %v2012 = vpop.f32.mrb[0].mxu0
    %v2013 = vadd.f32 0.0, %v2012
    %v2014 = vpop.f32.mrb[0].mxu0
    %v2015 = vadd.f32 0.0, %v2014
    %2016 = vmatprep.mubr.f32.mxu0 0.0
    %2017 = vmatmul.mubr.f32.gmra.mrb[0].mxu0 %v1923
    %v2018 = vpop.f32.mrb[0].mxu0
    %v2019 = vadd.f32 0.0, %v2018
    %v2020 = vpop.f32.mrb[0].mxu0
    %v2021 = vadd.f32 0.0, %v2020
    %2022 = vmatprep.mubr.f32.mxu0 0.0
    %2023 = vmatmul.mubr.f32.gmra.mrb[0].mxu0 %v1926
    %v2024 = vpop.f32.mrb[0].mxu0
    %v2025 = vadd.f32 0.0, %v2024
    %v2026 = vpop.f32.mrb[0].mxu0
    %v2027 = vadd.f32 0.0, %v2026
    %2028 = vmatprep.mubr.f32.mxu0 0.0
    %2029 = vmatmul.mubr.f32.gmra.mrb[0].mxu0 %v1929
    %v2030 = vpop.f32.mrb[0].mxu0
    %v2031 = vadd.f32 0.0, %v2030
    %v2032 = vpop.f32.mrb[0].mxu0
    %v2033 = vadd.f32 0.0, %v2032
    %2034 = vmatprep.mubr.f32.mxu0 0.0
    %2035 = vmatmul.mubr.f32.gmra.mrb[0].mxu0 %v1932
    %v2036 = vpop.f32.mrb[0].mxu0
    %v2037 = vadd.f32 0.0, %v2036
    %v2038 = vpop.f32.mrb[0].mxu0
    %v2039 = vadd.f32 0.0, %v2038
    %2040 = vmatprep.mubr.f32.mxu0 0.0
    %2041 = vmatmul.mubr.f32.gmra.mrb[0].mxu0 %v1935
    %v2042 = vpop.f32.mrb[0].mxu0
    %v2043 = vadd.f32 0.0, %v2042
    %v2044 = vpop.f32.mrb[0].mxu0
    %v2045 = vadd.f32 0.0, %v2044
    %2046 = vmatprep.mubr.f32.mxu0 0.0
    %2047 = vmatmul.mubr.f32.gmra.mrb[0].mxu0 %v1938
    %v2048 = vpop.f32.mrb[0].mxu0
    %v2049 = vadd.f32 0.0, %v2048
    %v2050 = vpop.f32.mrb[0].mxu0
    %v2051 = vadd.f32 0.0, %v2050
    %2052 = vdwg.mxu0
    %s2053 = scalar_lea.vmem %s9, 240
    %v2054 = vld [vmem:[%s2053] sm:$0xff]
    %v2055 = vld [vmem:[%s2053 + $0x8] sm:$0xff]
    %v2056 = vld [vmem:[%s2053 + $0x10] sm:$0xff]
    %v2057 = vld [vmem:[%s2053 + $0x18] sm:$0xff]
    %v2058 = vld [vmem:[%s2053 + $0x20] sm:$0xff]
    %v2059 = vld [vmem:[%s2053 + $0x28] sm:$0xff]
    %v2060 = vld [vmem:[%s2053 + $0x30] sm:$0xff]
    %v2061 = vld [vmem:[%s2053 + $0x38] sm:$0xff]
    %v2062 = vld [vmem:[%s2053 + $0x40] sm:$0xff]
    %v2063 = vld [vmem:[%s2053 + $0x48] sm:$0xff]
    %v2064 = vld [vmem:[%s2053 + $0x50] sm:$0xff]
    %v2065 = vld [vmem:[%s2053 + $0x58] sm:$0xff]
    %v2066 = vld [vmem:[%s2053 + $0x60] sm:$0xff]
    %v2067 = vld [vmem:[%s2053 + $0x68] sm:$0xff]
    %v2068 = vld [vmem:[%s2053 + $0x70] sm:$0xff]
    %v2069 = vld [vmem:[%s2053 + $0x78] sm:$0xff]
    %v2070 = vld [vmem:[%s2053 + $0x80] sm:$0xff]
    %v2071 = vld [vmem:[%s2053 + $0x88] sm:$0xff]
    %v2072 = vld [vmem:[%s2053 + $0x90] sm:$0xff]
    %v2073 = vld [vmem:[%s2053 + $0x98] sm:$0xff]
    %v2074 = vld [vmem:[%s2053 + $0xa0] sm:$0xff]
    %v2075 = vld [vmem:[%s2053 + $0xa8] sm:$0xff]
    %v2076 = vld [vmem:[%s2053 + $0xb0] sm:$0xff]
    %v2077 = vld [vmem:[%s2053 + $0xb8] sm:$0xff]
    %v2078 = vld [vmem:[%s2053 + $0xc0] sm:$0xff]
    %v2079 = vld [vmem:[%s2053 + $0xc8] sm:$0xff]
    %v2080 = vld [vmem:[%s2053 + $0xd0] sm:$0xff]
    %v2081 = vld [vmem:[%s2053 + $0xd8] sm:$0xff]
    %v2082 = vld [vmem:[%s2053 + $0xe0] sm:$0xff]
    %v2083 = vld [vmem:[%s2053 + $0xe8] sm:$0xff]
    %2084 = vmatprep.subr.mxu0 %v2055
    %2085 = vmatpush1.msra.mxu0 %v2054
    %2086 = vmatprep.subr.mxu0 %v2057
    %2087 = vmatpush1.msra.mxu0 %v2056
    %2088 = vmatprep.subr.mxu0 %v2059
    %2089 = vmatpush1.msra.mxu0 %v2058
    %2090 = vmatprep.subr.mxu0 %v2061
    %2091 = vmatpush1.msra.mxu0 %v2060
    %2092 = vmatprep.subr.mxu0 %v2063
    %2093 = vmatpush1.msra.mxu0 %v2062
    %2094 = vmatprep.subr.mxu0 %v2065
    %2095 = vmatpush1.msra.mxu0 %v2064
    %2096 = vmatprep.subr.mxu0 %v2067
    %2097 = vmatpush1.msra.mxu0 %v2066
    %2098 = vmatprep.subr.mxu0 %v2069
    %2099 = vmatpush1.msra.mxu0 %v2068
    %2100 = vmatprep.subr.mxu0 %v2071
    %2101 = vmatpush1.msra.mxu0 %v2070
    %2102 = vmatprep.subr.mxu0 %v2073
    %2103 = vmatpush1.msra.mxu0 %v2072
    %2104 = vmatprep.subr.mxu0 %v2075
    %2105 = vmatpush1.msra.mxu0 %v2074
    %2106 = vmatprep.subr.mxu0 %v2077
    %2107 = vmatpush1.msra.mxu0 %v2076
    %2108 = vmatprep.subr.mxu0 %v2079
    %2109 = vmatpush1.msra.mxu0 %v2078
    %2110 = vmatprep.subr.mxu0 %v2081
    %2111 = vmatpush1.msra.mxu0 %v2080
    %2112 = vmatprep.subr.mxu0 %v2083
    %2113 = vmatpush1.msra.mxu0 %v2082
    %2114 = vmatprep.subr.mxu0 0.0
    %2115 = vmatpush1.msra.mxu0 0.0
    %2116 = vmatprep.subr.mxu0 0.0
    %2117 = vmatpush1.msra.mxu0 0.0
    %2118 = vmatprep.subr.mxu0 0.0
    %2119 = vmatpush1.msra.mxu0 0.0
    %2120 = vmatprep.subr.mxu0 0.0
    %2121 = vmatpush1.msra.mxu0 0.0
    %2122 = vmatprep.subr.mxu0 0.0
    %2123 = vmatpush1.msra.mxu0 0.0
    %2124 = vmatprep.subr.mxu0 0.0
    %2125 = vmatpush1.msra.mxu0 0.0
    %2126 = vmatprep.subr.mxu0 0.0
    %2127 = vmatpush1.msra.mxu0 0.0
    %2128 = vmatprep.subr.mxu0 0.0
    %2129 = vmatpush1.msra.mxu0 0.0
    %2130 = vmatprep.subr.mxu0 0.0
    %2131 = vmatpush1.msra.mxu0 0.0
    %2132 = vmatprep.subr.mxu0 0.0
    %2133 = vmatpush1.msra.mxu0 0.0
    %2134 = vmatprep.subr.mxu0 0.0
    %2135 = vmatpush1.msra.mxu0 0.0
    %2136 = vmatprep.subr.mxu0 0.0
    %2137 = vmatpush1.msra.mxu0 0.0
    %2138 = vmatprep.subr.mxu0 0.0
    %2139 = vmatpush1.msra.mxu0 0.0
    %2140 = vmatprep.subr.mxu0 0.0
    %2141 = vmatpush1.msra.mxu0 0.0
    %2142 = vmatprep.subr.mxu0 0.0
    %2143 = vmatpush1.msra.mxu0 0.0
    %2144 = vmatprep.subr.mxu0 0.0
    %2145 = vmatpush1.msra.mxu0 0.0
    %2146 = vmatprep.subr.mxu0 0.0
    %2147 = vmatpush1.msra.mxu0 0.0
    %2148 = vmatprep.mubr.f32.mxu0 0.0
    %2149 = vmatmul.mubr.f32.gmra.mrb[0].mxu0 %v1917
    %v2150 = vpop.f32.mrb[0].mxu0
    %v2151 = vadd.f32 0.0, %v2150
    %v2152 = vpop.f32.mrb[0].mxu0
    %v2153 = vadd.f32 0.0, %v2152
    %2154 = vmatprep.mubr.f32.mxu0 0.0
    %2155 = vmatmul.mubr.f32.gmra.mrb[0].mxu0 %v1920
    %v2156 = vpop.f32.mrb[0].mxu0
    %v2157 = vadd.f32 0.0, %v2156
    %v2158 = vpop.f32.mrb[0].mxu0
    %v2159 = vadd.f32 0.0, %v2158
    %2160 = vmatprep.mubr.f32.mxu0 0.0
    %2161 = vmatmul.mubr.f32.gmra.mrb[0].mxu0 %v1923
    %v2162 = vpop.f32.mrb[0].mxu0
    %v2163 = vadd.f32 0.0, %v2162
    %v2164 = vpop.f32.mrb[0].mxu0
    %v2165 = vadd.f32 0.0, %v2164
    %2166 = vmatprep.mubr.f32.mxu0 0.0
    %2167 = vmatmul.mubr.f32.gmra.mrb[0].mxu0 %v1926
    %v2168 = vpop.f32.mrb[0].mxu0
    %v2169 = vadd.f32 0.0, %v2168
    %v2170 = vpop.f32.mrb[0].mxu0
    %v2171 = vadd.f32 0.0, %v2170
    %2172 = vmatprep.mubr.f32.mxu0 0.0
    %2173 = vmatmul.mubr.f32.gmra.mrb[0].mxu0 %v1929
    %v2174 = vpop.f32.mrb[0].mxu0
    %v2175 = vadd.f32 0.0, %v2174
    %v2176 = vpop.f32.mrb[0].mxu0
    %v2177 = vadd.f32 0.0, %v2176
    %2178 = vmatprep.mubr.f32.mxu0 0.0
    %2179 = vmatmul.mubr.f32.gmra.mrb[0].mxu0 %v1932
    %v2180 = vpop.f32.mrb[0].mxu0
    %v2181 = vadd.f32 0.0, %v2180
    %v2182 = vpop.f32.mrb[0].mxu0
    %v2183 = vadd.f32 0.0, %v2182
    %2184 = vmatprep.mubr.f32.mxu0 0.0
    %2185 = vmatmul.mubr.f32.gmra.mrb[0].mxu0 %v1935
    %v2186 = vpop.f32.mrb[0].mxu0
    %v2187 = vadd.f32 0.0, %v2186
    %v2188 = vpop.f32.mrb[0].mxu0
    %v2189 = vadd.f32 0.0, %v2188
    %2190 = vmatprep.mubr.f32.mxu0 0.0
    %2191 = vmatmul.mubr.f32.gmra.mrb[0].mxu0 %v1938
    %v2192 = vpop.f32.mrb[0].mxu0
    %v2193 = vadd.f32 0.0, %v2192
    %v2194 = vpop.f32.mrb[0].mxu0
    %v2195 = vadd.f32 0.0, %v2194
    %2196 = vdwg.mxu0
    %s2197 = scalar_lea.vmem %s9, 480
    %v2198 = vld [vmem:[%s2197] sm:$0xff]
    %v2199 = vld [vmem:[%s2197 + $0x8] sm:$0xff]
    %v2200 = vld [vmem:[%s2197 + $0x10] sm:$0xff]
    %v2201 = vld [vmem:[%s2197 + $0x18] sm:$0xff]
    %v2202 = vld [vmem:[%s2197 + $0x20] sm:$0xff]
    %v2203 = vld [vmem:[%s2197 + $0x28] sm:$0xff]
    %v2204 = vld [vmem:[%s2197 + $0x30] sm:$0xff]
    %v2205 = vld [vmem:[%s2197 + $0x38] sm:$0xff]
    %v2206 = vld [vmem:[%s2197 + $0x40] sm:$0xff]
    %v2207 = vld [vmem:[%s2197 + $0x48] sm:$0xff]
    %v2208 = vld [vmem:[%s2197 + $0x50] sm:$0xff]
    %v2209 = vld [vmem:[%s2197 + $0x58] sm:$0xff]
    %v2210 = vld [vmem:[%s2197 + $0x60] sm:$0xff]
    %v2211 = vld [vmem:[%s2197 + $0x68] sm:$0xff]
    %v2212 = vld [vmem:[%s2197 + $0x70] sm:$0xff]
    %v2213 = vld [vmem:[%s2197 + $0x78] sm:$0xff]
    %v2214 = vld [vmem:[%s2197 + $0x80] sm:$0xff]
    %v2215 = vld [vmem:[%s2197 + $0x88] sm:$0xff]
    %v2216 = vld [vmem:[%s2197 + $0x90] sm:$0xff]
    %v2217 = vld [vmem:[%s2197 + $0x98] sm:$0xff]
    %v2218 = vld [vmem:[%s2197 + $0xa0] sm:$0xff]
    %v2219 = vld [vmem:[%s2197 + $0xa8] sm:$0xff]
    %v2220 = vld [vmem:[%s2197 + $0xb0] sm:$0xff]
    %v2221 = vld [vmem:[%s2197 + $0xb8] sm:$0xff]
    %v2222 = vld [vmem:[%s2197 + $0xc0] sm:$0xff]
    %v2223 = vld [vmem:[%s2197 + $0xc8] sm:$0xff]
    %v2224 = vld [vmem:[%s2197 + $0xd0] sm:$0xff]
    %v2225 = vld [vmem:[%s2197 + $0xd8] sm:$0xff]
    %v2226 = vld [vmem:[%s2197 + $0xe0] sm:$0xff]
    %v2227 = vld [vmem:[%s2197 + $0xe8] sm:$0xff]
    %2228 = vmatprep.subr.mxu0 %v2199
    %2229 = vmatpush1.msra.mxu0 %v2198
    %2230 = vmatprep.subr.mxu0 %v2201
    %2231 = vmatpush1.msra.mxu0 %v2200
    %2232 = vmatprep.subr.mxu0 %v2203
    %2233 = vmatpush1.msra.mxu0 %v2202
    %2234 = vmatprep.subr.mxu0 %v2205
    %2235 = vmatpush1.msra.mxu0 %v2204
    %2236 = vmatprep.subr.mxu0 %v2207
    %2237 = vmatpush1.msra.mxu0 %v2206
    %2238 = vmatprep.subr.mxu0 %v2209
    %2239 = vmatpush1.msra.mxu0 %v2208
    %2240 = vmatprep.subr.mxu0 %v2211
    %2241 = vmatpush1.msra.mxu0 %v2210
    %2242 = vmatprep.subr.mxu0 %v2213
    %2243 = vmatpush1.msra.mxu0 %v2212
    %2244 = vmatprep.subr.mxu0 %v2215
    %2245 = vmatpush1.msra.mxu0 %v2214
    %2246 = vmatprep.subr.mxu0 %v2217
    %2247 = vmatpush1.msra.mxu0 %v2216
    %2248 = vmatprep.subr.mxu0 %v2219
    %2249 = vmatpush1.msra.mxu0 %v2218
    %2250 = vmatprep.subr.mxu0 %v2221
    %2251 = vmatpush1.msra.mxu0 %v2220
    %2252 = vmatprep.subr.mxu0 %v2223
    %2253 = vmatpush1.msra.mxu0 %v2222
    %2254 = vmatprep.subr.mxu0 %v2225
    %2255 = vmatpush1.msra.mxu0 %v2224
    %2256 = vmatprep.subr.mxu0 %v2227
    %2257 = vmatpush1.msra.mxu0 %v2226
    %2258 = vmatprep.subr.mxu0 0.0
    %2259 = vmatpush1.msra.mxu0 0.0
    %2260 = vmatprep.subr.mxu0 0.0
    %2261 = vmatpush1.msra.mxu0 0.0
    %2262 = vmatprep.subr.mxu0 0.0
    %2263 = vmatpush1.msra.mxu0 0.0
    %2264 = vmatprep.subr.mxu0 0.0
    %2265 = vmatpush1.msra.mxu0 0.0
    %2266 = vmatprep.subr.mxu0 0.0
    %2267 = vmatpush1.msra.mxu0 0.0
    %2268 = vmatprep.subr.mxu0 0.0
    %2269 = vmatpush1.msra.mxu0 0.0
    %2270 = vmatprep.subr.mxu0 0.0
    %2271 = vmatpush1.msra.mxu0 0.0
    %2272 = vmatprep.subr.mxu0 0.0
    %2273 = vmatpush1.msra.mxu0 0.0
    %2274 = vmatprep.subr.mxu0 0.0
    %2275 = vmatpush1.msra.mxu0 0.0
    %2276 = vmatprep.subr.mxu0 0.0
    %2277 = vmatpush1.msra.mxu0 0.0
    %2278 = vmatprep.subr.mxu0 0.0
    %2279 = vmatpush1.msra.mxu0 0.0
    %2280 = vmatprep.subr.mxu0 0.0
    %2281 = vmatpush1.msra.mxu0 0.0
    %2282 = vmatprep.subr.mxu0 0.0
    %2283 = vmatpush1.msra.mxu0 0.0
    %2284 = vmatprep.subr.mxu0 0.0
    %2285 = vmatpush1.msra.mxu0 0.0
    %2286 = vmatprep.subr.mxu0 0.0
    %2287 = vmatpush1.msra.mxu0 0.0
    %2288 = vmatprep.subr.mxu0 0.0
    %2289 = vmatpush1.msra.mxu0 0.0
    %2290 = vmatprep.subr.mxu0 0.0
    %2291 = vmatpush1.msra.mxu0 0.0
    %2292 = vmatprep.mubr.f32.mxu0 0.0
    %2293 = vmatmul.mubr.f32.gmra.mrb[0].mxu0 %v1917
    %v2294 = vpop.f32.mrb[0].mxu0
    %v2295 = vadd.f32 0.0, %v2294
    %v2296 = vpop.f32.mrb[0].mxu0
    %v2297 = vadd.f32 0.0, %v2296
    %2298 = vmatprep.mubr.f32.mxu0 0.0
    %2299 = vmatmul.mubr.f32.gmra.mrb[0].mxu0 %v1920
    %v2300 = vpop.f32.mrb[0].mxu0
    %v2301 = vadd.f32 0.0, %v2300
    %v2302 = vpop.f32.mrb[0].mxu0
    %v2303 = vadd.f32 0.0, %v2302
    %2304 = vmatprep.mubr.f32.mxu0 0.0
    %2305 = vmatmul.mubr.f32.gmra.mrb[0].mxu0 %v1923
    %v2306 = vpop.f32.mrb[0].mxu0
    %v2307 = vadd.f32 0.0, %v2306
    %v2308 = vpop.f32.mrb[0].mxu0
    %v2309 = vadd.f32 0.0, %v2308
    %2310 = vmatprep.mubr.f32.mxu0 0.0
    %2311 = vmatmul.mubr.f32.gmra.mrb[0].mxu0 %v1926
    %v2312 = vpop.f32.mrb[0].mxu0
    %v2313 = vadd.f32 0.0, %v2312
    %v2314 = vpop.f32.mrb[0].mxu0
    %v2315 = vadd.f32 0.0, %v2314
    %2316 = vmatprep.mubr.f32.mxu0 0.0
    %2317 = vmatmul.mubr.f32.gmra.mrb[0].mxu0 %v1929
    %v2318 = vpop.f32.mrb[0].mxu0
    %v2319 = vadd.f32 0.0, %v2318
    %v2320 = vpop.f32.mrb[0].mxu0
    %v2321 = vadd.f32 0.0, %v2320
    %2322 = vmatprep.mubr.f32.mxu0 0.0
    %2323 = vmatmul.mubr.f32.gmra.mrb[0].mxu0 %v1932
    %v2324 = vpop.f32.mrb[0].mxu0
    %v2325 = vadd.f32 0.0, %v2324
    %v2326 = vpop.f32.mrb[0].mxu0
    %v2327 = vadd.f32 0.0, %v2326
    %2328 = vmatprep.mubr.f32.mxu0 0.0
    %2329 = vmatmul.mubr.f32.gmra.mrb[0].mxu0 %v1935
    %v2330 = vpop.f32.mrb[0].mxu0
    %v2331 = vadd.f32 0.0, %v2330
    %v2332 = vpop.f32.mrb[0].mxu0
    %v2333 = vadd.f32 0.0, %v2332
    %2334 = vmatprep.mubr.f32.mxu0 0.0
    %2335 = vmatmul.mubr.f32.gmra.mrb[0].mxu0 %v1938
    %v2336 = vpop.f32.mrb[0].mxu0
    %v2337 = vadd.f32 0.0, %v2336
    %v2338 = vpop.f32.mrb[0].mxu0
    %v2339 = vadd.f32 0.0, %v2338
    %2340 = vdwg.mxu0
    %s2341 = scalar_lea.vmem %s9, 720
    %v2342 = vld [vmem:[%s2341] sm:$0xff]
    %v2343 = vld [vmem:[%s2341 + $0x8] sm:$0xff]
    %v2344 = vld [vmem:[%s2341 + $0x10] sm:$0xff]
    %v2345 = vld [vmem:[%s2341 + $0x18] sm:$0xff]
    %v2346 = vld [vmem:[%s2341 + $0x20] sm:$0xff]
    %v2347 = vld [vmem:[%s2341 + $0x28] sm:$0xff]
    %v2348 = vld [vmem:[%s2341 + $0x30] sm:$0xff]
    %v2349 = vld [vmem:[%s2341 + $0x38] sm:$0xff]
    %v2350 = vld [vmem:[%s2341 + $0x40] sm:$0xff]
    %v2351 = vld [vmem:[%s2341 + $0x48] sm:$0xff]
    %v2352 = vld [vmem:[%s2341 + $0x50] sm:$0xff]
    %v2353 = vld [vmem:[%s2341 + $0x58] sm:$0xff]
    %v2354 = vld [vmem:[%s2341 + $0x60] sm:$0xff]
    %v2355 = vld [vmem:[%s2341 + $0x68] sm:$0xff]
    %v2356 = vld [vmem:[%s2341 + $0x70] sm:$0xff]
    %v2357 = vld [vmem:[%s2341 + $0x78] sm:$0xff]
    %v2358 = vld [vmem:[%s2341 + $0x80] sm:$0xff]
    %v2359 = vld [vmem:[%s2341 + $0x88] sm:$0xff]
    %v2360 = vld [vmem:[%s2341 + $0x90] sm:$0xff]
    %v2361 = vld [vmem:[%s2341 + $0x98] sm:$0xff]
    %v2362 = vld [vmem:[%s2341 + $0xa0] sm:$0xff]
    %v2363 = vld [vmem:[%s2341 + $0xa8] sm:$0xff]
    %v2364 = vld [vmem:[%s2341 + $0xb0] sm:$0xff]
    %v2365 = vld [vmem:[%s2341 + $0xb8] sm:$0xff]
    %v2366 = vld [vmem:[%s2341 + $0xc0] sm:$0xff]
    %v2367 = vld [vmem:[%s2341 + $0xc8] sm:$0xff]
    %v2368 = vld [vmem:[%s2341 + $0xd0] sm:$0xff]
    %v2369 = vld [vmem:[%s2341 + $0xd8] sm:$0xff]
    %v2370 = vld [vmem:[%s2341 + $0xe0] sm:$0xff]
    %v2371 = vld [vmem:[%s2341 + $0xe8] sm:$0xff]
    %2372 = vmatprep.subr.mxu0 %v2343
    %2373 = vmatpush1.msra.mxu0 %v2342
    %2374 = vmatprep.subr.mxu0 %v2345
    %2375 = vmatpush1.msra.mxu0 %v2344
    %2376 = vmatprep.subr.mxu0 %v2347
    %2377 = vmatpush1.msra.mxu0 %v2346
    %2378 = vmatprep.subr.mxu0 %v2349
    %2379 = vmatpush1.msra.mxu0 %v2348
    %2380 = vmatprep.subr.mxu0 %v2351
    %2381 = vmatpush1.msra.mxu0 %v2350
    %2382 = vmatprep.subr.mxu0 %v2353
    %2383 = vmatpush1.msra.mxu0 %v2352
    %2384 = vmatprep.subr.mxu0 %v2355
    %2385 = vmatpush1.msra.mxu0 %v2354
    %2386 = vmatprep.subr.mxu0 %v2357
    %2387 = vmatpush1.msra.mxu0 %v2356
    %2388 = vmatprep.subr.mxu0 %v2359
    %2389 = vmatpush1.msra.mxu0 %v2358
    %2390 = vmatprep.subr.mxu0 %v2361
    %2391 = vmatpush1.msra.mxu0 %v2360
    %2392 = vmatprep.subr.mxu0 %v2363
    %2393 = vmatpush1.msra.mxu0 %v2362
    %2394 = vmatprep.subr.mxu0 %v2365
    %2395 = vmatpush1.msra.mxu0 %v2364
    %2396 = vmatprep.subr.mxu0 %v2367
    %2397 = vmatpush1.msra.mxu0 %v2366
    %2398 = vmatprep.subr.mxu0 %v2369
    %2399 = vmatpush1.msra.mxu0 %v2368
    %2400 = vmatprep.subr.mxu0 %v2371
    %2401 = vmatpush1.msra.mxu0 %v2370
    %2402 = vmatprep.subr.mxu0 0.0
    %2403 = vmatpush1.msra.mxu0 0.0
    %2404 = vmatprep.subr.mxu0 0.0
    %2405 = vmatpush1.msra.mxu0 0.0
    %2406 = vmatprep.subr.mxu0 0.0
    %2407 = vmatpush1.msra.mxu0 0.0
    %2408 = vmatprep.subr.mxu0 0.0
    %2409 = vmatpush1.msra.mxu0 0.0
    %2410 = vmatprep.subr.mxu0 0.0
    %2411 = vmatpush1.msra.mxu0 0.0
    %2412 = vmatprep.subr.mxu0 0.0
    %2413 = vmatpush1.msra.mxu0 0.0
    %2414 = vmatprep.subr.mxu0 0.0
    %2415 = vmatpush1.msra.mxu0 0.0
    %2416 = vmatprep.subr.mxu0 0.0
    %2417 = vmatpush1.msra.mxu0 0.0
    %2418 = vmatprep.subr.mxu0 0.0
    %2419 = vmatpush1.msra.mxu0 0.0
    %2420 = vmatprep.subr.mxu0 0.0
    %2421 = vmatpush1.msra.mxu0 0.0
    %2422 = vmatprep.subr.mxu0 0.0
    %2423 = vmatpush1.msra.mxu0 0.0
    %2424 = vmatprep.subr.mxu0 0.0
    %2425 = vmatpush1.msra.mxu0 0.0
    %2426 = vmatprep.subr.mxu0 0.0
    %2427 = vmatpush1.msra.mxu0 0.0
    %2428 = vmatprep.subr.mxu0 0.0
    %2429 = vmatpush1.msra.mxu0 0.0
    %2430 = vmatprep.subr.mxu0 0.0
    %2431 = vmatpush1.msra.mxu0 0.0
    %2432 = vmatprep.subr.mxu0 0.0
    %2433 = vmatpush1.msra.mxu0 0.0
    %2434 = vmatprep.subr.mxu0 0.0
    %2435 = vmatpush1.msra.mxu0 0.0
    %2436 = vmatprep.mubr.f32.mxu0 0.0
    %2437 = vmatmul.mubr.f32.gmra.mrb[0].mxu0 %v1917
    %v2438 = vpop.f32.mrb[0].mxu0
    %v2439 = vadd.f32 0.0, %v2438
    %v2440 = vpop.f32.mrb[0].mxu0
    %v2441 = vadd.f32 0.0, %v2440
    %2442 = vmatprep.mubr.f32.mxu0 0.0
    %2443 = vmatmul.mubr.f32.gmra.mrb[0].mxu0 %v1920
    %v2444 = vpop.f32.mrb[0].mxu0
    %v2445 = vadd.f32 0.0, %v2444
    %v2446 = vpop.f32.mrb[0].mxu0
    %v2447 = vadd.f32 0.0, %v2446
    %2448 = vmatprep.mubr.f32.mxu0 0.0
    %2449 = vmatmul.mubr.f32.gmra.mrb[0].mxu0 %v1923
    %v2450 = vpop.f32.mrb[0].mxu0
    %v2451 = vadd.f32 0.0, %v2450
    %v2452 = vpop.f32.mrb[0].mxu0
    %v2453 = vadd.f32 0.0, %v2452
    %2454 = vmatprep.mubr.f32.mxu0 0.0
    %2455 = vmatmul.mubr.f32.gmra.mrb[0].mxu0 %v1926
    %v2456 = vpop.f32.mrb[0].mxu0
    %v2457 = vadd.f32 0.0, %v2456
    %v2458 = vpop.f32.mrb[0].mxu0
    %v2459 = vadd.f32 0.0, %v2458
    %2460 = vmatprep.mubr.f32.mxu0 0.0
    %2461 = vmatmul.mubr.f32.gmra.mrb[0].mxu0 %v1929
    %v2462 = vpop.f32.mrb[0].mxu0
    %v2463 = vadd.f32 0.0, %v2462
    %v2464 = vpop.f32.mrb[0].mxu0
    %v2465 = vadd.f32 0.0, %v2464
    %2466 = vmatprep.mubr.f32.mxu0 0.0
    %2467 = vmatmul.mubr.f32.gmra.mrb[0].mxu0 %v1932
    %v2468 = vpop.f32.mrb[0].mxu0
    %v2469 = vadd.f32 0.0, %v2468
    %v2470 = vpop.f32.mrb[0].mxu0
    %v2471 = vadd.f32 0.0, %v2470
    %2472 = vmatprep.mubr.f32.mxu0 0.0
    %2473 = vmatmul.mubr.f32.gmra.mrb[0].mxu0 %v1935
    %v2474 = vpop.f32.mrb[0].mxu0
    %v2475 = vadd.f32 0.0, %v2474
    %v2476 = vpop.f32.mrb[0].mxu0
    %v2477 = vadd.f32 0.0, %v2476
    %2478 = vmatprep.mubr.f32.mxu0 0.0
    %2479 = vmatmul.mubr.f32.gmra.mrb[0].mxu0 %v1938
    %v2480 = vpop.f32.mrb[0].mxu0
    %v2481 = vadd.f32 0.0, %v2480
    %v2482 = vpop.f32.mrb[0].mxu0
    %v2483 = vadd.f32 0.0, %v2482
    %2484 = vdwg.mxu0
    %s2485 = scalar_lea.vmem %s9, 960
    %v2486 = vld [vmem:[%s2485] sm:$0xff]
    %v2487 = vld [vmem:[%s2485 + $0x8] sm:$0xff]
    %v2488 = vld [vmem:[%s2485 + $0x10] sm:$0xff]
    %v2489 = vld [vmem:[%s2485 + $0x18] sm:$0xff]
    %v2490 = vld [vmem:[%s2485 + $0x20] sm:$0xff]
    %v2491 = vld [vmem:[%s2485 + $0x28] sm:$0xff]
    %v2492 = vld [vmem:[%s2485 + $0x30] sm:$0xff]
    %v2493 = vld [vmem:[%s2485 + $0x38] sm:$0xff]
    %v2494 = vld [vmem:[%s2485 + $0x40] sm:$0xff]
    %v2495 = vld [vmem:[%s2485 + $0x48] sm:$0xff]
    %v2496 = vld [vmem:[%s2485 + $0x50] sm:$0xff]
    %v2497 = vld [vmem:[%s2485 + $0x58] sm:$0xff]
    %v2498 = vld [vmem:[%s2485 + $0x60] sm:$0xff]
    %v2499 = vld [vmem:[%s2485 + $0x68] sm:$0xff]
    %v2500 = vld [vmem:[%s2485 + $0x70] sm:$0xff]
    %v2501 = vld [vmem:[%s2485 + $0x78] sm:$0xff]
    %v2502 = vld [vmem:[%s2485 + $0x80] sm:$0xff]
    %v2503 = vld [vmem:[%s2485 + $0x88] sm:$0xff]
    %v2504 = vld [vmem:[%s2485 + $0x90] sm:$0xff]
    %v2505 = vld [vmem:[%s2485 + $0x98] sm:$0xff]
    %v2506 = vld [vmem:[%s2485 + $0xa0] sm:$0xff]
    %v2507 = vld [vmem:[%s2485 + $0xa8] sm:$0xff]
    %v2508 = vld [vmem:[%s2485 + $0xb0] sm:$0xff]
    %v2509 = vld [vmem:[%s2485 + $0xb8] sm:$0xff]
    %v2510 = vld [vmem:[%s2485 + $0xc0] sm:$0xff]
    %v2511 = vld [vmem:[%s2485 + $0xc8] sm:$0xff]
    %v2512 = vld [vmem:[%s2485 + $0xd0] sm:$0xff]
    %v2513 = vld [vmem:[%s2485 + $0xd8] sm:$0xff]
    %v2514 = vld [vmem:[%s2485 + $0xe0] sm:$0xff]
    %v2515 = vld [vmem:[%s2485 + $0xe8] sm:$0xff]
    %2516 = vmatprep.subr.mxu0 %v2487
    %2517 = vmatpush1.msra.mxu0 %v2486
    %2518 = vmatprep.subr.mxu0 %v2489
    %2519 = vmatpush1.msra.mxu0 %v2488
    %2520 = vmatprep.subr.mxu0 %v2491
    %2521 = vmatpush1.msra.mxu0 %v2490
    %2522 = vmatprep.subr.mxu0 %v2493
    %2523 = vmatpush1.msra.mxu0 %v2492
    %2524 = vmatprep.subr.mxu0 %v2495
    %2525 = vmatpush1.msra.mxu0 %v2494
    %2526 = vmatprep.subr.mxu0 %v2497
    %2527 = vmatpush1.msra.mxu0 %v2496
    %2528 = vmatprep.subr.mxu0 %v2499
    %2529 = vmatpush1.msra.mxu0 %v2498
    %2530 = vmatprep.subr.mxu0 %v2501
    %2531 = vmatpush1.msra.mxu0 %v2500
    %2532 = vmatprep.subr.mxu0 %v2503
    %2533 = vmatpush1.msra.mxu0 %v2502
    %2534 = vmatprep.subr.mxu0 %v2505
    %2535 = vmatpush1.msra.mxu0 %v2504
    %2536 = vmatprep.subr.mxu0 %v2507
    %2537 = vmatpush1.msra.mxu0 %v2506
    %2538 = vmatprep.subr.mxu0 %v2509
    %2539 = vmatpush1.msra.mxu0 %v2508
    %2540 = vmatprep.subr.mxu0 %v2511
    %2541 = vmatpush1.msra.mxu0 %v2510
    %2542 = vmatprep.subr.mxu0 %v2513
    %2543 = vmatpush1.msra.mxu0 %v2512
    %2544 = vmatprep.subr.mxu0 %v2515
    %2545 = vmatpush1.msra.mxu0 %v2514
    %2546 = vmatprep.subr.mxu0 0.0
    %2547 = vmatpush1.msra.mxu0 0.0
    %2548 = vmatprep.subr.mxu0 0.0
    %2549 = vmatpush1.msra.mxu0 0.0
    %2550 = vmatprep.subr.mxu0 0.0
    %2551 = vmatpush1.msra.mxu0 0.0
    %2552 = vmatprep.subr.mxu0 0.0
    %2553 = vmatpush1.msra.mxu0 0.0
    %2554 = vmatprep.subr.mxu0 0.0
    %2555 = vmatpush1.msra.mxu0 0.0
    %2556 = vmatprep.subr.mxu0 0.0
    %2557 = vmatpush1.msra.mxu0 0.0
    %2558 = vmatprep.subr.mxu0 0.0
    %2559 = vmatpush1.msra.mxu0 0.0
    %2560 = vmatprep.subr.mxu0 0.0
    %2561 = vmatpush1.msra.mxu0 0.0
    %2562 = vmatprep.subr.mxu0 0.0
    %2563 = vmatpush1.msra.mxu0 0.0
    %2564 = vmatprep.subr.mxu0 0.0
    %2565 = vmatpush1.msra.mxu0 0.0
    %2566 = vmatprep.subr.mxu0 0.0
    %2567 = vmatpush1.msra.mxu0 0.0
    %2568 = vmatprep.subr.mxu0 0.0
    %2569 = vmatpush1.msra.mxu0 0.0
    %2570 = vmatprep.subr.mxu0 0.0
    %2571 = vmatpush1.msra.mxu0 0.0
    %2572 = vmatprep.subr.mxu0 0.0
    %2573 = vmatpush1.msra.mxu0 0.0
    %2574 = vmatprep.subr.mxu0 0.0
    %2575 = vmatpush1.msra.mxu0 0.0
    %2576 = vmatprep.subr.mxu0 0.0
    %2577 = vmatpush1.msra.mxu0 0.0
    %2578 = vmatprep.subr.mxu0 0.0
    %2579 = vmatpush1.msra.mxu0 0.0
    %2580 = vmatprep.mubr.f32.mxu0 0.0
    %2581 = vmatmul.mubr.f32.gmra.mrb[0].mxu0 %v1917
    %v2582 = vpop.f32.mrb[0].mxu0
    %v2583 = vadd.f32 0.0, %v2582
    %v2584 = vpop.f32.mrb[0].mxu0
    %v2585 = vadd.f32 0.0, %v2584
    %2586 = vmatprep.mubr.f32.mxu0 0.0
    %2587 = vmatmul.mubr.f32.gmra.mrb[0].mxu0 %v1920
    %v2588 = vpop.f32.mrb[0].mxu0
    %v2589 = vadd.f32 0.0, %v2588
    %v2590 = vpop.f32.mrb[0].mxu0
    %v2591 = vadd.f32 0.0, %v2590
    %2592 = vmatprep.mubr.f32.mxu0 0.0
    %2593 = vmatmul.mubr.f32.gmra.mrb[0].mxu0 %v1923
    %v2594 = vpop.f32.mrb[0].mxu0
    %v2595 = vadd.f32 0.0, %v2594
    %v2596 = vpop.f32.mrb[0].mxu0
    %v2597 = vadd.f32 0.0, %v2596
    %2598 = vmatprep.mubr.f32.mxu0 0.0
    %2599 = vmatmul.mubr.f32.gmra.mrb[0].mxu0 %v1926
    %v2600 = vpop.f32.mrb[0].mxu0
    %v2601 = vadd.f32 0.0, %v2600
    %v2602 = vpop.f32.mrb[0].mxu0
    %v2603 = vadd.f32 0.0, %v2602
    %2604 = vmatprep.mubr.f32.mxu0 0.0
    %2605 = vmatmul.mubr.f32.gmra.mrb[0].mxu0 %v1929
    %v2606 = vpop.f32.mrb[0].mxu0
    %v2607 = vadd.f32 0.0, %v2606
    %v2608 = vpop.f32.mrb[0].mxu0
    %v2609 = vadd.f32 0.0, %v2608
    %2610 = vmatprep.mubr.f32.mxu0 0.0
    %2611 = vmatmul.mubr.f32.gmra.mrb[0].mxu0 %v1932
    %v2612 = vpop.f32.mrb[0].mxu0
    %v2613 = vadd.f32 0.0, %v2612
    %v2614 = vpop.f32.mrb[0].mxu0
    %v2615 = vadd.f32 0.0, %v2614
    %2616 = vmatprep.mubr.f32.mxu0 0.0
    %2617 = vmatmul.mubr.f32.gmra.mrb[0].mxu0 %v1935
    %v2618 = vpop.f32.mrb[0].mxu0
    %v2619 = vadd.f32 0.0, %v2618
    %v2620 = vpop.f32.mrb[0].mxu0
    %v2621 = vadd.f32 0.0, %v2620
    %2622 = vmatprep.mubr.f32.mxu0 0.0
    %2623 = vmatmul.mubr.f32.gmra.mrb[0].mxu0 %v1938
    %v2624 = vpop.f32.mrb[0].mxu0
    %v2625 = vadd.f32 0.0, %v2624
    %v2626 = vpop.f32.mrb[0].mxu0
    %v2627 = vadd.f32 0.0, %v2626
    %2628 = vdwg.mxu0
    %s2629 = scalar_lea.vmem %s9, 1200
    %v2630 = vld [vmem:[%s2629] sm:$0xff]
    %v2631 = vld [vmem:[%s2629 + $0x8] sm:$0xff]
    %v2632 = vld [vmem:[%s2629 + $0x10] sm:$0xff]
    %v2633 = vld [vmem:[%s2629 + $0x18] sm:$0xff]
    %v2634 = vld [vmem:[%s2629 + $0x20] sm:$0xff]
    %v2635 = vld [vmem:[%s2629 + $0x28] sm:$0xff]
    %v2636 = vld [vmem:[%s2629 + $0x30] sm:$0xff]
    %v2637 = vld [vmem:[%s2629 + $0x38] sm:$0xff]
    %v2638 = vld [vmem:[%s2629 + $0x40] sm:$0xff]
    %v2639 = vld [vmem:[%s2629 + $0x48] sm:$0xff]
    %v2640 = vld [vmem:[%s2629 + $0x50] sm:$0xff]
    %v2641 = vld [vmem:[%s2629 + $0x58] sm:$0xff]
    %v2642 = vld [vmem:[%s2629 + $0x60] sm:$0xff]
    %v2643 = vld [vmem:[%s2629 + $0x68] sm:$0xff]
    %v2644 = vld [vmem:[%s2629 + $0x70] sm:$0xff]
    %v2645 = vld [vmem:[%s2629 + $0x78] sm:$0xff]
    %v2646 = vld [vmem:[%s2629 + $0x80] sm:$0xff]
    %v2647 = vld [vmem:[%s2629 + $0x88] sm:$0xff]
    %v2648 = vld [vmem:[%s2629 + $0x90] sm:$0xff]
    %v2649 = vld [vmem:[%s2629 + $0x98] sm:$0xff]
    %v2650 = vld [vmem:[%s2629 + $0xa0] sm:$0xff]
    %v2651 = vld [vmem:[%s2629 + $0xa8] sm:$0xff]
    %v2652 = vld [vmem:[%s2629 + $0xb0] sm:$0xff]
    %v2653 = vld [vmem:[%s2629 + $0xb8] sm:$0xff]
    %v2654 = vld [vmem:[%s2629 + $0xc0] sm:$0xff]
    %v2655 = vld [vmem:[%s2629 + $0xc8] sm:$0xff]
    %v2656 = vld [vmem:[%s2629 + $0xd0] sm:$0xff]
    %v2657 = vld [vmem:[%s2629 + $0xd8] sm:$0xff]
    %v2658 = vld [vmem:[%s2629 + $0xe0] sm:$0xff]
    %v2659 = vld [vmem:[%s2629 + $0xe8] sm:$0xff]
    %2660 = vmatprep.subr.mxu0 %v2631
    %2661 = vmatpush1.msra.mxu0 %v2630
    %2662 = vmatprep.subr.mxu0 %v2633
    %2663 = vmatpush1.msra.mxu0 %v2632
    %2664 = vmatprep.subr.mxu0 %v2635
    %2665 = vmatpush1.msra.mxu0 %v2634
    %2666 = vmatprep.subr.mxu0 %v2637
    %2667 = vmatpush1.msra.mxu0 %v2636
    %2668 = vmatprep.subr.mxu0 %v2639
    %2669 = vmatpush1.msra.mxu0 %v2638
    %2670 = vmatprep.subr.mxu0 %v2641
    %2671 = vmatpush1.msra.mxu0 %v2640
    %2672 = vmatprep.subr.mxu0 %v2643
    %2673 = vmatpush1.msra.mxu0 %v2642
    %2674 = vmatprep.subr.mxu0 %v2645
    %2675 = vmatpush1.msra.mxu0 %v2644
    %2676 = vmatprep.subr.mxu0 %v2647
    %2677 = vmatpush1.msra.mxu0 %v2646
    %2678 = vmatprep.subr.mxu0 %v2649
    %2679 = vmatpush1.msra.mxu0 %v2648
    %2680 = vmatprep.subr.mxu0 %v2651
    %2681 = vmatpush1.msra.mxu0 %v2650
    %2682 = vmatprep.subr.mxu0 %v2653
    %2683 = vmatpush1.msra.mxu0 %v2652
    %2684 = vmatprep.subr.mxu0 %v2655
    %2685 = vmatpush1.msra.mxu0 %v2654
    %2686 = vmatprep.subr.mxu0 %v2657
    %2687 = vmatpush1.msra.mxu0 %v2656
    %2688 = vmatprep.subr.mxu0 %v2659
    %2689 = vmatpush1.msra.mxu0 %v2658
    %2690 = vmatprep.subr.mxu0 0.0
    %2691 = vmatpush1.msra.mxu0 0.0
    %2692 = vmatprep.subr.mxu0 0.0
    %2693 = vmatpush1.msra.mxu0 0.0
    %2694 = vmatprep.subr.mxu0 0.0
    %2695 = vmatpush1.msra.mxu0 0.0
    %2696 = vmatprep.subr.mxu0 0.0
    %2697 = vmatpush1.msra.mxu0 0.0
    %2698 = vmatprep.subr.mxu0 0.0
    %2699 = vmatpush1.msra.mxu0 0.0
    %2700 = vmatprep.subr.mxu0 0.0
    %2701 = vmatpush1.msra.mxu0 0.0
    %2702 = vmatprep.subr.mxu0 0.0
    %2703 = vmatpush1.msra.mxu0 0.0
    %2704 = vmatprep.subr.mxu0 0.0
    %2705 = vmatpush1.msra.mxu0 0.0
    %2706 = vmatprep.subr.mxu0 0.0
    %2707 = vmatpush1.msra.mxu0 0.0
    %2708 = vmatprep.subr.mxu0 0.0
    %2709 = vmatpush1.msra.mxu0 0.0
    %2710 = vmatprep.subr.mxu0 0.0
    %2711 = vmatpush1.msra.mxu0 0.0
    %2712 = vmatprep.subr.mxu0 0.0
    %2713 = vmatpush1.msra.mxu0 0.0
    %2714 = vmatprep.subr.mxu0 0.0
    %2715 = vmatpush1.msra.mxu0 0.0
    %2716 = vmatprep.subr.mxu0 0.0
    %2717 = vmatpush1.msra.mxu0 0.0
    %2718 = vmatprep.subr.mxu0 0.0
    %2719 = vmatpush1.msra.mxu0 0.0
    %2720 = vmatprep.subr.mxu0 0.0
    %2721 = vmatpush1.msra.mxu0 0.0
    %2722 = vmatprep.subr.mxu0 0.0
    %2723 = vmatpush1.msra.mxu0 0.0
    %2724 = vmatprep.mubr.f32.mxu0 0.0
    %2725 = vmatmul.mubr.f32.gmra.mrb[0].mxu0 %v1917
    %v2726 = vpop.f32.mrb[0].mxu0
    %v2727 = vadd.f32 0.0, %v2726
    %v2728 = vpop.f32.mrb[0].mxu0
    %v2729 = vadd.f32 0.0, %v2728
    %2730 = vmatprep.mubr.f32.mxu0 0.0
    %2731 = vmatmul.mubr.f32.gmra.mrb[0].mxu0 %v1920
    %v2732 = vpop.f32.mrb[0].mxu0
    %v2733 = vadd.f32 0.0, %v2732
    %v2734 = vpop.f32.mrb[0].mxu0
    %v2735 = vadd.f32 0.0, %v2734
    %2736 = vmatprep.mubr.f32.mxu0 0.0
    %2737 = vmatmul.mubr.f32.gmra.mrb[0].mxu0 %v1923
    %v2738 = vpop.f32.mrb[0].mxu0
    %v2739 = vadd.f32 0.0, %v2738
    %v2740 = vpop.f32.mrb[0].mxu0
    %v2741 = vadd.f32 0.0, %v2740
    %2742 = vmatprep.mubr.f32.mxu0 0.0
    %2743 = vmatmul.mubr.f32.gmra.mrb[0].mxu0 %v1926
    %v2744 = vpop.f32.mrb[0].mxu0
    %v2745 = vadd.f32 0.0, %v2744
    %v2746 = vpop.f32.mrb[0].mxu0
    %v2747 = vadd.f32 0.0, %v2746
    %2748 = vmatprep.mubr.f32.mxu0 0.0
    %2749 = vmatmul.mubr.f32.gmra.mrb[0].mxu0 %v1929
    %v2750 = vpop.f32.mrb[0].mxu0
    %v2751 = vadd.f32 0.0, %v2750
    %v2752 = vpop.f32.mrb[0].mxu0
    %v2753 = vadd.f32 0.0, %v2752
    %2754 = vmatprep.mubr.f32.mxu0 0.0
    %2755 = vmatmul.mubr.f32.gmra.mrb[0].mxu0 %v1932
    %v2756 = vpop.f32.mrb[0].mxu0
    %v2757 = vadd.f32 0.0, %v2756
    %v2758 = vpop.f32.mrb[0].mxu0
    %v2759 = vadd.f32 0.0, %v2758
    %2760 = vmatprep.mubr.f32.mxu0 0.0
    %2761 = vmatmul.mubr.f32.gmra.mrb[0].mxu0 %v1935
    %v2762 = vpop.f32.mrb[0].mxu0
    %v2763 = vadd.f32 0.0, %v2762
    %v2764 = vpop.f32.mrb[0].mxu0
    %v2765 = vadd.f32 0.0, %v2764
    %2766 = vmatprep.mubr.f32.mxu0 0.0
    %2767 = vmatmul.mubr.f32.gmra.mrb[0].mxu0 %v1938
    %v2768 = vpop.f32.mrb[0].mxu0
    %v2769 = vadd.f32 0.0, %v2768
    %v2770 = vpop.f32.mrb[0].mxu0
    %v2771 = vadd.f32 0.0, %v2770
    %2772 = vdwg.mxu0
    %v2789 = vrot.slane %v2151, 4
    %v2790 = vrot.slane %v2153, 4
    %v2791 = vrot.slane %v2157, 4
    %v2792 = vsel %vm471, %v2789, %v2791
    %v2793 = vrot.slane %v2159, 4
    %v2794 = vsel %vm471, %v2790, %v2793
    %v2795 = vrot.slane %v2163, 4
    %v2796 = vsel %vm471, %v2791, %v2795
    %v2797 = vrot.slane %v2165, 4
    %v2798 = vsel %vm471, %v2793, %v2797
    %v2799 = vrot.slane %v2169, 4
    %v2800 = vsel %vm471, %v2795, %v2799
    %v2801 = vrot.slane %v2171, 4
    %v2802 = vsel %vm471, %v2797, %v2801
    %v2803 = vrot.slane %v2175, 4
    %v2804 = vsel %vm471, %v2799, %v2803
    %v2805 = vrot.slane %v2177, 4
    %v2806 = vsel %vm471, %v2801, %v2805
    %v2807 = vrot.slane %v2181, 4
    %v2808 = vsel %vm471, %v2803, %v2807
    %v2809 = vrot.slane %v2183, 4
    %v2810 = vsel %vm471, %v2805, %v2809
    %v2811 = vrot.slane %v2187, 4
    %v2812 = vsel %vm471, %v2807, %v2811
    %v2813 = vrot.slane %v2189, 4
    %v2814 = vsel %vm471, %v2809, %v2813
    %v2815 = vrot.slane %v2193, 4
    %v2816 = vsel %vm471, %v2811, %v2815
    %v2817 = vrot.slane %v2195, 4
    %v2818 = vsel %vm471, %v2813, %v2817
    %v2851 = vrot.slane %v2439, 4
    %v2852 = vrot.slane %v2441, 4
    %v2853 = vrot.slane %v2445, 4
    %v2854 = vsel %vm471, %v2851, %v2853
    %v2855 = vrot.slane %v2447, 4
    %v2856 = vsel %vm471, %v2852, %v2855
    %v2857 = vrot.slane %v2451, 4
    %v2858 = vsel %vm471, %v2853, %v2857
    %v2859 = vrot.slane %v2453, 4
    %v2860 = vsel %vm471, %v2855, %v2859
    %v2861 = vrot.slane %v2457, 4
    %v2862 = vsel %vm471, %v2857, %v2861
    %v2863 = vrot.slane %v2459, 4
    %v2864 = vsel %vm471, %v2859, %v2863
    %v2865 = vrot.slane %v2463, 4
    %v2866 = vsel %vm471, %v2861, %v2865
    %v2867 = vrot.slane %v2465, 4
    %v2868 = vsel %vm471, %v2863, %v2867
    %v2869 = vrot.slane %v2469, 4
    %v2870 = vsel %vm471, %v2865, %v2869
    %v2871 = vrot.slane %v2471, 4
    %v2872 = vsel %vm471, %v2867, %v2871
    %v2873 = vrot.slane %v2475, 4
    %v2874 = vsel %vm471, %v2869, %v2873
    %v2875 = vrot.slane %v2477, 4
    %v2876 = vsel %vm471, %v2871, %v2875
    %v2877 = vrot.slane %v2481, 4
    %v2878 = vsel %vm471, %v2873, %v2877
    %v2879 = vrot.slane %v2483, 4
    %v2880 = vsel %vm471, %v2875, %v2879
    %v2913 = vrot.slane %v2727, 4
    %v2914 = vrot.slane %v2729, 4
    %v2915 = vrot.slane %v2733, 4
    %v2916 = vsel %vm471, %v2913, %v2915
    %v2917 = vrot.slane %v2735, 4
    %v2918 = vsel %vm471, %v2914, %v2917
    %v2919 = vrot.slane %v2739, 4
    %v2920 = vsel %vm471, %v2915, %v2919
    %v2921 = vrot.slane %v2741, 4
    %v2922 = vsel %vm471, %v2917, %v2921
    %v2923 = vrot.slane %v2745, 4
    %v2924 = vsel %vm471, %v2919, %v2923
    %v2925 = vrot.slane %v2747, 4
    %v2926 = vsel %vm471, %v2921, %v2925
    %v2927 = vrot.slane %v2751, 4
    %v2928 = vsel %vm471, %v2923, %v2927
    %v2929 = vrot.slane %v2753, 4
    %v2930 = vsel %vm471, %v2925, %v2929
    %v2931 = vrot.slane %v2757, 4
    %v2932 = vsel %vm471, %v2927, %v2931
    %v2933 = vrot.slane %v2759, 4
    %v2934 = vsel %vm471, %v2929, %v2933
    %v2935 = vrot.slane %v2763, 4
    %v2936 = vsel %vm471, %v2931, %v2935
    %v2937 = vrot.slane %v2765, 4
    %v2938 = vsel %vm471, %v2933, %v2937
    %v2939 = vrot.slane %v2769, 4
    %v2940 = vsel %vm471, %v2935, %v2939
    %v2941 = vrot.slane %v2771, 4
    %v2942 = vsel %vm471, %v2937, %v2941
    %v2959 = vsel %vm471, %v2049, %v2789
    %v2960 = vsel %vm471, %v2051, %v2790
    %v2961 = vsel %vm471, %v2337, %v2851
    %v2962 = vsel %vm471, %v2339, %v2852
    %v2963 = vsel %vm471, %v2625, %v2913
    %v2964 = vsel %vm471, %v2627, %v2914
    %v2965 = vld [vmem:[%s10] sm:$0xff]
    %v2966 = vld [vmem:[%s10 + $0x8] sm:$0xff]
    %v2967 = vld [vmem:[%s10 + $0x10] sm:$0xff]
    %v2968 = vld [vmem:[%s10 + $0x18] sm:$0xff]
    %v2969 = vld [vmem:[%s10 + $0x20] sm:$0xff]
    %v2970 = vld [vmem:[%s10 + $0x28] sm:$0xff]
    %v2971 = vld [vmem:[%s10 + $0x30] sm:$0xff]
    %v2972 = vld [vmem:[%s10 + $0x38] sm:$0xff]
    %v2973 = vld [vmem:[%s10 + $0x40] sm:$0xff]
    %v2974 = vld [vmem:[%s10 + $0x48] sm:$0xff]
    %v2975 = vld [vmem:[%s10 + $0x50] sm:$0xff]
    %v2976 = vld [vmem:[%s10 + $0x58] sm:$0xff]
    %v2977 = vld [vmem:[%s10 + $0x60] sm:$0xff]
    %v2978 = vld [vmem:[%s10 + $0x68] sm:$0xff]
    %v2979 = vld [vmem:[%s10 + $0x70] sm:$0xff]
    %v2980 = vld [vmem:[%s10 + $0x78] sm:$0xff]
    %v2981 = vld [vmem:[%s10 + $0x80] sm:$0xff]
    %v2982 = vld [vmem:[%s10 + $0x88] sm:$0xff]
    %v2983 = vld [vmem:[%s10 + $0x90] sm:$0xff]
    %v2984 = vld [vmem:[%s10 + $0x98] sm:$0xff]
    %v2985 = vld [vmem:[%s10 + $0xa0] sm:$0xff]
    %v2986 = vld [vmem:[%s10 + $0xa8] sm:$0xff]
    %v2987 = vld [vmem:[%s10 + $0xb0] sm:$0xff]
    %v2988 = vld [vmem:[%s10 + $0xb8] sm:$0xff]
    %v2989 = vld [vmem:[%s10 + $0xc0] sm:$0xff]
    %v2990 = vld [vmem:[%s10 + $0xc8] sm:$0xff]
    %v2991 = vld [vmem:[%s10 + $0xd0] sm:$0xff]
    %v2992 = vld [vmem:[%s10 + $0xd8] sm:$0xff]
    %v2993 = vld [vmem:[%s10 + $0xe0] sm:$0xff]
    %v2994 = vld [vmem:[%s10 + $0xe8] sm:$0xff]
    %v2995 = vld [vmem:[%s10 + $0xf0] sm:$0xff]
    %v2996 = vld [vmem:[%s10 + $0xf8] sm:$0xff]
    %v2997 = vld [vmem:[%s10 + $0x100] sm:$0xff]
    %v2998 = vld [vmem:[%s10 + $0x108] sm:$0xff]
    %v2999 = vld [vmem:[%s10 + $0x110] sm:$0xff]
    %v3000 = vld [vmem:[%s10 + $0x118] sm:$0xff]
    %v3001 = vld [vmem:[%s10 + $0x120] sm:$0xff]
    %v3002 = vld [vmem:[%s10 + $0x128] sm:$0xff]
    %v3003 = vld [vmem:[%s10 + $0x130] sm:$0xff]
    %v3004 = vld [vmem:[%s10 + $0x138] sm:$0xff]
    %v3005 = vld [vmem:[%s10 + $0x140] sm:$0xff]
    %v3006 = vld [vmem:[%s10 + $0x148] sm:$0xff]
    %v3007 = vld [vmem:[%s10 + $0x150] sm:$0xff]
    %v3008 = vld [vmem:[%s10 + $0x158] sm:$0xff]
    %v3009 = vld [vmem:[%s10 + $0x160] sm:$0xff]
    %v3010 = vld [vmem:[%s10 + $0x168] sm:$0xff]
    %v3011 = vld [vmem:[%s10 + $0x170] sm:$0xff]
    %v3012 = vld [vmem:[%s10 + $0x178] sm:$0xff]
    %v3013 = vld [vmem:[%s11] sm:$0x3]
    %v3015 = vlaneseq
    %v3016 = vshrl.u32 %v3015, 7
    %v3017 = vsub.s32 0, %v3016
    %v3018 = vrot.slane %v3013, %v3017
    %v3019 = vlaneseq
    %v3020 = vshrl.u32 %v3019, 7
    %v3021 = vsub.s32 1, %v3020
    %v3022 = vrot.slane %v3013, %v3021
    %v3026 = vsel %vm1066, %v2967, 0
    %v3029 = vsel %vm1066, %v2970, 0
    %v3032 = vsel %vm1066, %v2973, 0
    %v3035 = vsel %vm1066, %v2976, 0
    %v3038 = vsel %vm1066, %v2979, 0
    %v3041 = vsel %vm1066, %v2982, 0
    %v3044 = vsel %vm1066, %v2985, 0
    %v3047 = vsel %vm1066, %v2988, 0
    %v3050 = vsel %vm1066, %v2991, 0
    %v3053 = vsel %vm1066, %v2994, 0
    %v3056 = vsel %vm1066, %v2997, 0
    %v3059 = vsel %vm1066, %v3000, 0
    %v3062 = vsel %vm1066, %v3003, 0
    %v3065 = vsel %vm1066, %v3006, 0
    %v3068 = vsel %vm1066, %v3009, 0
    %v3071 = vsel %vm1066, %v3012, 0
    %3073 = vmatprep.subr.mxu0 %v2009
    %3074 = vmatpush1.msra.mxu0 %v2007
    %3075 = vmatprep.subr.mxu0 %v2015
    %3076 = vmatpush1.msra.mxu0 %v2013
    %3077 = vmatprep.subr.mxu0 %v2021
    %3078 = vmatpush1.msra.mxu0 %v2019
    %3079 = vmatprep.subr.mxu0 %v2027
    %3080 = vmatpush1.msra.mxu0 %v2025
    %3081 = vmatprep.subr.mxu0 %v2033
    %3082 = vmatpush1.msra.mxu0 %v2031
    %3083 = vmatprep.subr.mxu0 %v2039
    %3084 = vmatpush1.msra.mxu0 %v2037
    %3085 = vmatprep.subr.mxu0 %v2045
    %3086 = vmatpush1.msra.mxu0 %v2043
    %3087 = vmatprep.subr.mxu0 %v2960
    %3088 = vmatpush1.msra.mxu0 %v2959
    %3089 = vmatprep.subr.mxu0 %v2794
    %3090 = vmatpush1.msra.mxu0 %v2792
    %3091 = vmatprep.subr.mxu0 %v2798
    %3092 = vmatpush1.msra.mxu0 %v2796
    %3093 = vmatprep.subr.mxu0 %v2802
    %3094 = vmatpush1.msra.mxu0 %v2800
    %3095 = vmatprep.subr.mxu0 %v2806
    %3096 = vmatpush1.msra.mxu0 %v2804
    %3097 = vmatprep.subr.mxu0 %v2810
    %3098 = vmatpush1.msra.mxu0 %v2808
    %3099 = vmatprep.subr.mxu0 %v2814
    %3100 = vmatpush1.msra.mxu0 %v2812
    %3101 = vmatprep.subr.mxu0 %v2818
    %3102 = vmatpush1.msra.mxu0 %v2816
    %3103 = vmatprep.subr.mxu0 %v2297
    %3104 = vmatpush1.msra.mxu0 %v2295
    %3105 = vmatprep.subr.mxu0 %v2303
    %3106 = vmatpush1.msra.mxu0 %v2301
    %3107 = vmatprep.subr.mxu0 %v2309
    %3108 = vmatpush1.msra.mxu0 %v2307
    %3109 = vmatprep.subr.mxu0 %v2315
    %3110 = vmatpush1.msra.mxu0 %v2313
    %3111 = vmatprep.subr.mxu0 %v2321
    %3112 = vmatpush1.msra.mxu0 %v2319
    %3113 = vmatprep.subr.mxu0 %v2327
    %3114 = vmatpush1.msra.mxu0 %v2325
    %3115 = vmatprep.subr.mxu0 %v2333
    %3116 = vmatpush1.msra.mxu0 %v2331
    %3117 = vmatprep.subr.mxu0 %v2962
    %3118 = vmatpush1.msra.mxu0 %v2961
    %3119 = vmatprep.subr.mxu0 %v2856
    %3120 = vmatpush1.msra.mxu0 %v2854
    %3121 = vmatprep.subr.mxu0 %v2860
    %3122 = vmatpush1.msra.mxu0 %v2858
    %3123 = vmatprep.subr.mxu0 %v2864
    %3124 = vmatpush1.msra.mxu0 %v2862
    %3125 = vmatprep.subr.mxu0 %v2868
    %3126 = vmatpush1.msra.mxu0 %v2866
    %3127 = vmatprep.subr.mxu0 %v2872
    %3128 = vmatpush1.msra.mxu0 %v2870
    %3129 = vmatprep.subr.mxu0 %v2876
    %3130 = vmatpush1.msra.mxu0 %v2874
    %3131 = vmatprep.subr.mxu0 %v2880
    %3132 = vmatpush1.msra.mxu0 %v2878
    %3133 = vmatprep.subr.mxu0 %v2585
    %3134 = vmatpush1.msra.mxu0 %v2583
    %3135 = vmatprep.subr.mxu0 %v2591
    %3136 = vmatpush1.msra.mxu0 %v2589
    %3137 = vmatprep.mubr.f32.mxu0 %v2966
    %3138 = vmatmul.mubr.f32.gmra.mrb[0].mxu0 %v2965
    %v3139 = vpop.f32.mrb[0].mxu0
    %v3140 = vadd.f32 %v3018, %v3139
    %v3141 = vpop.f32.mrb[0].mxu0
    %v3142 = vadd.f32 %v3022, %v3141
    %3143 = vmatprep.mubr.f32.mxu0 %v2969
    %3144 = vmatmul.mubr.f32.gmra.mrb[0].mxu0 %v2968
    %v3145 = vpop.f32.mrb[0].mxu0
    %v3146 = vadd.f32 %v3018, %v3145
    %v3147 = vpop.f32.mrb[0].mxu0
    %v3148 = vadd.f32 %v3022, %v3147
    %3149 = vmatprep.mubr.f32.mxu0 %v2972
    %3150 = vmatmul.mubr.f32.gmra.mrb[0].mxu0 %v2971
    %v3151 = vpop.f32.mrb[0].mxu0
    %v3152 = vadd.f32 %v3018, %v3151
    %v3153 = vpop.f32.mrb[0].mxu0
    %v3154 = vadd.f32 %v3022, %v3153
    %3155 = vmatprep.mubr.f32.mxu0 %v2975
    %3156 = vmatmul.mubr.f32.gmra.mrb[0].mxu0 %v2974
    %v3157 = vpop.f32.mrb[0].mxu0
    %v3158 = vadd.f32 %v3018, %v3157
    %v3159 = vpop.f32.mrb[0].mxu0
    %v3160 = vadd.f32 %v3022, %v3159
    %3161 = vmatprep.mubr.f32.mxu0 %v2978
    %3162 = vmatmul.mubr.f32.gmra.mrb[0].mxu0 %v2977
    %v3163 = vpop.f32.mrb[0].mxu0
    %v3164 = vadd.f32 %v3018, %v3163
    %v3165 = vpop.f32.mrb[0].mxu0
    %v3166 = vadd.f32 %v3022, %v3165
    %3167 = vmatprep.mubr.f32.mxu0 %v2981
    %3168 = vmatmul.mubr.f32.gmra.mrb[0].mxu0 %v2980
    %v3169 = vpop.f32.mrb[0].mxu0
    %v3170 = vadd.f32 %v3018, %v3169
    %v3171 = vpop.f32.mrb[0].mxu0
    %v3172 = vadd.f32 %v3022, %v3171
    %3173 = vmatprep.mubr.f32.mxu0 %v2984
    %3174 = vmatmul.mubr.f32.gmra.mrb[0].mxu0 %v2983
    %v3175 = vpop.f32.mrb[0].mxu0
    %v3176 = vadd.f32 %v3018, %v3175
    %v3177 = vpop.f32.mrb[0].mxu0
    %v3178 = vadd.f32 %v3022, %v3177
    %3179 = vmatprep.mubr.f32.mxu0 %v2987
    %3180 = vmatmul.mubr.f32.gmra.mrb[0].mxu0 %v2986
    %v3181 = vpop.f32.mrb[0].mxu0
    %v3182 = vadd.f32 %v3018, %v3181
    %v3183 = vpop.f32.mrb[0].mxu0
    %v3184 = vadd.f32 %v3022, %v3183
    %3185 = vmatprep.mubr.f32.mxu0 %v2990
    %3186 = vmatmul.mubr.f32.gmra.mrb[0].mxu0 %v2989
    %v3187 = vpop.f32.mrb[0].mxu0
    %v3188 = vadd.f32 %v3018, %v3187
    %v3189 = vpop.f32.mrb[0].mxu0
    %v3190 = vadd.f32 %v3022, %v3189
    %3191 = vmatprep.mubr.f32.mxu0 %v2993
    %3192 = vmatmul.mubr.f32.gmra.mrb[0].mxu0 %v2992
    %v3193 = vpop.f32.mrb[0].mxu0
    %v3194 = vadd.f32 %v3018, %v3193
    %v3195 = vpop.f32.mrb[0].mxu0
    %v3196 = vadd.f32 %v3022, %v3195
    %3197 = vmatprep.mubr.f32.mxu0 %v2996
    %3198 = vmatmul.mubr.f32.gmra.mrb[0].mxu0 %v2995
    %v3199 = vpop.f32.mrb[0].mxu0
    %v3200 = vadd.f32 %v3018, %v3199
    %v3201 = vpop.f32.mrb[0].mxu0
    %v3202 = vadd.f32 %v3022, %v3201
    %3203 = vmatprep.mubr.f32.mxu0 %v2999
    %3204 = vmatmul.mubr.f32.gmra.mrb[0].mxu0 %v2998
    %v3205 = vpop.f32.mrb[0].mxu0
    %v3206 = vadd.f32 %v3018, %v3205
    %v3207 = vpop.f32.mrb[0].mxu0
    %v3208 = vadd.f32 %v3022, %v3207
    %3209 = vmatprep.mubr.f32.mxu0 %v3002
    %3210 = vmatmul.mubr.f32.gmra.mrb[0].mxu0 %v3001
    %v3211 = vpop.f32.mrb[0].mxu0
    %v3212 = vadd.f32 %v3018, %v3211
    %v3213 = vpop.f32.mrb[0].mxu0
    %v3214 = vadd.f32 %v3022, %v3213
    %3215 = vmatprep.mubr.f32.mxu0 %v3005
    %3216 = vmatmul.mubr.f32.gmra.mrb[0].mxu0 %v3004
    %v3217 = vpop.f32.mrb[0].mxu0
    %v3218 = vadd.f32 %v3018, %v3217
    %v3219 = vpop.f32.mrb[0].mxu0
    %v3220 = vadd.f32 %v3022, %v3219
    %3221 = vmatprep.mubr.f32.mxu0 %v3008
    %3222 = vmatmul.mubr.f32.gmra.mrb[0].mxu0 %v3007
    %v3223 = vpop.f32.mrb[0].mxu0
    %v3224 = vadd.f32 %v3018, %v3223
    %v3225 = vpop.f32.mrb[0].mxu0
    %v3226 = vadd.f32 %v3022, %v3225
    %3227 = vmatprep.mubr.f32.mxu0 %v3011
    %3228 = vmatmul.mubr.f32.gmra.mrb[0].mxu0 %v3010
    %v3229 = vpop.f32.mrb[0].mxu0
    %v3230 = vadd.f32 %v3018, %v3229
    %v3231 = vpop.f32.mrb[0].mxu0
    %v3232 = vadd.f32 %v3022, %v3231
    %3233 = vdwg.mxu0
    %3234 = vmatprep.subr.mxu0 %v2597
    %3235 = vmatpush1.msra.mxu0 %v2595
    %3236 = vmatprep.subr.mxu0 %v2603
    %3237 = vmatpush1.msra.mxu0 %v2601
    %3238 = vmatprep.subr.mxu0 %v2609
    %3239 = vmatpush1.msra.mxu0 %v2607
    %3240 = vmatprep.subr.mxu0 %v2615
    %3241 = vmatpush1.msra.mxu0 %v2613
    %3242 = vmatprep.subr.mxu0 %v2621
    %3243 = vmatpush1.msra.mxu0 %v2619
    %3244 = vmatprep.subr.mxu0 %v2964
    %3245 = vmatpush1.msra.mxu0 %v2963
    %3246 = vmatprep.subr.mxu0 %v2918
    %3247 = vmatpush1.msra.mxu0 %v2916
    %3248 = vmatprep.subr.mxu0 %v2922
    %3249 = vmatpush1.msra.mxu0 %v2920
    %3250 = vmatprep.subr.mxu0 %v2926
    %3251 = vmatpush1.msra.mxu0 %v2924
    %3252 = vmatprep.subr.mxu0 %v2930
    %3253 = vmatpush1.msra.mxu0 %v2928
    %3254 = vmatprep.subr.mxu0 %v2934
    %3255 = vmatpush1.msra.mxu0 %v2932
    %3256 = vmatprep.subr.mxu0 %v2938
    %3257 = vmatpush1.msra.mxu0 %v2936
    %3258 = vmatprep.subr.mxu0 %v2942
    %3259 = vmatpush1.msra.mxu0 %v2940
    %3260 = vmatprep.subr.mxu0 0.0
    %3261 = vmatpush1.msra.mxu0 0.0
    %3262 = vmatprep.subr.mxu0 0.0
    %3263 = vmatpush1.msra.mxu0 0.0
    %3264 = vmatprep.subr.mxu0 0.0
    %3265 = vmatpush1.msra.mxu0 0.0
    %3266 = vmatprep.subr.mxu0 0.0
    %3267 = vmatpush1.msra.mxu0 0.0
    %3268 = vmatprep.subr.mxu0 0.0
    %3269 = vmatpush1.msra.mxu0 0.0
    %3270 = vmatprep.subr.mxu0 0.0
    %3271 = vmatpush1.msra.mxu0 0.0
    %3272 = vmatprep.subr.mxu0 0.0
    %3273 = vmatpush1.msra.mxu0 0.0
    %3274 = vmatprep.subr.mxu0 0.0
    %3275 = vmatpush1.msra.mxu0 0.0
    %3276 = vmatprep.subr.mxu0 0.0
    %3277 = vmatpush1.msra.mxu0 0.0
    %3278 = vmatprep.subr.mxu0 0.0
    %3279 = vmatpush1.msra.mxu0 0.0
    %3280 = vmatprep.subr.mxu0 0.0
    %3281 = vmatpush1.msra.mxu0 0.0
    %3282 = vmatprep.subr.mxu0 0.0
    %3283 = vmatpush1.msra.mxu0 0.0
    %3284 = vmatprep.subr.mxu0 0.0
    %3285 = vmatpush1.msra.mxu0 0.0
    %3286 = vmatprep.subr.mxu0 0.0
    %3287 = vmatpush1.msra.mxu0 0.0
    %3288 = vmatprep.subr.mxu0 0.0
    %3289 = vmatpush1.msra.mxu0 0.0
    %3290 = vmatprep.subr.mxu0 0.0
    %3291 = vmatpush1.msra.mxu0 0.0
    %3292 = vmatprep.subr.mxu0 0.0
    %3293 = vmatpush1.msra.mxu0 0.0
    %3294 = vmatprep.subr.mxu0 0.0
    %3295 = vmatpush1.msra.mxu0 0.0
    %3296 = vmatprep.subr.mxu0 0.0
    %3297 = vmatpush1.msra.mxu0 0.0
    %3298 = vmatprep.mubr.f32.mxu0 0.0
    %3299 = vmatmul.mubr.f32.gmra.mrb[0].mxu0 %v3026
    %v3300 = vpop.f32.mrb[0].mxu0
    %v3301 = vadd.f32 %v3140, %v3300
    %v3302 = vpop.f32.mrb[0].mxu0
    %v3303 = vadd.f32 %v3142, %v3302
    %3304 = vmatprep.mubr.f32.mxu0 0.0
    %3305 = vmatmul.mubr.f32.gmra.mrb[0].mxu0 %v3029
    %v3306 = vpop.f32.mrb[0].mxu0
    %v3307 = vadd.f32 %v3146, %v3306
    %v3308 = vpop.f32.mrb[0].mxu0
    %v3309 = vadd.f32 %v3148, %v3308
    %3310 = vmatprep.mubr.f32.mxu0 0.0
    %3311 = vmatmul.mubr.f32.gmra.mrb[0].mxu0 %v3032
    %v3312 = vpop.f32.mrb[0].mxu0
    %v3313 = vadd.f32 %v3152, %v3312
    %v3314 = vpop.f32.mrb[0].mxu0
    %v3315 = vadd.f32 %v3154, %v3314
    %3316 = vmatprep.mubr.f32.mxu0 0.0
    %3317 = vmatmul.mubr.f32.gmra.mrb[0].mxu0 %v3035
    %v3318 = vpop.f32.mrb[0].mxu0
    %v3319 = vadd.f32 %v3158, %v3318
    %v3320 = vpop.f32.mrb[0].mxu0
    %v3321 = vadd.f32 %v3160, %v3320
    %3322 = vmatprep.mubr.f32.mxu0 0.0
    %3323 = vmatmul.mubr.f32.gmra.mrb[0].mxu0 %v3038
    %v3324 = vpop.f32.mrb[0].mxu0
    %v3325 = vadd.f32 %v3164, %v3324
    %v3326 = vpop.f32.mrb[0].mxu0
    %v3327 = vadd.f32 %v3166, %v3326
    %3328 = vmatprep.mubr.f32.mxu0 0.0
    %3329 = vmatmul.mubr.f32.gmra.mrb[0].mxu0 %v3041
    %v3330 = vpop.f32.mrb[0].mxu0
    %v3331 = vadd.f32 %v3170, %v3330
    %v3332 = vpop.f32.mrb[0].mxu0
    %v3333 = vadd.f32 %v3172, %v3332
    %3334 = vmatprep.mubr.f32.mxu0 0.0
    %3335 = vmatmul.mubr.f32.gmra.mrb[0].mxu0 %v3044
    %v3336 = vpop.f32.mrb[0].mxu0
    %v3337 = vadd.f32 %v3176, %v3336
    %v3338 = vpop.f32.mrb[0].mxu0
    %v3339 = vadd.f32 %v3178, %v3338
    %3340 = vmatprep.mubr.f32.mxu0 0.0
    %3341 = vmatmul.mubr.f32.gmra.mrb[0].mxu0 %v3047
    %v3342 = vpop.f32.mrb[0].mxu0
    %v3343 = vadd.f32 %v3182, %v3342
    %v3344 = vpop.f32.mrb[0].mxu0
    %v3345 = vadd.f32 %v3184, %v3344
    %3346 = vmatprep.mubr.f32.mxu0 0.0
    %3347 = vmatmul.mubr.f32.gmra.mrb[0].mxu0 %v3050
    %v3348 = vpop.f32.mrb[0].mxu0
    %v3349 = vadd.f32 %v3188, %v3348
    %v3350 = vpop.f32.mrb[0].mxu0
    %v3351 = vadd.f32 %v3190, %v3350
    %3352 = vmatprep.mubr.f32.mxu0 0.0
    %3353 = vmatmul.mubr.f32.gmra.mrb[0].mxu0 %v3053
    %v3354 = vpop.f32.mrb[0].mxu0
    %v3355 = vadd.f32 %v3194, %v3354
    %v3356 = vpop.f32.mrb[0].mxu0
    %v3357 = vadd.f32 %v3196, %v3356
    %3358 = vmatprep.mubr.f32.mxu0 0.0
    %3359 = vmatmul.mubr.f32.gmra.mrb[0].mxu0 %v3056
    %v3360 = vpop.f32.mrb[0].mxu0
    %v3361 = vadd.f32 %v3200, %v3360
    %v3362 = vpop.f32.mrb[0].mxu0
    %v3363 = vadd.f32 %v3202, %v3362
    %3364 = vmatprep.mubr.f32.mxu0 0.0
    %3365 = vmatmul.mubr.f32.gmra.mrb[0].mxu0 %v3059
    %v3366 = vpop.f32.mrb[0].mxu0
    %v3367 = vadd.f32 %v3206, %v3366
    %v3368 = vpop.f32.mrb[0].mxu0
    %v3369 = vadd.f32 %v3208, %v3368
    %3370 = vmatprep.mubr.f32.mxu0 0.0
    %3371 = vmatmul.mubr.f32.gmra.mrb[0].mxu0 %v3062
    %v3372 = vpop.f32.mrb[0].mxu0
    %v3373 = vadd.f32 %v3212, %v3372
    %v3374 = vpop.f32.mrb[0].mxu0
    %v3375 = vadd.f32 %v3214, %v3374
    %3376 = vmatprep.mubr.f32.mxu0 0.0
    %3377 = vmatmul.mubr.f32.gmra.mrb[0].mxu0 %v3065
    %v3378 = vpop.f32.mrb[0].mxu0
    %v3379 = vadd.f32 %v3218, %v3378
    %v3380 = vpop.f32.mrb[0].mxu0
    %v3381 = vadd.f32 %v3220, %v3380
    %3382 = vmatprep.mubr.f32.mxu0 0.0
    %3383 = vmatmul.mubr.f32.gmra.mrb[0].mxu0 %v3068
    %v3384 = vpop.f32.mrb[0].mxu0
    %v3385 = vadd.f32 %v3224, %v3384
    %v3386 = vpop.f32.mrb[0].mxu0
    %v3387 = vadd.f32 %v3226, %v3386
    %3388 = vmatprep.mubr.f32.mxu0 0.0
    %3389 = vmatmul.mubr.f32.gmra.mrb[0].mxu0 %v3071
    %v3390 = vpop.f32.mrb[0].mxu0
    %v3391 = vadd.f32 %v3230, %v3390
    %v3392 = vpop.f32.mrb[0].mxu0
    %v3393 = vadd.f32 %v3232, %v3392
    %3394 = vdwg.mxu0
    %vm3395 = vcmask 523264
    %3396 = vst.msk [vmem:[#allocation2] sm:$0xff] %vm3395, %v3301
    %3397 = vst.msk [vmem:[#allocation2 + $0x8] sm:$0xff] %vm3395, %v3307
    %3398 = vst.msk [vmem:[#allocation2 + $0x10] sm:$0xff] %vm3395, %v3313
    %3399 = vst.msk [vmem:[#allocation2 + $0x18] sm:$0xff] %vm3395, %v3319
    %3400 = vst.msk [vmem:[#allocation2 + $0x20] sm:$0xff] %vm3395, %v3325
    %3401 = vst.msk [vmem:[#allocation2 + $0x28] sm:$0xff] %vm3395, %v3331
    %3402 = vst.msk [vmem:[#allocation2 + $0x30] sm:$0xff] %vm3395, %v3337
    %3403 = vst.msk [vmem:[#allocation2 + $0x38] sm:$0xff] %vm3395, %v3343
    %3412 = vrot.lane.b32.xlu0 %v3301, 64
    %v3413 = vpop.permute.xlu0 %3412
    %3414 = vrot.lane.b32.xlu0 %v3307, 64
    %v3415 = vpop.permute.xlu0 %3414
    %3416 = vrot.lane.b32.xlu0 %v3313, 64
    %v3417 = vpop.permute.xlu0 %3416
    %3418 = vrot.lane.b32.xlu0 %v3319, 64
    %v3419 = vpop.permute.xlu0 %3418
    %3420 = vrot.lane.b32.xlu0 %v3325, 64
    %v3421 = vpop.permute.xlu0 %3420
    %3422 = vrot.lane.b32.xlu0 %v3331, 64
    %v3423 = vpop.permute.xlu0 %3422
    %3424 = vrot.lane.b32.xlu0 %v3337, 64
    %v3425 = vpop.permute.xlu0 %3424
    %3426 = vrot.lane.b32.xlu0 %v3343, 64
    %v3427 = vpop.permute.xlu0 %3426
    %s3436 = scalar_lea.vmem [#allocation2], 64
    %3437 = vst.msk [vmem:[%s3436] sm:$0xff] %vm3395, %v3413
    %3438 = vst.msk [vmem:[%s3436 + $0x8] sm:$0xff] %vm3395, %v3415
    %3439 = vst.msk [vmem:[%s3436 + $0x10] sm:$0xff] %vm3395, %v3417
    %3440 = vst.msk [vmem:[%s3436 + $0x18] sm:$0xff] %vm3395, %v3419
    %3441 = vst.msk [vmem:[%s3436 + $0x20] sm:$0xff] %vm3395, %v3421
    %3442 = vst.msk [vmem:[%s3436 + $0x28] sm:$0xff] %vm3395, %v3423
    %3443 = vst.msk [vmem:[%s3436 + $0x30] sm:$0xff] %vm3395, %v3425
    %3444 = vst.msk [vmem:[%s3436 + $0x38] sm:$0xff] %vm3395, %v3427
    %s3445 = scalar_lea.vmem [#allocation2], 128
    %3446 = vst.msk [vmem:[%s3445] sm:$0xff] %vm3395, %v3303
    %3447 = vst.msk [vmem:[%s3445 + $0x8] sm:$0xff] %vm3395, %v3309
    %3448 = vst.msk [vmem:[%s3445 + $0x10] sm:$0xff] %vm3395, %v3315
    %3449 = vst.msk [vmem:[%s3445 + $0x18] sm:$0xff] %vm3395, %v3321
    %3450 = vst.msk [vmem:[%s3445 + $0x20] sm:$0xff] %vm3395, %v3327
    %3451 = vst.msk [vmem:[%s3445 + $0x28] sm:$0xff] %vm3395, %v3333
    %3452 = vst.msk [vmem:[%s3445 + $0x30] sm:$0xff] %vm3395, %v3339
    %3453 = vst.msk [vmem:[%s3445 + $0x38] sm:$0xff] %vm3395, %v3345
    %s3454 = scalar_lea.vmem [#allocation2], 192
    %3455 = vst.msk [vmem:[%s3454] sm:$0xff] %vm3395, %v3349
    %3456 = vst.msk [vmem:[%s3454 + $0x8] sm:$0xff] %vm3395, %v3355
    %3457 = vst.msk [vmem:[%s3454 + $0x10] sm:$0xff] %vm3395, %v3361
    %3458 = vst.msk [vmem:[%s3454 + $0x18] sm:$0xff] %vm3395, %v3367
    %3459 = vst.msk [vmem:[%s3454 + $0x20] sm:$0xff] %vm3395, %v3373
    %3460 = vst.msk [vmem:[%s3454 + $0x28] sm:$0xff] %vm3395, %v3379
    %3461 = vst.msk [vmem:[%s3454 + $0x30] sm:$0xff] %vm3395, %v3385
    %3462 = vst.msk [vmem:[%s3454 + $0x38] sm:$0xff] %vm3395, %v3391
    %3471 = vrot.lane.b32.xlu0 %v3349, 64
    %v3472 = vpop.permute.xlu0 %3471
    %3473 = vrot.lane.b32.xlu0 %v3355, 64
    %v3474 = vpop.permute.xlu0 %3473
    %3475 = vrot.lane.b32.xlu0 %v3361, 64
    %v3476 = vpop.permute.xlu0 %3475
    %3477 = vrot.lane.b32.xlu0 %v3367, 64
    %v3478 = vpop.permute.xlu0 %3477
    %3479 = vrot.lane.b32.xlu0 %v3373, 64
    %v3480 = vpop.permute.xlu0 %3479
    %3481 = vrot.lane.b32.xlu0 %v3379, 64
    %v3482 = vpop.permute.xlu0 %3481
    %3483 = vrot.lane.b32.xlu0 %v3385, 64
    %v3484 = vpop.permute.xlu0 %3483
    %3485 = vrot.lane.b32.xlu0 %v3391, 64
    %v3486 = vpop.permute.xlu0 %3485
    %s3495 = scalar_lea.vmem [#allocation2], 256
    %3496 = vst.msk [vmem:[%s3495] sm:$0xff] %vm3395, %v3472
    %3497 = vst.msk [vmem:[%s3495 + $0x8] sm:$0xff] %vm3395, %v3474
    %3498 = vst.msk [vmem:[%s3495 + $0x10] sm:$0xff] %vm3395, %v3476
    %3499 = vst.msk [vmem:[%s3495 + $0x18] sm:$0xff] %vm3395, %v3478
    %3500 = vst.msk [vmem:[%s3495 + $0x20] sm:$0xff] %vm3395, %v3480
    %3501 = vst.msk [vmem:[%s3495 + $0x28] sm:$0xff] %vm3395, %v3482
    %3502 = vst.msk [vmem:[%s3495 + $0x30] sm:$0xff] %vm3395, %v3484
    %3503 = vst.msk [vmem:[%s3495 + $0x38] sm:$0xff] %vm3395, %v3486
    %s3504 = scalar_lea.vmem [#allocation2], 320
    %3505 = vst.msk [vmem:[%s3504] sm:$0xff] %vm3395, %v3351
    %3506 = vst.msk [vmem:[%s3504 + $0x8] sm:$0xff] %vm3395, %v3357
    %3507 = vst.msk [vmem:[%s3504 + $0x10] sm:$0xff] %vm3395, %v3363
    %3508 = vst.msk [vmem:[%s3504 + $0x18] sm:$0xff] %vm3395, %v3369
    %3509 = vst.msk [vmem:[%s3504 + $0x20] sm:$0xff] %vm3395, %v3375
    %3510 = vst.msk [vmem:[%s3504 + $0x28] sm:$0xff] %vm3395, %v3381
    %3511 = vst.msk [vmem:[%s3504 + $0x30] sm:$0xff] %vm3395, %v3387
    %3512 = vst.msk [vmem:[%s3504 + $0x38] sm:$0xff] %vm3395, %v3393
    // Predicated region
    $region50: #{decoder_forward.1} parent=1 // pred_check
      _
    $region51: #{decoder_forward.1} parent=1 // pred_check_branch
      %3514 = sbr.rel (0) target = $region53
    $region52: #{decoder_forward.1} parent=1 // pred_region
      %s3516 = ssub.s32 6144, 6144
      %3517 = vsyncadd [#allocation3], %s3516
      %s3518 = sshll.u32 [#allocation2], 4
      %s3519 = int_to_ptr.vmem [resolvable:$true] %s3518
      %3524 = dma.vmem_to_hbm [thread:$0]  %s3519, 6144, %s12, [#allocation3], 128, 128, 8
    $region53: #{decoder_forward.1} parent=1 // pred_fallthru
      _
    // Predicated region
    $region54: #{decoder_forward.1} parent=1 // pred_check
      _
    $region55: #{decoder_forward.1} parent=1 // pred_check_branch
      %3526 = sbr.rel (0) target = $region57
    $region56: #{decoder_forward.1} parent=1 // pred_region
      %3527 = dma.done [#allocation3], 6144
    $region57: #{decoder_forward.1} parent=1 // pred_fallthru
      _
    %3528 = vsyncpa [#allocation3], 1

</llo_original>
